<compile_context>
chip_gen: v5e
topology: v5e:2x2
jax: 0.10.0
libtpu: 0.0.40
codegen_flags: <defaults>
</compile_context>

<pallas_src>
import functools

import jax
import jax.numpy as jnp
from jax.experimental import pallas as pl
from jax.experimental.pallas import tpu as pltpu

# PointLights defaults (pytorch3d): ambient 0.5, diffuse 0.3, specular 0.2,
# Materials defaults: shininess 64, texel color = 0.5 everywhere.
_AMBIENT = 0.5
_DIFFUSE = 0.3
_SPECULAR = 0.2
_TEXEL = 0.5
_SHININESS_LOG2 = 6  # 2**6 = 64
_BIG = 1e30


# ---------------------------------------------------------------------------
# Pallas kernel: brute-force rasterizer + Phong shader for one (batch, pixel-tile).
# ---------------------------------------------------------------------------
def _render_kernel(attrs_ref, o_ref, *, n_faces, pad_a, tile_rows, img_w):
    """attrs_ref: f32[B*n_faces*pad_a] in SMEM.
       Per-face layout (pad_a=32), each plane is (coef_x, coef_y, coef_const):
         [e0 plane, e1 plane, (1/z) plane,
          (nx/z) plane, (ny/z) plane, (nz/z) plane,
          (px/z) plane, (py/z) plane, (pz/z) plane] + pad
       Invalid faces have the e-plane constants set to -1e30 (never inside) and all
       other plane coefficients zeroed.
       o_ref: f32 VMEM block (1, 2, tile_rows, 128) -> (gray, alpha) planes."""
    b = pl.program_id(0)
    t = pl.program_id(1)

    # ---- pixel-center coordinates generated in-kernel (no px/py DMA streams) ----
    row_i = jax.lax.broadcasted_iota(jnp.int32, (tile_rows, 128), 0).astype(jnp.float32)
    lane_i = jax.lax.broadcasted_iota(jnp.int32, (tile_rows, 128), 1).astype(jnp.float32)
    flat = (t * (tile_rows * 128)).astype(jnp.float32) + row_i * 128.0 + lane_i
    wf = float(img_w)
    py_idx = jnp.floor(flat / wf)          # exact in f32 for these magnitudes (< 2**24)
    px = (flat - py_idx * wf) + 0.5
    py = py_idx + 0.5

    zero = jnp.zeros((tile_rows, 128), dtype=jnp.float32)
    # carries: 1/z of current winner + six interpolated (attr/z) values
    carry0 = (zero, zero, zero, zero, zero, zero, zero)

    batch_base = b * (n_faces * pad_a)

    def body(f, carry):
        zinv_buf, nxz, nyz, nzz, pxz, pyz, pzz = carry
        base = batch_base + f * pad_a

        def g(i):
            return attrs_ref[base + i]

        def peval(i):                      # affine plane eval over pixel coords
            return g(i) * px + g(i + 1) * py + g(i + 2)

        e0 = peval(0)
        e1 = peval(3)
        e2 = 1.0 - e0 - e1
        inside = (e0 >= 0.0) & (e1 >= 0.0) & (e2 >= 0.0)

        zinv_f = peval(6)
        upd = inside & (zinv_f > zinv_buf)   # exact depth test on 1/z (closer == bigger)

        def sel(new, old):
            return jnp.where(upd, new, old)

        zinv_buf = sel(zinv_f, zinv_buf)
        nxz = sel(peval(9), nxz)
        nyz = sel(peval(12), nyz)
        nzz = sel(peval(15), nzz)
        pxz = sel(peval(18), pxz)
        pyz = sel(peval(21), pyz)
        pzz = sel(peval(24), pzz)
        return (zinv_buf, nxz, nyz, nzz, pxz, pyz, pzz)

    # Unrolled face loop: scalar SMEM loads of face f+1 overlap vector work of face f.
    # unroll=4 for large face counts keeps vreg pressure below spill with tile_rows=16.
    unroll = n_faces if n_faces <= 8 else 4
    zinv_buf, nxz, nyz, nzz, pxz, pyz, pzz = jax.lax.fori_loop(
        0, n_faces, body, carry0, unroll=unroll)

    covered = zinv_buf > 0.0

    # ---- Phong shading (light and camera both at world origin) ----
    # The carried attributes are (attr / z); the positive 1/z scale cancels in both
    # rsqrt-normalizations, so no reciprocal is needed at all.
    inv_n = jax.lax.rsqrt(nxz * nxz + nyz * nyz + nzz * nzz + 1e-12)
    nxn, nyn, nzn = nxz * inv_n, nyz * inv_n, nzz * inv_n

    inv_l = jax.lax.rsqrt(pxz * pxz + pyz * pyz + pzz * pzz + 1e-12)
    lx, ly, lz = -pxz * inv_l, -pyz * inv_l, -pzz * inv_l

    cos_nl = nxn * lx + nyn * ly + nzn * lz
    diffuse = _DIFFUSE * jnp.maximum(cos_nl, 0.0)

    # view direction == light direction (both at origin); reflect of light dir
    rx = -lx + 2.0 * cos_nl * nxn
    ry = -ly + 2.0 * cos_nl * nyn
    rz = -lz + 2.0 * cos_nl * nzn
    spec_cos = jnp.maximum(lx * rx + ly * ry + lz * rz, 0.0)
    spec_cos = spec_cos * (cos_nl > 0.0).astype(jnp.float32)
    s = spec_cos
    for _ in range(_SHININESS_LOG2):  # s ** 64 via repeated squaring
        s = s * s
    specular = _SPECULAR * s

    shade = (_AMBIENT + diffuse) * _TEXEL + specular

    # torch.clamp(rendered_img, 0, 255) is an identity here: shade in [0.25, 0.6],
    # background 1.0, alpha in {0, 1} -> clip dropped per perf review.
    gray = jnp.where(covered, shade, 1.0)    # background color (1,1,1)
    alpha = jnp.where(covered, 1.0, 0.0)

    o_ref[0, 0] = gray
    o_ref[0, 1] = alpha


# ---------------------------------------------------------------------------
# JAX glue: vertex normals, camera projection, per-face plane-coefficient precompute.
# ---------------------------------------------------------------------------
def vertex_normals(vertices, faces):
    """Mirror of Render_FLAME.vertex_normals (scatter-add done in plain JAX)."""
    def single(verts):
        vf = verts[faces]                                   # [NF, 3, 3]
        n = jnp.zeros_like(verts)
        n = n.at[faces[:, 1]].add(jnp.cross(vf[:, 2] - vf[:, 1], vf[:, 0] - vf[:, 1]))
        n = n.at[faces[:, 2]].add(jnp.cross(vf[:, 0] - vf[:, 2], vf[:, 1] - vf[:, 2]))
        n = n.at[faces[:, 0]].add(jnp.cross(vf[:, 1] - vf[:, 0], vf[:, 2] - vf[:, 0]))
        norm = jnp.maximum(jnp.linalg.norm(n, axis=1, keepdims=True), 1e-6)
        return n / norm

    return jax.vmap(single)(vertices)


def _pack_face_attrs(rott_geometry, faces, x_pix, y_pix, zc, vnorm, pad_a):
    """Per-face affine planes over screen (px, py):
       e0, e1 (screen-space barycentric edges) and interpolated(q/z) for
       q in {1, nx, ny, nz, px_world, py_world, pz_world} -> 27 f32 per face."""
    fx = x_pix[:, faces]                  # [B, NF, 3]
    fy = y_pix[:, faces]
    fz = zc[:, faces]
    fp = rott_geometry[:, faces, :]       # [B, NF, 3, 3]  world positions
    fn = vnorm[:, faces, :]               # [B, NF, 3, 3]  world normals

    x0, x1, x2 = fx[..., 0], fx[..., 1], fx[..., 2]
    y0, y1, y2 = fy[..., 0], fy[..., 1], fy[..., 2]
    z0, z1, z2 = fz[..., 0], fz[..., 1], fz[..., 2]

    denom = (y1 - y2) * (x0 - x2) + (x2 - x1) * (y0 - y2)
    valid = (jnp.abs(denom) > 1e-9) & (z0 > 1e-6) & (z1 > 1e-6) & (z2 > 1e-6)
    inv_d = jnp.where(valid, 1.0 / jnp.where(valid, denom, 1.0), 0.0)

    a0 = (y1 - y2) * inv_d
    b0 = (x2 - x1) * inv_d
    c0 = -(a0 * x2 + b0 * y2)
    a1 = (y2 - y0) * inv_d
    b1 = (x0 - x2) * inv_d
    c1 = -(a1 * x2 + b1 * y2)

    # inside-test planes stored in the table: invalid faces get c = -1e30 -> never inside
    ec0 = jnp.where(valid, c0, -_BIG)
    ec1 = jnp.where(valid, c1, -_BIG)

    def safe_inv(z):
        zz = jnp.where(jnp.abs(z) > 1e-6, z, 1.0)
        return jnp.where(valid, 1.0 / zz, 0.0)

    iz0, iz1, iz2 = safe_inv(z0), safe_inv(z1), safe_inv(z2)

    def plane(q0, q1, q2):
        """interp(q) under screen-space barycentrics is affine: cx*px + cy*py + cc."""
        d0 = q0 - q2
        d1 = q1 - q2
        cx = a0 * d0 + a1 * d1
        cy = b0 * d0 + b1 * d1
        cc = q2 + c0 * d0 + c1 * d1
        z = lambda v: jnp.where(valid, v, 0.0)
        return [z(cx), z(cy), z(cc)]

    planes = [a0, b0, ec0, a1, b1, ec1]           # e0, e1 planes
    planes += plane(iz0, iz1, iz2)                # 1/z plane

    izs = jnp.stack([iz0, iz1, iz2], axis=-1)     # [B, NF, 3]
    qn = fn * izs[..., None]                      # normals / z   [B, NF, 3verts, 3xyz]
    qp = fp * izs[..., None]                      # positions / z
    for comp in range(3):                         # nx/z, ny/z, nz/z planes
        planes += plane(qn[..., 0, comp], qn[..., 1, comp], qn[..., 2, comp])
    for comp in range(3):                         # px/z, py/z, pz/z planes
        planes += plane(qp[..., 0, comp], qp[..., 1, comp], qp[..., 2, comp])

    attrs = jnp.stack(planes, axis=-1).astype(jnp.float32)        # [B, NF, 27]
    attrs = jnp.pad(attrs, ((0, 0), (0, 0), (0, pad_a - attrs.shape[-1])))
    return attrs.reshape(-1)


def render_flame_forward(rott_geometry, faces, *, focal=20.0, img_h=16, img_w=16,
                         tile_rows=16):
    """rott_geometry: f32[B, NV, 3]; faces: i32[NF, 3]. Returns f32[B, H, W, 4]."""
    B, NV, _ = rott_geometry.shape
    NF = faces.shape[0]
    PAD_A = 32  # 27 used plane coefficients per face, padded

    # camera: R from look_at_view_transform(1, 0, 0) = diag(-1, 1, -1), T = 0
    R = jnp.diag(jnp.array([-1.0, 1.0, -1.0], dtype=jnp.float32))
    verts_cam = rott_geometry @ R                          # X_cam = X_world @ R + 0
    cx, cy = img_w / 2.0, img_h / 2.0
    zc = verts_cam[..., 2]
    safe_z = jnp.where(jnp.abs(zc) > 1e-8, zc, 1e-8)
    x_pix = focal * verts_cam[..., 0] / safe_z + cx
    y_pix = focal * verts_cam[..., 1] / safe_z + cy

    vnorm = vertex_normals(rott_geometry, faces)           # [B, NV, 3] world normals

    attrs_flat = _pack_face_attrs(rott_geometry, faces, x_pix, y_pix, zc, vnorm, PAD_A)

    # lane-dense flattened pixel grid: (pix_rows, 128), pix_rows a multiple of tile_rows
    n_pix = img_h * img_w
    pix_rows = -(-n_pix // 128)
    pix_rows = -(-pix_rows // 8) * 8
    tile_rows = max(8, (int(tile_rows) // 8) * 8)
    tile_rows = min(tile_rows, pix_rows)                   # small images: no extra padding
    pix_rows = -(-pix_rows // tile_rows) * tile_rows
    n_pix_pad = pix_rows * 128
    n_tiles = pix_rows // tile_rows

    kernel = functools.partial(
        _render_kernel, n_faces=NF, pad_a=PAD_A, tile_rows=tile_rows, img_w=img_w)

    out = pl.pallas_call(
        kernel,
        out_shape=jax.ShapeDtypeStruct((B, 2, pix_rows, 128), jnp.float32),
        grid=(B, n_tiles),
        in_specs=[
            pl.BlockSpec(memory_space=pltpu.MemorySpace.SMEM),   # per-face plane table
        ],
        out_specs=pl.BlockSpec((1, 2, tile_rows, 128), lambda b, t: (b, 0, t, 0)),
        compiler_params=pltpu.CompilerParams(
            dimension_semantics=("parallel", "parallel")),
    )(attrs_flat)

    # slice off pixel padding, broadcast gray -> RGB, append alpha: [B, H, W, 4]
    gray = out[:, 0].reshape(B, n_pix_pad)[:, :n_pix].reshape(B, img_h, img_w)
    alpha = out[:, 1].reshape(B, n_pix_pad)[:, :n_pix].reshape(B, img_h, img_w)
    return jnp.stack([gray, gray, gray, alpha], axis=-1)


# ---------------------------------------------------------------------------
# Demo
# ---------------------------------------------------------------------------
if __name__ == "__main__":
    key = jax.random.PRNGKey(0)

    B, img_h, img_w = 2, 16, 16

    # small 3x3 vertex grid mesh (NV=9, NF=8 triangles), in front of the camera
    xs = jnp.linspace(-0.25, 0.25, 3)
    gx, gy = jnp.meshgrid(xs, xs, indexing="ij")
    base = jnp.stack([gx.reshape(-1), gy.reshape(-1), jnp.full((9,), -0.6)], axis=-1)

    noise = 0.02 * jax.random.normal(key, (B, 9, 3), dtype=jnp.float32)
    rott_geometry = base[None].astype(jnp.float32) + noise       # [B, 9, 3]

    faces_list = []
    for i in range(2):
        for j in range(2):
            v00 = i * 3 + j
            v01 = i * 3 + j + 1
            v10 = (i + 1) * 3 + j
            v11 = (i + 1) * 3 + j + 1
            faces_list.append([v00, v10, v11])
            faces_list.append([v00, v11, v01])
    faces = jnp.array(faces_list, dtype=jnp.int32)               # [8, 3]

    img = render_flame_forward(rott_geometry, faces, focal=20.0,
                               img_h=img_h, img_w=img_w)
    img = jax.block_until_ready(img)

    assert img.shape == (B, img_h, img_w, 4)
    assert bool(jnp.all(jnp.isfinite(img)))
    print("KERNEL_OK")
</pallas_src>

<mosaic_0001>
module attributes {stable_mosaic.version = 11 : i64} {
  func.func @_render_kernel(%arg0: i32, %arg1: i32, %arg2: memref<512xf32, #tpu.memory_space<smem>>, %arg3: memref<1x2x8x128xf32, #tpu.memory_space<vmem>>) attributes {dimension_semantics = [#tpu.dimension_semantics<parallel>, #tpu.dimension_semantics<parallel>], iteration_bounds = array<i64: 2, 1>, scalar_prefetch = 0 : i64, scratch_operands = 0 : i64, tpu.core_type = #tpu.core_type<tc>, window_params = [{transform_indices = @transform_0, window_bounds = array<i64: 512>}, {transform_indices = @transform_1, window_bounds = array<i64: 1, 2, 8, 128>}]} {
    %0 = tpu.iota {dimensions = array<i32: 0>} : vector<8x128xi32>
    %1 = arith.sitofp %0 : vector<8x128xi32> to vector<8x128xf32>
    %2 = tpu.iota {dimensions = array<i32: 1>} : vector<8x128xi32>
    %3 = arith.sitofp %2 : vector<8x128xi32> to vector<8x128xf32>
    %c1024_i32 = arith.constant 1024 : i32
    %4 = arith.muli %arg1, %c1024_i32 : i32
    %5 = arith.sitofp %4 : i32 to f32
    %cst = arith.constant 1.280000e+02 : f32
    %6 = vector.broadcast %cst : f32 to vector<8x128xf32>
    %7 = arith.mulf %1, %6 : vector<8x128xf32>
    %8 = vector.broadcast %5 : f32 to vector<8x128xf32>
    %9 = arith.addf %8, %7 : vector<8x128xf32>
    %10 = arith.addf %9, %3 : vector<8x128xf32>
    %cst_0 = arith.constant 1.600000e+01 : f32
    %11 = vector.broadcast %cst_0 : f32 to vector<8x128xf32>
    %12 = arith.divf %10, %11 : vector<8x128xf32>
    %13 = math.floor %12 : vector<8x128xf32>
    %cst_1 = arith.constant 1.600000e+01 : f32
    %14 = vector.broadcast %cst_1 : f32 to vector<8x128xf32>
    %15 = arith.mulf %13, %14 : vector<8x128xf32>
    %16 = arith.subf %10, %15 : vector<8x128xf32>
    %cst_2 = arith.constant 5.000000e-01 : f32
    %17 = vector.broadcast %cst_2 : f32 to vector<8x128xf32>
    %18 = arith.addf %16, %17 : vector<8x128xf32>
    %cst_3 = arith.constant 5.000000e-01 : f32
    %19 = vector.broadcast %cst_3 : f32 to vector<8x128xf32>
    %20 = arith.addf %13, %19 : vector<8x128xf32>
    %cst_4 = arith.constant 0.000000e+00 : f32
    %21 = vector.broadcast %cst_4 : f32 to vector<8x128xf32>
    %c256_i32 = arith.constant 256 : i32
    %22 = arith.muli %arg0, %c256_i32 : i32
    %c0_i32 = arith.constant 0 : i32
    %c32_i32 = arith.constant 32 : i32
    %23 = arith.muli %c0_i32, %c32_i32 : i32
    %24 = arith.addi %22, %23 : i32
    %c0_i32_5 = arith.constant 0 : i32
    %25 = arith.addi %24, %c0_i32_5 : i32
    %26 = arith.index_cast %25 : i32 to index
    %27 = memref.load %arg2[%26] : memref<512xf32, #tpu.memory_space<smem>>
    %28 = vector.broadcast %27 : f32 to vector<8x128xf32>
    %29 = arith.mulf %28, %18 : vector<8x128xf32>
    %c1_i32 = arith.constant 1 : i32
    %30 = arith.addi %24, %c1_i32 : i32
    %31 = arith.index_cast %30 : i32 to index
    %32 = memref.load %arg2[%31] : memref<512xf32, #tpu.memory_space<smem>>
    %33 = vector.broadcast %32 : f32 to vector<8x128xf32>
    %34 = arith.mulf %33, %20 : vector<8x128xf32>
    %35 = arith.addf %29, %34 : vector<8x128xf32>
    %c2_i32 = arith.constant 2 : i32
    %36 = arith.addi %24, %c2_i32 : i32
    %37 = arith.index_cast %36 : i32 to index
    %38 = memref.load %arg2[%37] : memref<512xf32, #tpu.memory_space<smem>>
    %39 = vector.broadcast %38 : f32 to vector<8x128xf32>
    %40 = arith.addf %35, %39 : vector<8x128xf32>
    %c3_i32 = arith.constant 3 : i32
    %41 = arith.addi %24, %c3_i32 : i32
    %42 = arith.index_cast %41 : i32 to index
    %43 = memref.load %arg2[%42] : memref<512xf32, #tpu.memory_space<smem>>
    %44 = vector.broadcast %43 : f32 to vector<8x128xf32>
    %45 = arith.mulf %44, %18 : vector<8x128xf32>
    %c4_i32 = arith.constant 4 : i32
    %46 = arith.addi %24, %c4_i32 : i32
    %47 = arith.index_cast %46 : i32 to index
    %48 = memref.load %arg2[%47] : memref<512xf32, #tpu.memory_space<smem>>
    %49 = vector.broadcast %48 : f32 to vector<8x128xf32>
    %50 = arith.mulf %49, %20 : vector<8x128xf32>
    %51 = arith.addf %45, %50 : vector<8x128xf32>
    %c5_i32 = arith.constant 5 : i32
    %52 = arith.addi %24, %c5_i32 : i32
    %53 = arith.index_cast %52 : i32 to index
    %54 = memref.load %arg2[%53] : memref<512xf32, #tpu.memory_space<smem>>
    %55 = vector.broadcast %54 : f32 to vector<8x128xf32>
    %56 = arith.addf %51, %55 : vector<8x128xf32>
    %cst_6 = arith.constant 1.000000e+00 : f32
    %57 = vector.broadcast %cst_6 : f32 to vector<8x128xf32>
    %58 = arith.subf %57, %40 : vector<8x128xf32>
    %59 = arith.subf %58, %56 : vector<8x128xf32>
    %cst_7 = arith.constant 0.000000e+00 : f32
    %60 = vector.broadcast %cst_7 : f32 to vector<8x128xf32>
    %61 = arith.cmpf oge, %40, %60 : vector<8x128xf32>
    %cst_8 = arith.constant 0.000000e+00 : f32
    %62 = vector.broadcast %cst_8 : f32 to vector<8x128xf32>
    %63 = arith.cmpf oge, %56, %62 : vector<8x128xf32>
    %64 = arith.andi %61, %63 : vector<8x128xi1>
    %cst_9 = arith.constant 0.000000e+00 : f32
    %65 = vector.broadcast %cst_9 : f32 to vector<8x128xf32>
    %66 = arith.cmpf oge, %59, %65 : vector<8x128xf32>
    %67 = arith.andi %64, %66 : vector<8x128xi1>
    %c6_i32 = arith.constant 6 : i32
    %68 = arith.addi %24, %c6_i32 : i32
    %69 = arith.index_cast %68 : i32 to index
    %70 = memref.load %arg2[%69] : memref<512xf32, #tpu.memory_space<smem>>
    %71 = vector.broadcast %70 : f32 to vector<8x128xf32>
    %72 = arith.mulf %71, %18 : vector<8x128xf32>
    %c7_i32 = arith.constant 7 : i32
    %73 = arith.addi %24, %c7_i32 : i32
    %74 = arith.index_cast %73 : i32 to index
    %75 = memref.load %arg2[%74] : memref<512xf32, #tpu.memory_space<smem>>
    %76 = vector.broadcast %75 : f32 to vector<8x128xf32>
    %77 = arith.mulf %76, %20 : vector<8x128xf32>
    %78 = arith.addf %72, %77 : vector<8x128xf32>
    %c8_i32 = arith.constant 8 : i32
    %79 = arith.addi %24, %c8_i32 : i32
    %80 = arith.index_cast %79 : i32 to index
    %81 = memref.load %arg2[%80] : memref<512xf32, #tpu.memory_space<smem>>
    %82 = vector.broadcast %81 : f32 to vector<8x128xf32>
    %83 = arith.addf %78, %82 : vector<8x128xf32>
    %84 = arith.cmpf ogt, %83, %21 : vector<8x128xf32>
    %85 = arith.andi %67, %84 : vector<8x128xi1>
    %86 = arith.select %85, %83, %21 : vector<8x128xi1>, vector<8x128xf32>
    %c9_i32 = arith.constant 9 : i32
    %87 = arith.addi %24, %c9_i32 : i32
    %88 = arith.index_cast %87 : i32 to index
    %89 = memref.load %arg2[%88] : memref<512xf32, #tpu.memory_space<smem>>
    %90 = vector.broadcast %89 : f32 to vector<8x128xf32>
    %91 = arith.mulf %90, %18 : vector<8x128xf32>
    %c10_i32 = arith.constant 10 : i32
    %92 = arith.addi %24, %c10_i32 : i32
    %93 = arith.index_cast %92 : i32 to index
    %94 = memref.load %arg2[%93] : memref<512xf32, #tpu.memory_space<smem>>
    %95 = vector.broadcast %94 : f32 to vector<8x128xf32>
    %96 = arith.mulf %95, %20 : vector<8x128xf32>
    %97 = arith.addf %91, %96 : vector<8x128xf32>
    %c11_i32 = arith.constant 11 : i32
    %98 = arith.addi %24, %c11_i32 : i32
    %99 = arith.index_cast %98 : i32 to index
    %100 = memref.load %arg2[%99] : memref<512xf32, #tpu.memory_space<smem>>
    %101 = vector.broadcast %100 : f32 to vector<8x128xf32>
    %102 = arith.addf %97, %101 : vector<8x128xf32>
    %103 = arith.select %85, %102, %21 : vector<8x128xi1>, vector<8x128xf32>
    %c12_i32 = arith.constant 12 : i32
    %104 = arith.addi %24, %c12_i32 : i32
    %105 = arith.index_cast %104 : i32 to index
    %106 = memref.load %arg2[%105] : memref<512xf32, #tpu.memory_space<smem>>
    %107 = vector.broadcast %106 : f32 to vector<8x128xf32>
    %108 = arith.mulf %107, %18 : vector<8x128xf32>
    %c13_i32 = arith.constant 13 : i32
    %109 = arith.addi %24, %c13_i32 : i32
    %110 = arith.index_cast %109 : i32 to index
    %111 = memref.load %arg2[%110] : memref<512xf32, #tpu.memory_space<smem>>
    %112 = vector.broadcast %111 : f32 to vector<8x128xf32>
    %113 = arith.mulf %112, %20 : vector<8x128xf32>
    %114 = arith.addf %108, %113 : vector<8x128xf32>
    %c14_i32 = arith.constant 14 : i32
    %115 = arith.addi %24, %c14_i32 : i32
    %116 = arith.index_cast %115 : i32 to index
    %117 = memref.load %arg2[%116] : memref<512xf32, #tpu.memory_space<smem>>
    %118 = vector.broadcast %117 : f32 to vector<8x128xf32>
    %119 = arith.addf %114, %118 : vector<8x128xf32>
    %120 = arith.select %85, %119, %21 : vector<8x128xi1>, vector<8x128xf32>
    %c15_i32 = arith.constant 15 : i32
    %121 = arith.addi %24, %c15_i32 : i32
    %122 = arith.index_cast %121 : i32 to index
    %123 = memref.load %arg2[%122] : memref<512xf32, #tpu.memory_space<smem>>
    %124 = vector.broadcast %123 : f32 to vector<8x128xf32>
    %125 = arith.mulf %124, %18 : vector<8x128xf32>
    %c16_i32 = arith.constant 16 : i32
    %126 = arith.addi %24, %c16_i32 : i32
    %127 = arith.index_cast %126 : i32 to index
    %128 = memref.load %arg2[%127] : memref<512xf32, #tpu.memory_space<smem>>
    %129 = vector.broadcast %128 : f32 to vector<8x128xf32>
    %130 = arith.mulf %129, %20 : vector<8x128xf32>
    %131 = arith.addf %125, %130 : vector<8x128xf32>
    %c17_i32 = arith.constant 17 : i32
    %132 = arith.addi %24, %c17_i32 : i32
    %133 = arith.index_cast %132 : i32 to index
    %134 = memref.load %arg2[%133] : memref<512xf32, #tpu.memory_space<smem>>
    %135 = vector.broadcast %134 : f32 to vector<8x128xf32>
    %136 = arith.addf %131, %135 : vector<8x128xf32>
    %137 = arith.select %85, %136, %21 : vector<8x128xi1>, vector<8x128xf32>
    %c18_i32 = arith.constant 18 : i32
    %138 = arith.addi %24, %c18_i32 : i32
    %139 = arith.index_cast %138 : i32 to index
    %140 = memref.load %arg2[%139] : memref<512xf32, #tpu.memory_space<smem>>
    %141 = vector.broadcast %140 : f32 to vector<8x128xf32>
    %142 = arith.mulf %141, %18 : vector<8x128xf32>
    %c19_i32 = arith.constant 19 : i32
    %143 = arith.addi %24, %c19_i32 : i32
    %144 = arith.index_cast %143 : i32 to index
    %145 = memref.load %arg2[%144] : memref<512xf32, #tpu.memory_space<smem>>
    %146 = vector.broadcast %145 : f32 to vector<8x128xf32>
    %147 = arith.mulf %146, %20 : vector<8x128xf32>
    %148 = arith.addf %142, %147 : vector<8x128xf32>
    %c20_i32 = arith.constant 20 : i32
    %149 = arith.addi %24, %c20_i32 : i32
    %150 = arith.index_cast %149 : i32 to index
    %151 = memref.load %arg2[%150] : memref<512xf32, #tpu.memory_space<smem>>
    %152 = vector.broadcast %151 : f32 to vector<8x128xf32>
    %153 = arith.addf %148, %152 : vector<8x128xf32>
    %154 = arith.select %85, %153, %21 : vector<8x128xi1>, vector<8x128xf32>
    %c21_i32 = arith.constant 21 : i32
    %155 = arith.addi %24, %c21_i32 : i32
    %156 = arith.index_cast %155 : i32 to index
    %157 = memref.load %arg2[%156] : memref<512xf32, #tpu.memory_space<smem>>
    %158 = vector.broadcast %157 : f32 to vector<8x128xf32>
    %159 = arith.mulf %158, %18 : vector<8x128xf32>
    %c22_i32 = arith.constant 22 : i32
    %160 = arith.addi %24, %c22_i32 : i32
    %161 = arith.index_cast %160 : i32 to index
    %162 = memref.load %arg2[%161] : memref<512xf32, #tpu.memory_space<smem>>
    %163 = vector.broadcast %162 : f32 to vector<8x128xf32>
    %164 = arith.mulf %163, %20 : vector<8x128xf32>
    %165 = arith.addf %159, %164 : vector<8x128xf32>
    %c23_i32 = arith.constant 23 : i32
    %166 = arith.addi %24, %c23_i32 : i32
    %167 = arith.index_cast %166 : i32 to index
    %168 = memref.load %arg2[%167] : memref<512xf32, #tpu.memory_space<smem>>
    %169 = vector.broadcast %168 : f32 to vector<8x128xf32>
    %170 = arith.addf %165, %169 : vector<8x128xf32>
    %171 = arith.select %85, %170, %21 : vector<8x128xi1>, vector<8x128xf32>
    %c24_i32 = arith.constant 24 : i32
    %172 = arith.addi %24, %c24_i32 : i32
    %173 = arith.index_cast %172 : i32 to index
    %174 = memref.load %arg2[%173] : memref<512xf32, #tpu.memory_space<smem>>
    %175 = vector.broadcast %174 : f32 to vector<8x128xf32>
    %176 = arith.mulf %175, %18 : vector<8x128xf32>
    %c25_i32 = arith.constant 25 : i32
    %177 = arith.addi %24, %c25_i32 : i32
    %178 = arith.index_cast %177 : i32 to index
    %179 = memref.load %arg2[%178] : memref<512xf32, #tpu.memory_space<smem>>
    %180 = vector.broadcast %179 : f32 to vector<8x128xf32>
    %181 = arith.mulf %180, %20 : vector<8x128xf32>
    %182 = arith.addf %176, %181 : vector<8x128xf32>
    %c26_i32 = arith.constant 26 : i32
    %183 = arith.addi %24, %c26_i32 : i32
    %184 = arith.index_cast %183 : i32 to index
    %185 = memref.load %arg2[%184] : memref<512xf32, #tpu.memory_space<smem>>
    %186 = vector.broadcast %185 : f32 to vector<8x128xf32>
    %187 = arith.addf %182, %186 : vector<8x128xf32>
    %188 = arith.select %85, %187, %21 : vector<8x128xi1>, vector<8x128xf32>
    %c1_i32_10 = arith.constant 1 : i32
    %c32_i32_11 = arith.constant 32 : i32
    %189 = arith.muli %c1_i32_10, %c32_i32_11 : i32
    %190 = arith.addi %22, %189 : i32
    %c0_i32_12 = arith.constant 0 : i32
    %191 = arith.addi %190, %c0_i32_12 : i32
    %192 = arith.index_cast %191 : i32 to index
    %193 = memref.load %arg2[%192] : memref<512xf32, #tpu.memory_space<smem>>
    %194 = vector.broadcast %193 : f32 to vector<8x128xf32>
    %195 = arith.mulf %194, %18 : vector<8x128xf32>
    %c1_i32_13 = arith.constant 1 : i32
    %196 = arith.addi %190, %c1_i32_13 : i32
    %197 = arith.index_cast %196 : i32 to index
    %198 = memref.load %arg2[%197] : memref<512xf32, #tpu.memory_space<smem>>
    %199 = vector.broadcast %198 : f32 to vector<8x128xf32>
    %200 = arith.mulf %199, %20 : vector<8x128xf32>
    %201 = arith.addf %195, %200 : vector<8x128xf32>
    %c2_i32_14 = arith.constant 2 : i32
    %202 = arith.addi %190, %c2_i32_14 : i32
    %203 = arith.index_cast %202 : i32 to index
    %204 = memref.load %arg2[%203] : memref<512xf32, #tpu.memory_space<smem>>
    %205 = vector.broadcast %204 : f32 to vector<8x128xf32>
    %206 = arith.addf %201, %205 : vector<8x128xf32>
    %c3_i32_15 = arith.constant 3 : i32
    %207 = arith.addi %190, %c3_i32_15 : i32
    %208 = arith.index_cast %207 : i32 to index
    %209 = memref.load %arg2[%208] : memref<512xf32, #tpu.memory_space<smem>>
    %210 = vector.broadcast %209 : f32 to vector<8x128xf32>
    %211 = arith.mulf %210, %18 : vector<8x128xf32>
    %c4_i32_16 = arith.constant 4 : i32
    %212 = arith.addi %190, %c4_i32_16 : i32
    %213 = arith.index_cast %212 : i32 to index
    %214 = memref.load %arg2[%213] : memref<512xf32, #tpu.memory_space<smem>>
    %215 = vector.broadcast %214 : f32 to vector<8x128xf32>
    %216 = arith.mulf %215, %20 : vector<8x128xf32>
    %217 = arith.addf %211, %216 : vector<8x128xf32>
    %c5_i32_17 = arith.constant 5 : i32
    %218 = arith.addi %190, %c5_i32_17 : i32
    %219 = arith.index_cast %218 : i32 to index
    %220 = memref.load %arg2[%219] : memref<512xf32, #tpu.memory_space<smem>>
    %221 = vector.broadcast %220 : f32 to vector<8x128xf32>
    %222 = arith.addf %217, %221 : vector<8x128xf32>
    %cst_18 = arith.constant 1.000000e+00 : f32
    %223 = vector.broadcast %cst_18 : f32 to vector<8x128xf32>
    %224 = arith.subf %223, %206 : vector<8x128xf32>
    %225 = arith.subf %224, %222 : vector<8x128xf32>
    %cst_19 = arith.constant 0.000000e+00 : f32
    %226 = vector.broadcast %cst_19 : f32 to vector<8x128xf32>
    %227 = arith.cmpf oge, %206, %226 : vector<8x128xf32>
    %cst_20 = arith.constant 0.000000e+00 : f32
    %228 = vector.broadcast %cst_20 : f32 to vector<8x128xf32>
    %229 = arith.cmpf oge, %222, %228 : vector<8x128xf32>
    %230 = arith.andi %227, %229 : vector<8x128xi1>
    %cst_21 = arith.constant 0.000000e+00 : f32
    %231 = vector.broadcast %cst_21 : f32 to vector<8x128xf32>
    %232 = arith.cmpf oge, %225, %231 : vector<8x128xf32>
    %233 = arith.andi %230, %232 : vector<8x128xi1>
    %c6_i32_22 = arith.constant 6 : i32
    %234 = arith.addi %190, %c6_i32_22 : i32
    %235 = arith.index_cast %234 : i32 to index
    %236 = memref.load %arg2[%235] : memref<512xf32, #tpu.memory_space<smem>>
    %237 = vector.broadcast %236 : f32 to vector<8x128xf32>
    %238 = arith.mulf %237, %18 : vector<8x128xf32>
    %c7_i32_23 = arith.constant 7 : i32
    %239 = arith.addi %190, %c7_i32_23 : i32
    %240 = arith.index_cast %239 : i32 to index
    %241 = memref.load %arg2[%240] : memref<512xf32, #tpu.memory_space<smem>>
    %242 = vector.broadcast %241 : f32 to vector<8x128xf32>
    %243 = arith.mulf %242, %20 : vector<8x128xf32>
    %244 = arith.addf %238, %243 : vector<8x128xf32>
    %c8_i32_24 = arith.constant 8 : i32
    %245 = arith.addi %190, %c8_i32_24 : i32
    %246 = arith.index_cast %245 : i32 to index
    %247 = memref.load %arg2[%246] : memref<512xf32, #tpu.memory_space<smem>>
    %248 = vector.broadcast %247 : f32 to vector<8x128xf32>
    %249 = arith.addf %244, %248 : vector<8x128xf32>
    %250 = arith.cmpf ogt, %249, %86 : vector<8x128xf32>
    %251 = arith.andi %233, %250 : vector<8x128xi1>
    %252 = arith.select %251, %249, %86 : vector<8x128xi1>, vector<8x128xf32>
    %c9_i32_25 = arith.constant 9 : i32
    %253 = arith.addi %190, %c9_i32_25 : i32
    %254 = arith.index_cast %253 : i32 to index
    %255 = memref.load %arg2[%254] : memref<512xf32, #tpu.memory_space<smem>>
    %256 = vector.broadcast %255 : f32 to vector<8x128xf32>
    %257 = arith.mulf %256, %18 : vector<8x128xf32>
    %c10_i32_26 = arith.constant 10 : i32
    %258 = arith.addi %190, %c10_i32_26 : i32
    %259 = arith.index_cast %258 : i32 to index
    %260 = memref.load %arg2[%259] : memref<512xf32, #tpu.memory_space<smem>>
    %261 = vector.broadcast %260 : f32 to vector<8x128xf32>
    %262 = arith.mulf %261, %20 : vector<8x128xf32>
    %263 = arith.addf %257, %262 : vector<8x128xf32>
    %c11_i32_27 = arith.constant 11 : i32
    %264 = arith.addi %190, %c11_i32_27 : i32
    %265 = arith.index_cast %264 : i32 to index
    %266 = memref.load %arg2[%265] : memref<512xf32, #tpu.memory_space<smem>>
    %267 = vector.broadcast %266 : f32 to vector<8x128xf32>
    %268 = arith.addf %263, %267 : vector<8x128xf32>
    %269 = arith.select %251, %268, %103 : vector<8x128xi1>, vector<8x128xf32>
    %c12_i32_28 = arith.constant 12 : i32
    %270 = arith.addi %190, %c12_i32_28 : i32
    %271 = arith.index_cast %270 : i32 to index
    %272 = memref.load %arg2[%271] : memref<512xf32, #tpu.memory_space<smem>>
    %273 = vector.broadcast %272 : f32 to vector<8x128xf32>
    %274 = arith.mulf %273, %18 : vector<8x128xf32>
    %c13_i32_29 = arith.constant 13 : i32
    %275 = arith.addi %190, %c13_i32_29 : i32
    %276 = arith.index_cast %275 : i32 to index
    %277 = memref.load %arg2[%276] : memref<512xf32, #tpu.memory_space<smem>>
    %278 = vector.broadcast %277 : f32 to vector<8x128xf32>
    %279 = arith.mulf %278, %20 : vector<8x128xf32>
    %280 = arith.addf %274, %279 : vector<8x128xf32>
    %c14_i32_30 = arith.constant 14 : i32
    %281 = arith.addi %190, %c14_i32_30 : i32
    %282 = arith.index_cast %281 : i32 to index
    %283 = memref.load %arg2[%282] : memref<512xf32, #tpu.memory_space<smem>>
    %284 = vector.broadcast %283 : f32 to vector<8x128xf32>
    %285 = arith.addf %280, %284 : vector<8x128xf32>
    %286 = arith.select %251, %285, %120 : vector<8x128xi1>, vector<8x128xf32>
    %c15_i32_31 = arith.constant 15 : i32
    %287 = arith.addi %190, %c15_i32_31 : i32
    %288 = arith.index_cast %287 : i32 to index
    %289 = memref.load %arg2[%288] : memref<512xf32, #tpu.memory_space<smem>>
    %290 = vector.broadcast %289 : f32 to vector<8x128xf32>
    %291 = arith.mulf %290, %18 : vector<8x128xf32>
    %c16_i32_32 = arith.constant 16 : i32
    %292 = arith.addi %190, %c16_i32_32 : i32
    %293 = arith.index_cast %292 : i32 to index
    %294 = memref.load %arg2[%293] : memref<512xf32, #tpu.memory_space<smem>>
    %295 = vector.broadcast %294 : f32 to vector<8x128xf32>
    %296 = arith.mulf %295, %20 : vector<8x128xf32>
    %297 = arith.addf %291, %296 : vector<8x128xf32>
    %c17_i32_33 = arith.constant 17 : i32
    %298 = arith.addi %190, %c17_i32_33 : i32
    %299 = arith.index_cast %298 : i32 to index
    %300 = memref.load %arg2[%299] : memref<512xf32, #tpu.memory_space<smem>>
    %301 = vector.broadcast %300 : f32 to vector<8x128xf32>
    %302 = arith.addf %297, %301 : vector<8x128xf32>
    %303 = arith.select %251, %302, %137 : vector<8x128xi1>, vector<8x128xf32>
    %c18_i32_34 = arith.constant 18 : i32
    %304 = arith.addi %190, %c18_i32_34 : i32
    %305 = arith.index_cast %304 : i32 to index
    %306 = memref.load %arg2[%305] : memref<512xf32, #tpu.memory_space<smem>>
    %307 = vector.broadcast %306 : f32 to vector<8x128xf32>
    %308 = arith.mulf %307, %18 : vector<8x128xf32>
    %c19_i32_35 = arith.constant 19 : i32
    %309 = arith.addi %190, %c19_i32_35 : i32
    %310 = arith.index_cast %309 : i32 to index
    %311 = memref.load %arg2[%310] : memref<512xf32, #tpu.memory_space<smem>>
    %312 = vector.broadcast %311 : f32 to vector<8x128xf32>
    %313 = arith.mulf %312, %20 : vector<8x128xf32>
    %314 = arith.addf %308, %313 : vector<8x128xf32>
    %c20_i32_36 = arith.constant 20 : i32
    %315 = arith.addi %190, %c20_i32_36 : i32
    %316 = arith.index_cast %315 : i32 to index
    %317 = memref.load %arg2[%316] : memref<512xf32, #tpu.memory_space<smem>>
    %318 = vector.broadcast %317 : f32 to vector<8x128xf32>
    %319 = arith.addf %314, %318 : vector<8x128xf32>
    %320 = arith.select %251, %319, %154 : vector<8x128xi1>, vector<8x128xf32>
    %c21_i32_37 = arith.constant 21 : i32
    %321 = arith.addi %190, %c21_i32_37 : i32
    %322 = arith.index_cast %321 : i32 to index
    %323 = memref.load %arg2[%322] : memref<512xf32, #tpu.memory_space<smem>>
    %324 = vector.broadcast %323 : f32 to vector<8x128xf32>
    %325 = arith.mulf %324, %18 : vector<8x128xf32>
    %c22_i32_38 = arith.constant 22 : i32
    %326 = arith.addi %190, %c22_i32_38 : i32
    %327 = arith.index_cast %326 : i32 to index
    %328 = memref.load %arg2[%327] : memref<512xf32, #tpu.memory_space<smem>>
    %329 = vector.broadcast %328 : f32 to vector<8x128xf32>
    %330 = arith.mulf %329, %20 : vector<8x128xf32>
    %331 = arith.addf %325, %330 : vector<8x128xf32>
    %c23_i32_39 = arith.constant 23 : i32
    %332 = arith.addi %190, %c23_i32_39 : i32
    %333 = arith.index_cast %332 : i32 to index
    %334 = memref.load %arg2[%333] : memref<512xf32, #tpu.memory_space<smem>>
    %335 = vector.broadcast %334 : f32 to vector<8x128xf32>
    %336 = arith.addf %331, %335 : vector<8x128xf32>
    %337 = arith.select %251, %336, %171 : vector<8x128xi1>, vector<8x128xf32>
    %c24_i32_40 = arith.constant 24 : i32
    %338 = arith.addi %190, %c24_i32_40 : i32
    %339 = arith.index_cast %338 : i32 to index
    %340 = memref.load %arg2[%339] : memref<512xf32, #tpu.memory_space<smem>>
    %341 = vector.broadcast %340 : f32 to vector<8x128xf32>
    %342 = arith.mulf %341, %18 : vector<8x128xf32>
    %c25_i32_41 = arith.constant 25 : i32
    %343 = arith.addi %190, %c25_i32_41 : i32
    %344 = arith.index_cast %343 : i32 to index
    %345 = memref.load %arg2[%344] : memref<512xf32, #tpu.memory_space<smem>>
    %346 = vector.broadcast %345 : f32 to vector<8x128xf32>
    %347 = arith.mulf %346, %20 : vector<8x128xf32>
    %348 = arith.addf %342, %347 : vector<8x128xf32>
    %c26_i32_42 = arith.constant 26 : i32
    %349 = arith.addi %190, %c26_i32_42 : i32
    %350 = arith.index_cast %349 : i32 to index
    %351 = memref.load %arg2[%350] : memref<512xf32, #tpu.memory_space<smem>>
    %352 = vector.broadcast %351 : f32 to vector<8x128xf32>
    %353 = arith.addf %348, %352 : vector<8x128xf32>
    %354 = arith.select %251, %353, %188 : vector<8x128xi1>, vector<8x128xf32>
    %c2_i32_43 = arith.constant 2 : i32
    %c32_i32_44 = arith.constant 32 : i32
    %355 = arith.muli %c2_i32_43, %c32_i32_44 : i32
    %356 = arith.addi %22, %355 : i32
    %c0_i32_45 = arith.constant 0 : i32
    %357 = arith.addi %356, %c0_i32_45 : i32
    %358 = arith.index_cast %357 : i32 to index
    %359 = memref.load %arg2[%358] : memref<512xf32, #tpu.memory_space<smem>>
    %360 = vector.broadcast %359 : f32 to vector<8x128xf32>
    %361 = arith.mulf %360, %18 : vector<8x128xf32>
    %c1_i32_46 = arith.constant 1 : i32
    %362 = arith.addi %356, %c1_i32_46 : i32
    %363 = arith.index_cast %362 : i32 to index
    %364 = memref.load %arg2[%363] : memref<512xf32, #tpu.memory_space<smem>>
    %365 = vector.broadcast %364 : f32 to vector<8x128xf32>
    %366 = arith.mulf %365, %20 : vector<8x128xf32>
    %367 = arith.addf %361, %366 : vector<8x128xf32>
    %c2_i32_47 = arith.constant 2 : i32
    %368 = arith.addi %356, %c2_i32_47 : i32
    %369 = arith.index_cast %368 : i32 to index
    %370 = memref.load %arg2[%369] : memref<512xf32, #tpu.memory_space<smem>>
    %371 = vector.broadcast %370 : f32 to vector<8x128xf32>
    %372 = arith.addf %367, %371 : vector<8x128xf32>
    %c3_i32_48 = arith.constant 3 : i32
    %373 = arith.addi %356, %c3_i32_48 : i32
    %374 = arith.index_cast %373 : i32 to index
    %375 = memref.load %arg2[%374] : memref<512xf32, #tpu.memory_space<smem>>
    %376 = vector.broadcast %375 : f32 to vector<8x128xf32>
    %377 = arith.mulf %376, %18 : vector<8x128xf32>
    %c4_i32_49 = arith.constant 4 : i32
    %378 = arith.addi %356, %c4_i32_49 : i32
    %379 = arith.index_cast %378 : i32 to index
    %380 = memref.load %arg2[%379] : memref<512xf32, #tpu.memory_space<smem>>
    %381 = vector.broadcast %380 : f32 to vector<8x128xf32>
    %382 = arith.mulf %381, %20 : vector<8x128xf32>
    %383 = arith.addf %377, %382 : vector<8x128xf32>
    %c5_i32_50 = arith.constant 5 : i32
    %384 = arith.addi %356, %c5_i32_50 : i32
    %385 = arith.index_cast %384 : i32 to index
    %386 = memref.load %arg2[%385] : memref<512xf32, #tpu.memory_space<smem>>
    %387 = vector.broadcast %386 : f32 to vector<8x128xf32>
    %388 = arith.addf %383, %387 : vector<8x128xf32>
    %cst_51 = arith.constant 1.000000e+00 : f32
    %389 = vector.broadcast %cst_51 : f32 to vector<8x128xf32>
    %390 = arith.subf %389, %372 : vector<8x128xf32>
    %391 = arith.subf %390, %388 : vector<8x128xf32>
    %cst_52 = arith.constant 0.000000e+00 : f32
    %392 = vector.broadcast %cst_52 : f32 to vector<8x128xf32>
    %393 = arith.cmpf oge, %372, %392 : vector<8x128xf32>
    %cst_53 = arith.constant 0.000000e+00 : f32
    %394 = vector.broadcast %cst_53 : f32 to vector<8x128xf32>
    %395 = arith.cmpf oge, %388, %394 : vector<8x128xf32>
    %396 = arith.andi %393, %395 : vector<8x128xi1>
    %cst_54 = arith.constant 0.000000e+00 : f32
    %397 = vector.broadcast %cst_54 : f32 to vector<8x128xf32>
    %398 = arith.cmpf oge, %391, %397 : vector<8x128xf32>
    %399 = arith.andi %396, %398 : vector<8x128xi1>
    %c6_i32_55 = arith.constant 6 : i32
    %400 = arith.addi %356, %c6_i32_55 : i32
    %401 = arith.index_cast %400 : i32 to index
    %402 = memref.load %arg2[%401] : memref<512xf32, #tpu.memory_space<smem>>
    %403 = vector.broadcast %402 : f32 to vector<8x128xf32>
    %404 = arith.mulf %403, %18 : vector<8x128xf32>
    %c7_i32_56 = arith.constant 7 : i32
    %405 = arith.addi %356, %c7_i32_56 : i32
    %406 = arith.index_cast %405 : i32 to index
    %407 = memref.load %arg2[%406] : memref<512xf32, #tpu.memory_space<smem>>
    %408 = vector.broadcast %407 : f32 to vector<8x128xf32>
    %409 = arith.mulf %408, %20 : vector<8x128xf32>
    %410 = arith.addf %404, %409 : vector<8x128xf32>
    %c8_i32_57 = arith.constant 8 : i32
    %411 = arith.addi %356, %c8_i32_57 : i32
    %412 = arith.index_cast %411 : i32 to index
    %413 = memref.load %arg2[%412] : memref<512xf32, #tpu.memory_space<smem>>
    %414 = vector.broadcast %413 : f32 to vector<8x128xf32>
    %415 = arith.addf %410, %414 : vector<8x128xf32>
    %416 = arith.cmpf ogt, %415, %252 : vector<8x128xf32>
    %417 = arith.andi %399, %416 : vector<8x128xi1>
    %418 = arith.select %417, %415, %252 : vector<8x128xi1>, vector<8x128xf32>
    %c9_i32_58 = arith.constant 9 : i32
    %419 = arith.addi %356, %c9_i32_58 : i32
    %420 = arith.index_cast %419 : i32 to index
    %421 = memref.load %arg2[%420] : memref<512xf32, #tpu.memory_space<smem>>
    %422 = vector.broadcast %421 : f32 to vector<8x128xf32>
    %423 = arith.mulf %422, %18 : vector<8x128xf32>
    %c10_i32_59 = arith.constant 10 : i32
    %424 = arith.addi %356, %c10_i32_59 : i32
    %425 = arith.index_cast %424 : i32 to index
    %426 = memref.load %arg2[%425] : memref<512xf32, #tpu.memory_space<smem>>
    %427 = vector.broadcast %426 : f32 to vector<8x128xf32>
    %428 = arith.mulf %427, %20 : vector<8x128xf32>
    %429 = arith.addf %423, %428 : vector<8x128xf32>
    %c11_i32_60 = arith.constant 11 : i32
    %430 = arith.addi %356, %c11_i32_60 : i32
    %431 = arith.index_cast %430 : i32 to index
    %432 = memref.load %arg2[%431] : memref<512xf32, #tpu.memory_space<smem>>
    %433 = vector.broadcast %432 : f32 to vector<8x128xf32>
    %434 = arith.addf %429, %433 : vector<8x128xf32>
    %435 = arith.select %417, %434, %269 : vector<8x128xi1>, vector<8x128xf32>
    %c12_i32_61 = arith.constant 12 : i32
    %436 = arith.addi %356, %c12_i32_61 : i32
    %437 = arith.index_cast %436 : i32 to index
    %438 = memref.load %arg2[%437] : memref<512xf32, #tpu.memory_space<smem>>
    %439 = vector.broadcast %438 : f32 to vector<8x128xf32>
    %440 = arith.mulf %439, %18 : vector<8x128xf32>
    %c13_i32_62 = arith.constant 13 : i32
    %441 = arith.addi %356, %c13_i32_62 : i32
    %442 = arith.index_cast %441 : i32 to index
    %443 = memref.load %arg2[%442] : memref<512xf32, #tpu.memory_space<smem>>
    %444 = vector.broadcast %443 : f32 to vector<8x128xf32>
    %445 = arith.mulf %444, %20 : vector<8x128xf32>
    %446 = arith.addf %440, %445 : vector<8x128xf32>
    %c14_i32_63 = arith.constant 14 : i32
    %447 = arith.addi %356, %c14_i32_63 : i32
    %448 = arith.index_cast %447 : i32 to index
    %449 = memref.load %arg2[%448] : memref<512xf32, #tpu.memory_space<smem>>
    %450 = vector.broadcast %449 : f32 to vector<8x128xf32>
    %451 = arith.addf %446, %450 : vector<8x128xf32>
    %452 = arith.select %417, %451, %286 : vector<8x128xi1>, vector<8x128xf32>
    %c15_i32_64 = arith.constant 15 : i32
    %453 = arith.addi %356, %c15_i32_64 : i32
    %454 = arith.index_cast %453 : i32 to index
    %455 = memref.load %arg2[%454] : memref<512xf32, #tpu.memory_space<smem>>
    %456 = vector.broadcast %455 : f32 to vector<8x128xf32>
    %457 = arith.mulf %456, %18 : vector<8x128xf32>
    %c16_i32_65 = arith.constant 16 : i32
    %458 = arith.addi %356, %c16_i32_65 : i32
    %459 = arith.index_cast %458 : i32 to index
    %460 = memref.load %arg2[%459] : memref<512xf32, #tpu.memory_space<smem>>
    %461 = vector.broadcast %460 : f32 to vector<8x128xf32>
    %462 = arith.mulf %461, %20 : vector<8x128xf32>
    %463 = arith.addf %457, %462 : vector<8x128xf32>
    %c17_i32_66 = arith.constant 17 : i32
    %464 = arith.addi %356, %c17_i32_66 : i32
    %465 = arith.index_cast %464 : i32 to index
    %466 = memref.load %arg2[%465] : memref<512xf32, #tpu.memory_space<smem>>
    %467 = vector.broadcast %466 : f32 to vector<8x128xf32>
    %468 = arith.addf %463, %467 : vector<8x128xf32>
    %469 = arith.select %417, %468, %303 : vector<8x128xi1>, vector<8x128xf32>
    %c18_i32_67 = arith.constant 18 : i32
    %470 = arith.addi %356, %c18_i32_67 : i32
    %471 = arith.index_cast %470 : i32 to index
    %472 = memref.load %arg2[%471] : memref<512xf32, #tpu.memory_space<smem>>
    %473 = vector.broadcast %472 : f32 to vector<8x128xf32>
    %474 = arith.mulf %473, %18 : vector<8x128xf32>
    %c19_i32_68 = arith.constant 19 : i32
    %475 = arith.addi %356, %c19_i32_68 : i32
    %476 = arith.index_cast %475 : i32 to index
    %477 = memref.load %arg2[%476] : memref<512xf32, #tpu.memory_space<smem>>
    %478 = vector.broadcast %477 : f32 to vector<8x128xf32>
    %479 = arith.mulf %478, %20 : vector<8x128xf32>
    %480 = arith.addf %474, %479 : vector<8x128xf32>
    %c20_i32_69 = arith.constant 20 : i32
    %481 = arith.addi %356, %c20_i32_69 : i32
    %482 = arith.index_cast %481 : i32 to index
    %483 = memref.load %arg2[%482] : memref<512xf32, #tpu.memory_space<smem>>
    %484 = vector.broadcast %483 : f32 to vector<8x128xf32>
    %485 = arith.addf %480, %484 : vector<8x128xf32>
    %486 = arith.select %417, %485, %320 : vector<8x128xi1>, vector<8x128xf32>
    %c21_i32_70 = arith.constant 21 : i32
    %487 = arith.addi %356, %c21_i32_70 : i32
    %488 = arith.index_cast %487 : i32 to index
    %489 = memref.load %arg2[%488] : memref<512xf32, #tpu.memory_space<smem>>
    %490 = vector.broadcast %489 : f32 to vector<8x128xf32>
    %491 = arith.mulf %490, %18 : vector<8x128xf32>
    %c22_i32_71 = arith.constant 22 : i32
    %492 = arith.addi %356, %c22_i32_71 : i32
    %493 = arith.index_cast %492 : i32 to index
    %494 = memref.load %arg2[%493] : memref<512xf32, #tpu.memory_space<smem>>
    %495 = vector.broadcast %494 : f32 to vector<8x128xf32>
    %496 = arith.mulf %495, %20 : vector<8x128xf32>
    %497 = arith.addf %491, %496 : vector<8x128xf32>
    %c23_i32_72 = arith.constant 23 : i32
    %498 = arith.addi %356, %c23_i32_72 : i32
    %499 = arith.index_cast %498 : i32 to index
    %500 = memref.load %arg2[%499] : memref<512xf32, #tpu.memory_space<smem>>
    %501 = vector.broadcast %500 : f32 to vector<8x128xf32>
    %502 = arith.addf %497, %501 : vector<8x128xf32>
    %503 = arith.select %417, %502, %337 : vector<8x128xi1>, vector<8x128xf32>
    %c24_i32_73 = arith.constant 24 : i32
    %504 = arith.addi %356, %c24_i32_73 : i32
    %505 = arith.index_cast %504 : i32 to index
    %506 = memref.load %arg2[%505] : memref<512xf32, #tpu.memory_space<smem>>
    %507 = vector.broadcast %506 : f32 to vector<8x128xf32>
    %508 = arith.mulf %507, %18 : vector<8x128xf32>
    %c25_i32_74 = arith.constant 25 : i32
    %509 = arith.addi %356, %c25_i32_74 : i32
    %510 = arith.index_cast %509 : i32 to index
    %511 = memref.load %arg2[%510] : memref<512xf32, #tpu.memory_space<smem>>
    %512 = vector.broadcast %511 : f32 to vector<8x128xf32>
    %513 = arith.mulf %512, %20 : vector<8x128xf32>
    %514 = arith.addf %508, %513 : vector<8x128xf32>
    %c26_i32_75 = arith.constant 26 : i32
    %515 = arith.addi %356, %c26_i32_75 : i32
    %516 = arith.index_cast %515 : i32 to index
    %517 = memref.load %arg2[%516] : memref<512xf32, #tpu.memory_space<smem>>
    %518 = vector.broadcast %517 : f32 to vector<8x128xf32>
    %519 = arith.addf %514, %518 : vector<8x128xf32>
    %520 = arith.select %417, %519, %354 : vector<8x128xi1>, vector<8x128xf32>
    %c3_i32_76 = arith.constant 3 : i32
    %c32_i32_77 = arith.constant 32 : i32
    %521 = arith.muli %c3_i32_76, %c32_i32_77 : i32
    %522 = arith.addi %22, %521 : i32
    %c0_i32_78 = arith.constant 0 : i32
    %523 = arith.addi %522, %c0_i32_78 : i32
    %524 = arith.index_cast %523 : i32 to index
    %525 = memref.load %arg2[%524] : memref<512xf32, #tpu.memory_space<smem>>
    %526 = vector.broadcast %525 : f32 to vector<8x128xf32>
    %527 = arith.mulf %526, %18 : vector<8x128xf32>
    %c1_i32_79 = arith.constant 1 : i32
    %528 = arith.addi %522, %c1_i32_79 : i32
    %529 = arith.index_cast %528 : i32 to index
    %530 = memref.load %arg2[%529] : memref<512xf32, #tpu.memory_space<smem>>
    %531 = vector.broadcast %530 : f32 to vector<8x128xf32>
    %532 = arith.mulf %531, %20 : vector<8x128xf32>
    %533 = arith.addf %527, %532 : vector<8x128xf32>
    %c2_i32_80 = arith.constant 2 : i32
    %534 = arith.addi %522, %c2_i32_80 : i32
    %535 = arith.index_cast %534 : i32 to index
    %536 = memref.load %arg2[%535] : memref<512xf32, #tpu.memory_space<smem>>
    %537 = vector.broadcast %536 : f32 to vector<8x128xf32>
    %538 = arith.addf %533, %537 : vector<8x128xf32>
    %c3_i32_81 = arith.constant 3 : i32
    %539 = arith.addi %522, %c3_i32_81 : i32
    %540 = arith.index_cast %539 : i32 to index
    %541 = memref.load %arg2[%540] : memref<512xf32, #tpu.memory_space<smem>>
    %542 = vector.broadcast %541 : f32 to vector<8x128xf32>
    %543 = arith.mulf %542, %18 : vector<8x128xf32>
    %c4_i32_82 = arith.constant 4 : i32
    %544 = arith.addi %522, %c4_i32_82 : i32
    %545 = arith.index_cast %544 : i32 to index
    %546 = memref.load %arg2[%545] : memref<512xf32, #tpu.memory_space<smem>>
    %547 = vector.broadcast %546 : f32 to vector<8x128xf32>
    %548 = arith.mulf %547, %20 : vector<8x128xf32>
    %549 = arith.addf %543, %548 : vector<8x128xf32>
    %c5_i32_83 = arith.constant 5 : i32
    %550 = arith.addi %522, %c5_i32_83 : i32
    %551 = arith.index_cast %550 : i32 to index
    %552 = memref.load %arg2[%551] : memref<512xf32, #tpu.memory_space<smem>>
    %553 = vector.broadcast %552 : f32 to vector<8x128xf32>
    %554 = arith.addf %549, %553 : vector<8x128xf32>
    %cst_84 = arith.constant 1.000000e+00 : f32
    %555 = vector.broadcast %cst_84 : f32 to vector<8x128xf32>
    %556 = arith.subf %555, %538 : vector<8x128xf32>
    %557 = arith.subf %556, %554 : vector<8x128xf32>
    %cst_85 = arith.constant 0.000000e+00 : f32
    %558 = vector.broadcast %cst_85 : f32 to vector<8x128xf32>
    %559 = arith.cmpf oge, %538, %558 : vector<8x128xf32>
    %cst_86 = arith.constant 0.000000e+00 : f32
    %560 = vector.broadcast %cst_86 : f32 to vector<8x128xf32>
    %561 = arith.cmpf oge, %554, %560 : vector<8x128xf32>
    %562 = arith.andi %559, %561 : vector<8x128xi1>
    %cst_87 = arith.constant 0.000000e+00 : f32
    %563 = vector.broadcast %cst_87 : f32 to vector<8x128xf32>
    %564 = arith.cmpf oge, %557, %563 : vector<8x128xf32>
    %565 = arith.andi %562, %564 : vector<8x128xi1>
    %c6_i32_88 = arith.constant 6 : i32
    %566 = arith.addi %522, %c6_i32_88 : i32
    %567 = arith.index_cast %566 : i32 to index
    %568 = memref.load %arg2[%567] : memref<512xf32, #tpu.memory_space<smem>>
    %569 = vector.broadcast %568 : f32 to vector<8x128xf32>
    %570 = arith.mulf %569, %18 : vector<8x128xf32>
    %c7_i32_89 = arith.constant 7 : i32
    %571 = arith.addi %522, %c7_i32_89 : i32
    %572 = arith.index_cast %571 : i32 to index
    %573 = memref.load %arg2[%572] : memref<512xf32, #tpu.memory_space<smem>>
    %574 = vector.broadcast %573 : f32 to vector<8x128xf32>
    %575 = arith.mulf %574, %20 : vector<8x128xf32>
    %576 = arith.addf %570, %575 : vector<8x128xf32>
    %c8_i32_90 = arith.constant 8 : i32
    %577 = arith.addi %522, %c8_i32_90 : i32
    %578 = arith.index_cast %577 : i32 to index
    %579 = memref.load %arg2[%578] : memref<512xf32, #tpu.memory_space<smem>>
    %580 = vector.broadcast %579 : f32 to vector<8x128xf32>
    %581 = arith.addf %576, %580 : vector<8x128xf32>
    %582 = arith.cmpf ogt, %581, %418 : vector<8x128xf32>
    %583 = arith.andi %565, %582 : vector<8x128xi1>
    %584 = arith.select %583, %581, %418 : vector<8x128xi1>, vector<8x128xf32>
    %c9_i32_91 = arith.constant 9 : i32
    %585 = arith.addi %522, %c9_i32_91 : i32
    %586 = arith.index_cast %585 : i32 to index
    %587 = memref.load %arg2[%586] : memref<512xf32, #tpu.memory_space<smem>>
    %588 = vector.broadcast %587 : f32 to vector<8x128xf32>
    %589 = arith.mulf %588, %18 : vector<8x128xf32>
    %c10_i32_92 = arith.constant 10 : i32
    %590 = arith.addi %522, %c10_i32_92 : i32
    %591 = arith.index_cast %590 : i32 to index
    %592 = memref.load %arg2[%591] : memref<512xf32, #tpu.memory_space<smem>>
    %593 = vector.broadcast %592 : f32 to vector<8x128xf32>
    %594 = arith.mulf %593, %20 : vector<8x128xf32>
    %595 = arith.addf %589, %594 : vector<8x128xf32>
    %c11_i32_93 = arith.constant 11 : i32
    %596 = arith.addi %522, %c11_i32_93 : i32
    %597 = arith.index_cast %596 : i32 to index
    %598 = memref.load %arg2[%597] : memref<512xf32, #tpu.memory_space<smem>>
    %599 = vector.broadcast %598 : f32 to vector<8x128xf32>
    %600 = arith.addf %595, %599 : vector<8x128xf32>
    %601 = arith.select %583, %600, %435 : vector<8x128xi1>, vector<8x128xf32>
    %c12_i32_94 = arith.constant 12 : i32
    %602 = arith.addi %522, %c12_i32_94 : i32
    %603 = arith.index_cast %602 : i32 to index
    %604 = memref.load %arg2[%603] : memref<512xf32, #tpu.memory_space<smem>>
    %605 = vector.broadcast %604 : f32 to vector<8x128xf32>
    %606 = arith.mulf %605, %18 : vector<8x128xf32>
    %c13_i32_95 = arith.constant 13 : i32
    %607 = arith.addi %522, %c13_i32_95 : i32
    %608 = arith.index_cast %607 : i32 to index
    %609 = memref.load %arg2[%608] : memref<512xf32, #tpu.memory_space<smem>>
    %610 = vector.broadcast %609 : f32 to vector<8x128xf32>
    %611 = arith.mulf %610, %20 : vector<8x128xf32>
    %612 = arith.addf %606, %611 : vector<8x128xf32>
    %c14_i32_96 = arith.constant 14 : i32
    %613 = arith.addi %522, %c14_i32_96 : i32
    %614 = arith.index_cast %613 : i32 to index
    %615 = memref.load %arg2[%614] : memref<512xf32, #tpu.memory_space<smem>>
    %616 = vector.broadcast %615 : f32 to vector<8x128xf32>
    %617 = arith.addf %612, %616 : vector<8x128xf32>
    %618 = arith.select %583, %617, %452 : vector<8x128xi1>, vector<8x128xf32>
    %c15_i32_97 = arith.constant 15 : i32
    %619 = arith.addi %522, %c15_i32_97 : i32
    %620 = arith.index_cast %619 : i32 to index
    %621 = memref.load %arg2[%620] : memref<512xf32, #tpu.memory_space<smem>>
    %622 = vector.broadcast %621 : f32 to vector<8x128xf32>
    %623 = arith.mulf %622, %18 : vector<8x128xf32>
    %c16_i32_98 = arith.constant 16 : i32
    %624 = arith.addi %522, %c16_i32_98 : i32
    %625 = arith.index_cast %624 : i32 to index
    %626 = memref.load %arg2[%625] : memref<512xf32, #tpu.memory_space<smem>>
    %627 = vector.broadcast %626 : f32 to vector<8x128xf32>
    %628 = arith.mulf %627, %20 : vector<8x128xf32>
    %629 = arith.addf %623, %628 : vector<8x128xf32>
    %c17_i32_99 = arith.constant 17 : i32
    %630 = arith.addi %522, %c17_i32_99 : i32
    %631 = arith.index_cast %630 : i32 to index
    %632 = memref.load %arg2[%631] : memref<512xf32, #tpu.memory_space<smem>>
    %633 = vector.broadcast %632 : f32 to vector<8x128xf32>
    %634 = arith.addf %629, %633 : vector<8x128xf32>
    %635 = arith.select %583, %634, %469 : vector<8x128xi1>, vector<8x128xf32>
    %c18_i32_100 = arith.constant 18 : i32
    %636 = arith.addi %522, %c18_i32_100 : i32
    %637 = arith.index_cast %636 : i32 to index
    %638 = memref.load %arg2[%637] : memref<512xf32, #tpu.memory_space<smem>>
    %639 = vector.broadcast %638 : f32 to vector<8x128xf32>
    %640 = arith.mulf %639, %18 : vector<8x128xf32>
    %c19_i32_101 = arith.constant 19 : i32
    %641 = arith.addi %522, %c19_i32_101 : i32
    %642 = arith.index_cast %641 : i32 to index
    %643 = memref.load %arg2[%642] : memref<512xf32, #tpu.memory_space<smem>>
    %644 = vector.broadcast %643 : f32 to vector<8x128xf32>
    %645 = arith.mulf %644, %20 : vector<8x128xf32>
    %646 = arith.addf %640, %645 : vector<8x128xf32>
    %c20_i32_102 = arith.constant 20 : i32
    %647 = arith.addi %522, %c20_i32_102 : i32
    %648 = arith.index_cast %647 : i32 to index
    %649 = memref.load %arg2[%648] : memref<512xf32, #tpu.memory_space<smem>>
    %650 = vector.broadcast %649 : f32 to vector<8x128xf32>
    %651 = arith.addf %646, %650 : vector<8x128xf32>
    %652 = arith.select %583, %651, %486 : vector<8x128xi1>, vector<8x128xf32>
    %c21_i32_103 = arith.constant 21 : i32
    %653 = arith.addi %522, %c21_i32_103 : i32
    %654 = arith.index_cast %653 : i32 to index
    %655 = memref.load %arg2[%654] : memref<512xf32, #tpu.memory_space<smem>>
    %656 = vector.broadcast %655 : f32 to vector<8x128xf32>
    %657 = arith.mulf %656, %18 : vector<8x128xf32>
    %c22_i32_104 = arith.constant 22 : i32
    %658 = arith.addi %522, %c22_i32_104 : i32
    %659 = arith.index_cast %658 : i32 to index
    %660 = memref.load %arg2[%659] : memref<512xf32, #tpu.memory_space<smem>>
    %661 = vector.broadcast %660 : f32 to vector<8x128xf32>
    %662 = arith.mulf %661, %20 : vector<8x128xf32>
    %663 = arith.addf %657, %662 : vector<8x128xf32>
    %c23_i32_105 = arith.constant 23 : i32
    %664 = arith.addi %522, %c23_i32_105 : i32
    %665 = arith.index_cast %664 : i32 to index
    %666 = memref.load %arg2[%665] : memref<512xf32, #tpu.memory_space<smem>>
    %667 = vector.broadcast %666 : f32 to vector<8x128xf32>
    %668 = arith.addf %663, %667 : vector<8x128xf32>
    %669 = arith.select %583, %668, %503 : vector<8x128xi1>, vector<8x128xf32>
    %c24_i32_106 = arith.constant 24 : i32
    %670 = arith.addi %522, %c24_i32_106 : i32
    %671 = arith.index_cast %670 : i32 to index
    %672 = memref.load %arg2[%671] : memref<512xf32, #tpu.memory_space<smem>>
    %673 = vector.broadcast %672 : f32 to vector<8x128xf32>
    %674 = arith.mulf %673, %18 : vector<8x128xf32>
    %c25_i32_107 = arith.constant 25 : i32
    %675 = arith.addi %522, %c25_i32_107 : i32
    %676 = arith.index_cast %675 : i32 to index
    %677 = memref.load %arg2[%676] : memref<512xf32, #tpu.memory_space<smem>>
    %678 = vector.broadcast %677 : f32 to vector<8x128xf32>
    %679 = arith.mulf %678, %20 : vector<8x128xf32>
    %680 = arith.addf %674, %679 : vector<8x128xf32>
    %c26_i32_108 = arith.constant 26 : i32
    %681 = arith.addi %522, %c26_i32_108 : i32
    %682 = arith.index_cast %681 : i32 to index
    %683 = memref.load %arg2[%682] : memref<512xf32, #tpu.memory_space<smem>>
    %684 = vector.broadcast %683 : f32 to vector<8x128xf32>
    %685 = arith.addf %680, %684 : vector<8x128xf32>
    %686 = arith.select %583, %685, %520 : vector<8x128xi1>, vector<8x128xf32>
    %c4_i32_109 = arith.constant 4 : i32
    %c32_i32_110 = arith.constant 32 : i32
    %687 = arith.muli %c4_i32_109, %c32_i32_110 : i32
    %688 = arith.addi %22, %687 : i32
    %c0_i32_111 = arith.constant 0 : i32
    %689 = arith.addi %688, %c0_i32_111 : i32
    %690 = arith.index_cast %689 : i32 to index
    %691 = memref.load %arg2[%690] : memref<512xf32, #tpu.memory_space<smem>>
    %692 = vector.broadcast %691 : f32 to vector<8x128xf32>
    %693 = arith.mulf %692, %18 : vector<8x128xf32>
    %c1_i32_112 = arith.constant 1 : i32
    %694 = arith.addi %688, %c1_i32_112 : i32
    %695 = arith.index_cast %694 : i32 to index
    %696 = memref.load %arg2[%695] : memref<512xf32, #tpu.memory_space<smem>>
    %697 = vector.broadcast %696 : f32 to vector<8x128xf32>
    %698 = arith.mulf %697, %20 : vector<8x128xf32>
    %699 = arith.addf %693, %698 : vector<8x128xf32>
    %c2_i32_113 = arith.constant 2 : i32
    %700 = arith.addi %688, %c2_i32_113 : i32
    %701 = arith.index_cast %700 : i32 to index
    %702 = memref.load %arg2[%701] : memref<512xf32, #tpu.memory_space<smem>>
    %703 = vector.broadcast %702 : f32 to vector<8x128xf32>
    %704 = arith.addf %699, %703 : vector<8x128xf32>
    %c3_i32_114 = arith.constant 3 : i32
    %705 = arith.addi %688, %c3_i32_114 : i32
    %706 = arith.index_cast %705 : i32 to index
    %707 = memref.load %arg2[%706] : memref<512xf32, #tpu.memory_space<smem>>
    %708 = vector.broadcast %707 : f32 to vector<8x128xf32>
    %709 = arith.mulf %708, %18 : vector<8x128xf32>
    %c4_i32_115 = arith.constant 4 : i32
    %710 = arith.addi %688, %c4_i32_115 : i32
    %711 = arith.index_cast %710 : i32 to index
    %712 = memref.load %arg2[%711] : memref<512xf32, #tpu.memory_space<smem>>
    %713 = vector.broadcast %712 : f32 to vector<8x128xf32>
    %714 = arith.mulf %713, %20 : vector<8x128xf32>
    %715 = arith.addf %709, %714 : vector<8x128xf32>
    %c5_i32_116 = arith.constant 5 : i32
    %716 = arith.addi %688, %c5_i32_116 : i32
    %717 = arith.index_cast %716 : i32 to index
    %718 = memref.load %arg2[%717] : memref<512xf32, #tpu.memory_space<smem>>
    %719 = vector.broadcast %718 : f32 to vector<8x128xf32>
    %720 = arith.addf %715, %719 : vector<8x128xf32>
    %cst_117 = arith.constant 1.000000e+00 : f32
    %721 = vector.broadcast %cst_117 : f32 to vector<8x128xf32>
    %722 = arith.subf %721, %704 : vector<8x128xf32>
    %723 = arith.subf %722, %720 : vector<8x128xf32>
    %cst_118 = arith.constant 0.000000e+00 : f32
    %724 = vector.broadcast %cst_118 : f32 to vector<8x128xf32>
    %725 = arith.cmpf oge, %704, %724 : vector<8x128xf32>
    %cst_119 = arith.constant 0.000000e+00 : f32
    %726 = vector.broadcast %cst_119 : f32 to vector<8x128xf32>
    %727 = arith.cmpf oge, %720, %726 : vector<8x128xf32>
    %728 = arith.andi %725, %727 : vector<8x128xi1>
    %cst_120 = arith.constant 0.000000e+00 : f32
    %729 = vector.broadcast %cst_120 : f32 to vector<8x128xf32>
    %730 = arith.cmpf oge, %723, %729 : vector<8x128xf32>
    %731 = arith.andi %728, %730 : vector<8x128xi1>
    %c6_i32_121 = arith.constant 6 : i32
    %732 = arith.addi %688, %c6_i32_121 : i32
    %733 = arith.index_cast %732 : i32 to index
    %734 = memref.load %arg2[%733] : memref<512xf32, #tpu.memory_space<smem>>
    %735 = vector.broadcast %734 : f32 to vector<8x128xf32>
    %736 = arith.mulf %735, %18 : vector<8x128xf32>
    %c7_i32_122 = arith.constant 7 : i32
    %737 = arith.addi %688, %c7_i32_122 : i32
    %738 = arith.index_cast %737 : i32 to index
    %739 = memref.load %arg2[%738] : memref<512xf32, #tpu.memory_space<smem>>
    %740 = vector.broadcast %739 : f32 to vector<8x128xf32>
    %741 = arith.mulf %740, %20 : vector<8x128xf32>
    %742 = arith.addf %736, %741 : vector<8x128xf32>
    %c8_i32_123 = arith.constant 8 : i32
    %743 = arith.addi %688, %c8_i32_123 : i32
    %744 = arith.index_cast %743 : i32 to index
    %745 = memref.load %arg2[%744] : memref<512xf32, #tpu.memory_space<smem>>
    %746 = vector.broadcast %745 : f32 to vector<8x128xf32>
    %747 = arith.addf %742, %746 : vector<8x128xf32>
    %748 = arith.cmpf ogt, %747, %584 : vector<8x128xf32>
    %749 = arith.andi %731, %748 : vector<8x128xi1>
    %750 = arith.select %749, %747, %584 : vector<8x128xi1>, vector<8x128xf32>
    %c9_i32_124 = arith.constant 9 : i32
    %751 = arith.addi %688, %c9_i32_124 : i32
    %752 = arith.index_cast %751 : i32 to index
    %753 = memref.load %arg2[%752] : memref<512xf32, #tpu.memory_space<smem>>
    %754 = vector.broadcast %753 : f32 to vector<8x128xf32>
    %755 = arith.mulf %754, %18 : vector<8x128xf32>
    %c10_i32_125 = arith.constant 10 : i32
    %756 = arith.addi %688, %c10_i32_125 : i32
    %757 = arith.index_cast %756 : i32 to index
    %758 = memref.load %arg2[%757] : memref<512xf32, #tpu.memory_space<smem>>
    %759 = vector.broadcast %758 : f32 to vector<8x128xf32>
    %760 = arith.mulf %759, %20 : vector<8x128xf32>
    %761 = arith.addf %755, %760 : vector<8x128xf32>
    %c11_i32_126 = arith.constant 11 : i32
    %762 = arith.addi %688, %c11_i32_126 : i32
    %763 = arith.index_cast %762 : i32 to index
    %764 = memref.load %arg2[%763] : memref<512xf32, #tpu.memory_space<smem>>
    %765 = vector.broadcast %764 : f32 to vector<8x128xf32>
    %766 = arith.addf %761, %765 : vector<8x128xf32>
    %767 = arith.select %749, %766, %601 : vector<8x128xi1>, vector<8x128xf32>
    %c12_i32_127 = arith.constant 12 : i32
    %768 = arith.addi %688, %c12_i32_127 : i32
    %769 = arith.index_cast %768 : i32 to index
    %770 = memref.load %arg2[%769] : memref<512xf32, #tpu.memory_space<smem>>
    %771 = vector.broadcast %770 : f32 to vector<8x128xf32>
    %772 = arith.mulf %771, %18 : vector<8x128xf32>
    %c13_i32_128 = arith.constant 13 : i32
    %773 = arith.addi %688, %c13_i32_128 : i32
    %774 = arith.index_cast %773 : i32 to index
    %775 = memref.load %arg2[%774] : memref<512xf32, #tpu.memory_space<smem>>
    %776 = vector.broadcast %775 : f32 to vector<8x128xf32>
    %777 = arith.mulf %776, %20 : vector<8x128xf32>
    %778 = arith.addf %772, %777 : vector<8x128xf32>
    %c14_i32_129 = arith.constant 14 : i32
    %779 = arith.addi %688, %c14_i32_129 : i32
    %780 = arith.index_cast %779 : i32 to index
    %781 = memref.load %arg2[%780] : memref<512xf32, #tpu.memory_space<smem>>
    %782 = vector.broadcast %781 : f32 to vector<8x128xf32>
    %783 = arith.addf %778, %782 : vector<8x128xf32>
    %784 = arith.select %749, %783, %618 : vector<8x128xi1>, vector<8x128xf32>
    %c15_i32_130 = arith.constant 15 : i32
    %785 = arith.addi %688, %c15_i32_130 : i32
    %786 = arith.index_cast %785 : i32 to index
    %787 = memref.load %arg2[%786] : memref<512xf32, #tpu.memory_space<smem>>
    %788 = vector.broadcast %787 : f32 to vector<8x128xf32>
    %789 = arith.mulf %788, %18 : vector<8x128xf32>
    %c16_i32_131 = arith.constant 16 : i32
    %790 = arith.addi %688, %c16_i32_131 : i32
    %791 = arith.index_cast %790 : i32 to index
    %792 = memref.load %arg2[%791] : memref<512xf32, #tpu.memory_space<smem>>
    %793 = vector.broadcast %792 : f32 to vector<8x128xf32>
    %794 = arith.mulf %793, %20 : vector<8x128xf32>
    %795 = arith.addf %789, %794 : vector<8x128xf32>
    %c17_i32_132 = arith.constant 17 : i32
    %796 = arith.addi %688, %c17_i32_132 : i32
    %797 = arith.index_cast %796 : i32 to index
    %798 = memref.load %arg2[%797] : memref<512xf32, #tpu.memory_space<smem>>
    %799 = vector.broadcast %798 : f32 to vector<8x128xf32>
    %800 = arith.addf %795, %799 : vector<8x128xf32>
    %801 = arith.select %749, %800, %635 : vector<8x128xi1>, vector<8x128xf32>
    %c18_i32_133 = arith.constant 18 : i32
    %802 = arith.addi %688, %c18_i32_133 : i32
    %803 = arith.index_cast %802 : i32 to index
    %804 = memref.load %arg2[%803] : memref<512xf32, #tpu.memory_space<smem>>
    %805 = vector.broadcast %804 : f32 to vector<8x128xf32>
    %806 = arith.mulf %805, %18 : vector<8x128xf32>
    %c19_i32_134 = arith.constant 19 : i32
    %807 = arith.addi %688, %c19_i32_134 : i32
    %808 = arith.index_cast %807 : i32 to index
    %809 = memref.load %arg2[%808] : memref<512xf32, #tpu.memory_space<smem>>
    %810 = vector.broadcast %809 : f32 to vector<8x128xf32>
    %811 = arith.mulf %810, %20 : vector<8x128xf32>
    %812 = arith.addf %806, %811 : vector<8x128xf32>
    %c20_i32_135 = arith.constant 20 : i32
    %813 = arith.addi %688, %c20_i32_135 : i32
    %814 = arith.index_cast %813 : i32 to index
    %815 = memref.load %arg2[%814] : memref<512xf32, #tpu.memory_space<smem>>
    %816 = vector.broadcast %815 : f32 to vector<8x128xf32>
    %817 = arith.addf %812, %816 : vector<8x128xf32>
    %818 = arith.select %749, %817, %652 : vector<8x128xi1>, vector<8x128xf32>
    %c21_i32_136 = arith.constant 21 : i32
    %819 = arith.addi %688, %c21_i32_136 : i32
    %820 = arith.index_cast %819 : i32 to index
    %821 = memref.load %arg2[%820] : memref<512xf32, #tpu.memory_space<smem>>
    %822 = vector.broadcast %821 : f32 to vector<8x128xf32>
    %823 = arith.mulf %822, %18 : vector<8x128xf32>
    %c22_i32_137 = arith.constant 22 : i32
    %824 = arith.addi %688, %c22_i32_137 : i32
    %825 = arith.index_cast %824 : i32 to index
    %826 = memref.load %arg2[%825] : memref<512xf32, #tpu.memory_space<smem>>
    %827 = vector.broadcast %826 : f32 to vector<8x128xf32>
    %828 = arith.mulf %827, %20 : vector<8x128xf32>
    %829 = arith.addf %823, %828 : vector<8x128xf32>
    %c23_i32_138 = arith.constant 23 : i32
    %830 = arith.addi %688, %c23_i32_138 : i32
    %831 = arith.index_cast %830 : i32 to index
    %832 = memref.load %arg2[%831] : memref<512xf32, #tpu.memory_space<smem>>
    %833 = vector.broadcast %832 : f32 to vector<8x128xf32>
    %834 = arith.addf %829, %833 : vector<8x128xf32>
    %835 = arith.select %749, %834, %669 : vector<8x128xi1>, vector<8x128xf32>
    %c24_i32_139 = arith.constant 24 : i32
    %836 = arith.addi %688, %c24_i32_139 : i32
    %837 = arith.index_cast %836 : i32 to index
    %838 = memref.load %arg2[%837] : memref<512xf32, #tpu.memory_space<smem>>
    %839 = vector.broadcast %838 : f32 to vector<8x128xf32>
    %840 = arith.mulf %839, %18 : vector<8x128xf32>
    %c25_i32_140 = arith.constant 25 : i32
    %841 = arith.addi %688, %c25_i32_140 : i32
    %842 = arith.index_cast %841 : i32 to index
    %843 = memref.load %arg2[%842] : memref<512xf32, #tpu.memory_space<smem>>
    %844 = vector.broadcast %843 : f32 to vector<8x128xf32>
    %845 = arith.mulf %844, %20 : vector<8x128xf32>
    %846 = arith.addf %840, %845 : vector<8x128xf32>
    %c26_i32_141 = arith.constant 26 : i32
    %847 = arith.addi %688, %c26_i32_141 : i32
    %848 = arith.index_cast %847 : i32 to index
    %849 = memref.load %arg2[%848] : memref<512xf32, #tpu.memory_space<smem>>
    %850 = vector.broadcast %849 : f32 to vector<8x128xf32>
    %851 = arith.addf %846, %850 : vector<8x128xf32>
    %852 = arith.select %749, %851, %686 : vector<8x128xi1>, vector<8x128xf32>
    %c5_i32_142 = arith.constant 5 : i32
    %c32_i32_143 = arith.constant 32 : i32
    %853 = arith.muli %c5_i32_142, %c32_i32_143 : i32
    %854 = arith.addi %22, %853 : i32
    %c0_i32_144 = arith.constant 0 : i32
    %855 = arith.addi %854, %c0_i32_144 : i32
    %856 = arith.index_cast %855 : i32 to index
    %857 = memref.load %arg2[%856] : memref<512xf32, #tpu.memory_space<smem>>
    %858 = vector.broadcast %857 : f32 to vector<8x128xf32>
    %859 = arith.mulf %858, %18 : vector<8x128xf32>
    %c1_i32_145 = arith.constant 1 : i32
    %860 = arith.addi %854, %c1_i32_145 : i32
    %861 = arith.index_cast %860 : i32 to index
    %862 = memref.load %arg2[%861] : memref<512xf32, #tpu.memory_space<smem>>
    %863 = vector.broadcast %862 : f32 to vector<8x128xf32>
    %864 = arith.mulf %863, %20 : vector<8x128xf32>
    %865 = arith.addf %859, %864 : vector<8x128xf32>
    %c2_i32_146 = arith.constant 2 : i32
    %866 = arith.addi %854, %c2_i32_146 : i32
    %867 = arith.index_cast %866 : i32 to index
    %868 = memref.load %arg2[%867] : memref<512xf32, #tpu.memory_space<smem>>
    %869 = vector.broadcast %868 : f32 to vector<8x128xf32>
    %870 = arith.addf %865, %869 : vector<8x128xf32>
    %c3_i32_147 = arith.constant 3 : i32
    %871 = arith.addi %854, %c3_i32_147 : i32
    %872 = arith.index_cast %871 : i32 to index
    %873 = memref.load %arg2[%872] : memref<512xf32, #tpu.memory_space<smem>>
    %874 = vector.broadcast %873 : f32 to vector<8x128xf32>
    %875 = arith.mulf %874, %18 : vector<8x128xf32>
    %c4_i32_148 = arith.constant 4 : i32
    %876 = arith.addi %854, %c4_i32_148 : i32
    %877 = arith.index_cast %876 : i32 to index
    %878 = memref.load %arg2[%877] : memref<512xf32, #tpu.memory_space<smem>>
    %879 = vector.broadcast %878 : f32 to vector<8x128xf32>
    %880 = arith.mulf %879, %20 : vector<8x128xf32>
    %881 = arith.addf %875, %880 : vector<8x128xf32>
    %c5_i32_149 = arith.constant 5 : i32
    %882 = arith.addi %854, %c5_i32_149 : i32
    %883 = arith.index_cast %882 : i32 to index
    %884 = memref.load %arg2[%883] : memref<512xf32, #tpu.memory_space<smem>>
    %885 = vector.broadcast %884 : f32 to vector<8x128xf32>
    %886 = arith.addf %881, %885 : vector<8x128xf32>
    %cst_150 = arith.constant 1.000000e+00 : f32
    %887 = vector.broadcast %cst_150 : f32 to vector<8x128xf32>
    %888 = arith.subf %887, %870 : vector<8x128xf32>
    %889 = arith.subf %888, %886 : vector<8x128xf32>
    %cst_151 = arith.constant 0.000000e+00 : f32
    %890 = vector.broadcast %cst_151 : f32 to vector<8x128xf32>
    %891 = arith.cmpf oge, %870, %890 : vector<8x128xf32>
    %cst_152 = arith.constant 0.000000e+00 : f32
    %892 = vector.broadcast %cst_152 : f32 to vector<8x128xf32>
    %893 = arith.cmpf oge, %886, %892 : vector<8x128xf32>
    %894 = arith.andi %891, %893 : vector<8x128xi1>
    %cst_153 = arith.constant 0.000000e+00 : f32
    %895 = vector.broadcast %cst_153 : f32 to vector<8x128xf32>
    %896 = arith.cmpf oge, %889, %895 : vector<8x128xf32>
    %897 = arith.andi %894, %896 : vector<8x128xi1>
    %c6_i32_154 = arith.constant 6 : i32
    %898 = arith.addi %854, %c6_i32_154 : i32
    %899 = arith.index_cast %898 : i32 to index
    %900 = memref.load %arg2[%899] : memref<512xf32, #tpu.memory_space<smem>>
    %901 = vector.broadcast %900 : f32 to vector<8x128xf32>
    %902 = arith.mulf %901, %18 : vector<8x128xf32>
    %c7_i32_155 = arith.constant 7 : i32
    %903 = arith.addi %854, %c7_i32_155 : i32
    %904 = arith.index_cast %903 : i32 to index
    %905 = memref.load %arg2[%904] : memref<512xf32, #tpu.memory_space<smem>>
    %906 = vector.broadcast %905 : f32 to vector<8x128xf32>
    %907 = arith.mulf %906, %20 : vector<8x128xf32>
    %908 = arith.addf %902, %907 : vector<8x128xf32>
    %c8_i32_156 = arith.constant 8 : i32
    %909 = arith.addi %854, %c8_i32_156 : i32
    %910 = arith.index_cast %909 : i32 to index
    %911 = memref.load %arg2[%910] : memref<512xf32, #tpu.memory_space<smem>>
    %912 = vector.broadcast %911 : f32 to vector<8x128xf32>
    %913 = arith.addf %908, %912 : vector<8x128xf32>
    %914 = arith.cmpf ogt, %913, %750 : vector<8x128xf32>
    %915 = arith.andi %897, %914 : vector<8x128xi1>
    %916 = arith.select %915, %913, %750 : vector<8x128xi1>, vector<8x128xf32>
    %c9_i32_157 = arith.constant 9 : i32
    %917 = arith.addi %854, %c9_i32_157 : i32
    %918 = arith.index_cast %917 : i32 to index
    %919 = memref.load %arg2[%918] : memref<512xf32, #tpu.memory_space<smem>>
    %920 = vector.broadcast %919 : f32 to vector<8x128xf32>
    %921 = arith.mulf %920, %18 : vector<8x128xf32>
    %c10_i32_158 = arith.constant 10 : i32
    %922 = arith.addi %854, %c10_i32_158 : i32
    %923 = arith.index_cast %922 : i32 to index
    %924 = memref.load %arg2[%923] : memref<512xf32, #tpu.memory_space<smem>>
    %925 = vector.broadcast %924 : f32 to vector<8x128xf32>
    %926 = arith.mulf %925, %20 : vector<8x128xf32>
    %927 = arith.addf %921, %926 : vector<8x128xf32>
    %c11_i32_159 = arith.constant 11 : i32
    %928 = arith.addi %854, %c11_i32_159 : i32
    %929 = arith.index_cast %928 : i32 to index
    %930 = memref.load %arg2[%929] : memref<512xf32, #tpu.memory_space<smem>>
    %931 = vector.broadcast %930 : f32 to vector<8x128xf32>
    %932 = arith.addf %927, %931 : vector<8x128xf32>
    %933 = arith.select %915, %932, %767 : vector<8x128xi1>, vector<8x128xf32>
    %c12_i32_160 = arith.constant 12 : i32
    %934 = arith.addi %854, %c12_i32_160 : i32
    %935 = arith.index_cast %934 : i32 to index
    %936 = memref.load %arg2[%935] : memref<512xf32, #tpu.memory_space<smem>>
    %937 = vector.broadcast %936 : f32 to vector<8x128xf32>
    %938 = arith.mulf %937, %18 : vector<8x128xf32>
    %c13_i32_161 = arith.constant 13 : i32
    %939 = arith.addi %854, %c13_i32_161 : i32
    %940 = arith.index_cast %939 : i32 to index
    %941 = memref.load %arg2[%940] : memref<512xf32, #tpu.memory_space<smem>>
    %942 = vector.broadcast %941 : f32 to vector<8x128xf32>
    %943 = arith.mulf %942, %20 : vector<8x128xf32>
    %944 = arith.addf %938, %943 : vector<8x128xf32>
    %c14_i32_162 = arith.constant 14 : i32
    %945 = arith.addi %854, %c14_i32_162 : i32
    %946 = arith.index_cast %945 : i32 to index
    %947 = memref.load %arg2[%946] : memref<512xf32, #tpu.memory_space<smem>>
    %948 = vector.broadcast %947 : f32 to vector<8x128xf32>
    %949 = arith.addf %944, %948 : vector<8x128xf32>
    %950 = arith.select %915, %949, %784 : vector<8x128xi1>, vector<8x128xf32>
    %c15_i32_163 = arith.constant 15 : i32
    %951 = arith.addi %854, %c15_i32_163 : i32
    %952 = arith.index_cast %951 : i32 to index
    %953 = memref.load %arg2[%952] : memref<512xf32, #tpu.memory_space<smem>>
    %954 = vector.broadcast %953 : f32 to vector<8x128xf32>
    %955 = arith.mulf %954, %18 : vector<8x128xf32>
    %c16_i32_164 = arith.constant 16 : i32
    %956 = arith.addi %854, %c16_i32_164 : i32
    %957 = arith.index_cast %956 : i32 to index
    %958 = memref.load %arg2[%957] : memref<512xf32, #tpu.memory_space<smem>>
    %959 = vector.broadcast %958 : f32 to vector<8x128xf32>
    %960 = arith.mulf %959, %20 : vector<8x128xf32>
    %961 = arith.addf %955, %960 : vector<8x128xf32>
    %c17_i32_165 = arith.constant 17 : i32
    %962 = arith.addi %854, %c17_i32_165 : i32
    %963 = arith.index_cast %962 : i32 to index
    %964 = memref.load %arg2[%963] : memref<512xf32, #tpu.memory_space<smem>>
    %965 = vector.broadcast %964 : f32 to vector<8x128xf32>
    %966 = arith.addf %961, %965 : vector<8x128xf32>
    %967 = arith.select %915, %966, %801 : vector<8x128xi1>, vector<8x128xf32>
    %c18_i32_166 = arith.constant 18 : i32
    %968 = arith.addi %854, %c18_i32_166 : i32
    %969 = arith.index_cast %968 : i32 to index
    %970 = memref.load %arg2[%969] : memref<512xf32, #tpu.memory_space<smem>>
    %971 = vector.broadcast %970 : f32 to vector<8x128xf32>
    %972 = arith.mulf %971, %18 : vector<8x128xf32>
    %c19_i32_167 = arith.constant 19 : i32
    %973 = arith.addi %854, %c19_i32_167 : i32
    %974 = arith.index_cast %973 : i32 to index
    %975 = memref.load %arg2[%974] : memref<512xf32, #tpu.memory_space<smem>>
    %976 = vector.broadcast %975 : f32 to vector<8x128xf32>
    %977 = arith.mulf %976, %20 : vector<8x128xf32>
    %978 = arith.addf %972, %977 : vector<8x128xf32>
    %c20_i32_168 = arith.constant 20 : i32
    %979 = arith.addi %854, %c20_i32_168 : i32
    %980 = arith.index_cast %979 : i32 to index
    %981 = memref.load %arg2[%980] : memref<512xf32, #tpu.memory_space<smem>>
    %982 = vector.broadcast %981 : f32 to vector<8x128xf32>
    %983 = arith.addf %978, %982 : vector<8x128xf32>
    %984 = arith.select %915, %983, %818 : vector<8x128xi1>, vector<8x128xf32>
    %c21_i32_169 = arith.constant 21 : i32
    %985 = arith.addi %854, %c21_i32_169 : i32
    %986 = arith.index_cast %985 : i32 to index
    %987 = memref.load %arg2[%986] : memref<512xf32, #tpu.memory_space<smem>>
    %988 = vector.broadcast %987 : f32 to vector<8x128xf32>
    %989 = arith.mulf %988, %18 : vector<8x128xf32>
    %c22_i32_170 = arith.constant 22 : i32
    %990 = arith.addi %854, %c22_i32_170 : i32
    %991 = arith.index_cast %990 : i32 to index
    %992 = memref.load %arg2[%991] : memref<512xf32, #tpu.memory_space<smem>>
    %993 = vector.broadcast %992 : f32 to vector<8x128xf32>
    %994 = arith.mulf %993, %20 : vector<8x128xf32>
    %995 = arith.addf %989, %994 : vector<8x128xf32>
    %c23_i32_171 = arith.constant 23 : i32
    %996 = arith.addi %854, %c23_i32_171 : i32
    %997 = arith.index_cast %996 : i32 to index
    %998 = memref.load %arg2[%997] : memref<512xf32, #tpu.memory_space<smem>>
    %999 = vector.broadcast %998 : f32 to vector<8x128xf32>
    %1000 = arith.addf %995, %999 : vector<8x128xf32>
    %1001 = arith.select %915, %1000, %835 : vector<8x128xi1>, vector<8x128xf32>
    %c24_i32_172 = arith.constant 24 : i32
    %1002 = arith.addi %854, %c24_i32_172 : i32
    %1003 = arith.index_cast %1002 : i32 to index
    %1004 = memref.load %arg2[%1003] : memref<512xf32, #tpu.memory_space<smem>>
    %1005 = vector.broadcast %1004 : f32 to vector<8x128xf32>
    %1006 = arith.mulf %1005, %18 : vector<8x128xf32>
    %c25_i32_173 = arith.constant 25 : i32
    %1007 = arith.addi %854, %c25_i32_173 : i32
    %1008 = arith.index_cast %1007 : i32 to index
    %1009 = memref.load %arg2[%1008] : memref<512xf32, #tpu.memory_space<smem>>
    %1010 = vector.broadcast %1009 : f32 to vector<8x128xf32>
    %1011 = arith.mulf %1010, %20 : vector<8x128xf32>
    %1012 = arith.addf %1006, %1011 : vector<8x128xf32>
    %c26_i32_174 = arith.constant 26 : i32
    %1013 = arith.addi %854, %c26_i32_174 : i32
    %1014 = arith.index_cast %1013 : i32 to index
    %1015 = memref.load %arg2[%1014] : memref<512xf32, #tpu.memory_space<smem>>
    %1016 = vector.broadcast %1015 : f32 to vector<8x128xf32>
    %1017 = arith.addf %1012, %1016 : vector<8x128xf32>
    %1018 = arith.select %915, %1017, %852 : vector<8x128xi1>, vector<8x128xf32>
    %c6_i32_175 = arith.constant 6 : i32
    %c32_i32_176 = arith.constant 32 : i32
    %1019 = arith.muli %c6_i32_175, %c32_i32_176 : i32
    %1020 = arith.addi %22, %1019 : i32
    %c0_i32_177 = arith.constant 0 : i32
    %1021 = arith.addi %1020, %c0_i32_177 : i32
    %1022 = arith.index_cast %1021 : i32 to index
    %1023 = memref.load %arg2[%1022] : memref<512xf32, #tpu.memory_space<smem>>
    %1024 = vector.broadcast %1023 : f32 to vector<8x128xf32>
    %1025 = arith.mulf %1024, %18 : vector<8x128xf32>
    %c1_i32_178 = arith.constant 1 : i32
    %1026 = arith.addi %1020, %c1_i32_178 : i32
    %1027 = arith.index_cast %1026 : i32 to index
    %1028 = memref.load %arg2[%1027] : memref<512xf32, #tpu.memory_space<smem>>
    %1029 = vector.broadcast %1028 : f32 to vector<8x128xf32>
    %1030 = arith.mulf %1029, %20 : vector<8x128xf32>
    %1031 = arith.addf %1025, %1030 : vector<8x128xf32>
    %c2_i32_179 = arith.constant 2 : i32
    %1032 = arith.addi %1020, %c2_i32_179 : i32
    %1033 = arith.index_cast %1032 : i32 to index
    %1034 = memref.load %arg2[%1033] : memref<512xf32, #tpu.memory_space<smem>>
    %1035 = vector.broadcast %1034 : f32 to vector<8x128xf32>
    %1036 = arith.addf %1031, %1035 : vector<8x128xf32>
    %c3_i32_180 = arith.constant 3 : i32
    %1037 = arith.addi %1020, %c3_i32_180 : i32
    %1038 = arith.index_cast %1037 : i32 to index
    %1039 = memref.load %arg2[%1038] : memref<512xf32, #tpu.memory_space<smem>>
    %1040 = vector.broadcast %1039 : f32 to vector<8x128xf32>
    %1041 = arith.mulf %1040, %18 : vector<8x128xf32>
    %c4_i32_181 = arith.constant 4 : i32
    %1042 = arith.addi %1020, %c4_i32_181 : i32
    %1043 = arith.index_cast %1042 : i32 to index
    %1044 = memref.load %arg2[%1043] : memref<512xf32, #tpu.memory_space<smem>>
    %1045 = vector.broadcast %1044 : f32 to vector<8x128xf32>
    %1046 = arith.mulf %1045, %20 : vector<8x128xf32>
    %1047 = arith.addf %1041, %1046 : vector<8x128xf32>
    %c5_i32_182 = arith.constant 5 : i32
    %1048 = arith.addi %1020, %c5_i32_182 : i32
    %1049 = arith.index_cast %1048 : i32 to index
    %1050 = memref.load %arg2[%1049] : memref<512xf32, #tpu.memory_space<smem>>
    %1051 = vector.broadcast %1050 : f32 to vector<8x128xf32>
    %1052 = arith.addf %1047, %1051 : vector<8x128xf32>
    %cst_183 = arith.constant 1.000000e+00 : f32
    %1053 = vector.broadcast %cst_183 : f32 to vector<8x128xf32>
    %1054 = arith.subf %1053, %1036 : vector<8x128xf32>
    %1055 = arith.subf %1054, %1052 : vector<8x128xf32>
    %cst_184 = arith.constant 0.000000e+00 : f32
    %1056 = vector.broadcast %cst_184 : f32 to vector<8x128xf32>
    %1057 = arith.cmpf oge, %1036, %1056 : vector<8x128xf32>
    %cst_185 = arith.constant 0.000000e+00 : f32
    %1058 = vector.broadcast %cst_185 : f32 to vector<8x128xf32>
    %1059 = arith.cmpf oge, %1052, %1058 : vector<8x128xf32>
    %1060 = arith.andi %1057, %1059 : vector<8x128xi1>
    %cst_186 = arith.constant 0.000000e+00 : f32
    %1061 = vector.broadcast %cst_186 : f32 to vector<8x128xf32>
    %1062 = arith.cmpf oge, %1055, %1061 : vector<8x128xf32>
    %1063 = arith.andi %1060, %1062 : vector<8x128xi1>
    %c6_i32_187 = arith.constant 6 : i32
    %1064 = arith.addi %1020, %c6_i32_187 : i32
    %1065 = arith.index_cast %1064 : i32 to index
    %1066 = memref.load %arg2[%1065] : memref<512xf32, #tpu.memory_space<smem>>
    %1067 = vector.broadcast %1066 : f32 to vector<8x128xf32>
    %1068 = arith.mulf %1067, %18 : vector<8x128xf32>
    %c7_i32_188 = arith.constant 7 : i32
    %1069 = arith.addi %1020, %c7_i32_188 : i32
    %1070 = arith.index_cast %1069 : i32 to index
    %1071 = memref.load %arg2[%1070] : memref<512xf32, #tpu.memory_space<smem>>
    %1072 = vector.broadcast %1071 : f32 to vector<8x128xf32>
    %1073 = arith.mulf %1072, %20 : vector<8x128xf32>
    %1074 = arith.addf %1068, %1073 : vector<8x128xf32>
    %c8_i32_189 = arith.constant 8 : i32
    %1075 = arith.addi %1020, %c8_i32_189 : i32
    %1076 = arith.index_cast %1075 : i32 to index
    %1077 = memref.load %arg2[%1076] : memref<512xf32, #tpu.memory_space<smem>>
    %1078 = vector.broadcast %1077 : f32 to vector<8x128xf32>
    %1079 = arith.addf %1074, %1078 : vector<8x128xf32>
    %1080 = arith.cmpf ogt, %1079, %916 : vector<8x128xf32>
    %1081 = arith.andi %1063, %1080 : vector<8x128xi1>
    %1082 = arith.select %1081, %1079, %916 : vector<8x128xi1>, vector<8x128xf32>
    %c9_i32_190 = arith.constant 9 : i32
    %1083 = arith.addi %1020, %c9_i32_190 : i32
    %1084 = arith.index_cast %1083 : i32 to index
    %1085 = memref.load %arg2[%1084] : memref<512xf32, #tpu.memory_space<smem>>
    %1086 = vector.broadcast %1085 : f32 to vector<8x128xf32>
    %1087 = arith.mulf %1086, %18 : vector<8x128xf32>
    %c10_i32_191 = arith.constant 10 : i32
    %1088 = arith.addi %1020, %c10_i32_191 : i32
    %1089 = arith.index_cast %1088 : i32 to index
    %1090 = memref.load %arg2[%1089] : memref<512xf32, #tpu.memory_space<smem>>
    %1091 = vector.broadcast %1090 : f32 to vector<8x128xf32>
    %1092 = arith.mulf %1091, %20 : vector<8x128xf32>
    %1093 = arith.addf %1087, %1092 : vector<8x128xf32>
    %c11_i32_192 = arith.constant 11 : i32
    %1094 = arith.addi %1020, %c11_i32_192 : i32
    %1095 = arith.index_cast %1094 : i32 to index
    %1096 = memref.load %arg2[%1095] : memref<512xf32, #tpu.memory_space<smem>>
    %1097 = vector.broadcast %1096 : f32 to vector<8x128xf32>
    %1098 = arith.addf %1093, %1097 : vector<8x128xf32>
    %1099 = arith.select %1081, %1098, %933 : vector<8x128xi1>, vector<8x128xf32>
    %c12_i32_193 = arith.constant 12 : i32
    %1100 = arith.addi %1020, %c12_i32_193 : i32
    %1101 = arith.index_cast %1100 : i32 to index
    %1102 = memref.load %arg2[%1101] : memref<512xf32, #tpu.memory_space<smem>>
    %1103 = vector.broadcast %1102 : f32 to vector<8x128xf32>
    %1104 = arith.mulf %1103, %18 : vector<8x128xf32>
    %c13_i32_194 = arith.constant 13 : i32
    %1105 = arith.addi %1020, %c13_i32_194 : i32
    %1106 = arith.index_cast %1105 : i32 to index
    %1107 = memref.load %arg2[%1106] : memref<512xf32, #tpu.memory_space<smem>>
    %1108 = vector.broadcast %1107 : f32 to vector<8x128xf32>
    %1109 = arith.mulf %1108, %20 : vector<8x128xf32>
    %1110 = arith.addf %1104, %1109 : vector<8x128xf32>
    %c14_i32_195 = arith.constant 14 : i32
    %1111 = arith.addi %1020, %c14_i32_195 : i32
    %1112 = arith.index_cast %1111 : i32 to index
    %1113 = memref.load %arg2[%1112] : memref<512xf32, #tpu.memory_space<smem>>
    %1114 = vector.broadcast %1113 : f32 to vector<8x128xf32>
    %1115 = arith.addf %1110, %1114 : vector<8x128xf32>
    %1116 = arith.select %1081, %1115, %950 : vector<8x128xi1>, vector<8x128xf32>
    %c15_i32_196 = arith.constant 15 : i32
    %1117 = arith.addi %1020, %c15_i32_196 : i32
    %1118 = arith.index_cast %1117 : i32 to index
    %1119 = memref.load %arg2[%1118] : memref<512xf32, #tpu.memory_space<smem>>
    %1120 = vector.broadcast %1119 : f32 to vector<8x128xf32>
    %1121 = arith.mulf %1120, %18 : vector<8x128xf32>
    %c16_i32_197 = arith.constant 16 : i32
    %1122 = arith.addi %1020, %c16_i32_197 : i32
    %1123 = arith.index_cast %1122 : i32 to index
    %1124 = memref.load %arg2[%1123] : memref<512xf32, #tpu.memory_space<smem>>
    %1125 = vector.broadcast %1124 : f32 to vector<8x128xf32>
    %1126 = arith.mulf %1125, %20 : vector<8x128xf32>
    %1127 = arith.addf %1121, %1126 : vector<8x128xf32>
    %c17_i32_198 = arith.constant 17 : i32
    %1128 = arith.addi %1020, %c17_i32_198 : i32
    %1129 = arith.index_cast %1128 : i32 to index
    %1130 = memref.load %arg2[%1129] : memref<512xf32, #tpu.memory_space<smem>>
    %1131 = vector.broadcast %1130 : f32 to vector<8x128xf32>
    %1132 = arith.addf %1127, %1131 : vector<8x128xf32>
    %1133 = arith.select %1081, %1132, %967 : vector<8x128xi1>, vector<8x128xf32>
    %c18_i32_199 = arith.constant 18 : i32
    %1134 = arith.addi %1020, %c18_i32_199 : i32
    %1135 = arith.index_cast %1134 : i32 to index
    %1136 = memref.load %arg2[%1135] : memref<512xf32, #tpu.memory_space<smem>>
    %1137 = vector.broadcast %1136 : f32 to vector<8x128xf32>
    %1138 = arith.mulf %1137, %18 : vector<8x128xf32>
    %c19_i32_200 = arith.constant 19 : i32
    %1139 = arith.addi %1020, %c19_i32_200 : i32
    %1140 = arith.index_cast %1139 : i32 to index
    %1141 = memref.load %arg2[%1140] : memref<512xf32, #tpu.memory_space<smem>>
    %1142 = vector.broadcast %1141 : f32 to vector<8x128xf32>
    %1143 = arith.mulf %1142, %20 : vector<8x128xf32>
    %1144 = arith.addf %1138, %1143 : vector<8x128xf32>
    %c20_i32_201 = arith.constant 20 : i32
    %1145 = arith.addi %1020, %c20_i32_201 : i32
    %1146 = arith.index_cast %1145 : i32 to index
    %1147 = memref.load %arg2[%1146] : memref<512xf32, #tpu.memory_space<smem>>
    %1148 = vector.broadcast %1147 : f32 to vector<8x128xf32>
    %1149 = arith.addf %1144, %1148 : vector<8x128xf32>
    %1150 = arith.select %1081, %1149, %984 : vector<8x128xi1>, vector<8x128xf32>
    %c21_i32_202 = arith.constant 21 : i32
    %1151 = arith.addi %1020, %c21_i32_202 : i32
    %1152 = arith.index_cast %1151 : i32 to index
    %1153 = memref.load %arg2[%1152] : memref<512xf32, #tpu.memory_space<smem>>
    %1154 = vector.broadcast %1153 : f32 to vector<8x128xf32>
    %1155 = arith.mulf %1154, %18 : vector<8x128xf32>
    %c22_i32_203 = arith.constant 22 : i32
    %1156 = arith.addi %1020, %c22_i32_203 : i32
    %1157 = arith.index_cast %1156 : i32 to index
    %1158 = memref.load %arg2[%1157] : memref<512xf32, #tpu.memory_space<smem>>
    %1159 = vector.broadcast %1158 : f32 to vector<8x128xf32>
    %1160 = arith.mulf %1159, %20 : vector<8x128xf32>
    %1161 = arith.addf %1155, %1160 : vector<8x128xf32>
    %c23_i32_204 = arith.constant 23 : i32
    %1162 = arith.addi %1020, %c23_i32_204 : i32
    %1163 = arith.index_cast %1162 : i32 to index
    %1164 = memref.load %arg2[%1163] : memref<512xf32, #tpu.memory_space<smem>>
    %1165 = vector.broadcast %1164 : f32 to vector<8x128xf32>
    %1166 = arith.addf %1161, %1165 : vector<8x128xf32>
    %1167 = arith.select %1081, %1166, %1001 : vector<8x128xi1>, vector<8x128xf32>
    %c24_i32_205 = arith.constant 24 : i32
    %1168 = arith.addi %1020, %c24_i32_205 : i32
    %1169 = arith.index_cast %1168 : i32 to index
    %1170 = memref.load %arg2[%1169] : memref<512xf32, #tpu.memory_space<smem>>
    %1171 = vector.broadcast %1170 : f32 to vector<8x128xf32>
    %1172 = arith.mulf %1171, %18 : vector<8x128xf32>
    %c25_i32_206 = arith.constant 25 : i32
    %1173 = arith.addi %1020, %c25_i32_206 : i32
    %1174 = arith.index_cast %1173 : i32 to index
    %1175 = memref.load %arg2[%1174] : memref<512xf32, #tpu.memory_space<smem>>
    %1176 = vector.broadcast %1175 : f32 to vector<8x128xf32>
    %1177 = arith.mulf %1176, %20 : vector<8x128xf32>
    %1178 = arith.addf %1172, %1177 : vector<8x128xf32>
    %c26_i32_207 = arith.constant 26 : i32
    %1179 = arith.addi %1020, %c26_i32_207 : i32
    %1180 = arith.index_cast %1179 : i32 to index
    %1181 = memref.load %arg2[%1180] : memref<512xf32, #tpu.memory_space<smem>>
    %1182 = vector.broadcast %1181 : f32 to vector<8x128xf32>
    %1183 = arith.addf %1178, %1182 : vector<8x128xf32>
    %1184 = arith.select %1081, %1183, %1018 : vector<8x128xi1>, vector<8x128xf32>
    %c7_i32_208 = arith.constant 7 : i32
    %c32_i32_209 = arith.constant 32 : i32
    %1185 = arith.muli %c7_i32_208, %c32_i32_209 : i32
    %1186 = arith.addi %22, %1185 : i32
    %c0_i32_210 = arith.constant 0 : i32
    %1187 = arith.addi %1186, %c0_i32_210 : i32
    %1188 = arith.index_cast %1187 : i32 to index
    %1189 = memref.load %arg2[%1188] : memref<512xf32, #tpu.memory_space<smem>>
    %1190 = vector.broadcast %1189 : f32 to vector<8x128xf32>
    %1191 = arith.mulf %1190, %18 : vector<8x128xf32>
    %c1_i32_211 = arith.constant 1 : i32
    %1192 = arith.addi %1186, %c1_i32_211 : i32
    %1193 = arith.index_cast %1192 : i32 to index
    %1194 = memref.load %arg2[%1193] : memref<512xf32, #tpu.memory_space<smem>>
    %1195 = vector.broadcast %1194 : f32 to vector<8x128xf32>
    %1196 = arith.mulf %1195, %20 : vector<8x128xf32>
    %1197 = arith.addf %1191, %1196 : vector<8x128xf32>
    %c2_i32_212 = arith.constant 2 : i32
    %1198 = arith.addi %1186, %c2_i32_212 : i32
    %1199 = arith.index_cast %1198 : i32 to index
    %1200 = memref.load %arg2[%1199] : memref<512xf32, #tpu.memory_space<smem>>
    %1201 = vector.broadcast %1200 : f32 to vector<8x128xf32>
    %1202 = arith.addf %1197, %1201 : vector<8x128xf32>
    %c3_i32_213 = arith.constant 3 : i32
    %1203 = arith.addi %1186, %c3_i32_213 : i32
    %1204 = arith.index_cast %1203 : i32 to index
    %1205 = memref.load %arg2[%1204] : memref<512xf32, #tpu.memory_space<smem>>
    %1206 = vector.broadcast %1205 : f32 to vector<8x128xf32>
    %1207 = arith.mulf %1206, %18 : vector<8x128xf32>
    %c4_i32_214 = arith.constant 4 : i32
    %1208 = arith.addi %1186, %c4_i32_214 : i32
    %1209 = arith.index_cast %1208 : i32 to index
    %1210 = memref.load %arg2[%1209] : memref<512xf32, #tpu.memory_space<smem>>
    %1211 = vector.broadcast %1210 : f32 to vector<8x128xf32>
    %1212 = arith.mulf %1211, %20 : vector<8x128xf32>
    %1213 = arith.addf %1207, %1212 : vector<8x128xf32>
    %c5_i32_215 = arith.constant 5 : i32
    %1214 = arith.addi %1186, %c5_i32_215 : i32
    %1215 = arith.index_cast %1214 : i32 to index
    %1216 = memref.load %arg2[%1215] : memref<512xf32, #tpu.memory_space<smem>>
    %1217 = vector.broadcast %1216 : f32 to vector<8x128xf32>
    %1218 = arith.addf %1213, %1217 : vector<8x128xf32>
    %cst_216 = arith.constant 1.000000e+00 : f32
    %1219 = vector.broadcast %cst_216 : f32 to vector<8x128xf32>
    %1220 = arith.subf %1219, %1202 : vector<8x128xf32>
    %1221 = arith.subf %1220, %1218 : vector<8x128xf32>
    %cst_217 = arith.constant 0.000000e+00 : f32
    %1222 = vector.broadcast %cst_217 : f32 to vector<8x128xf32>
    %1223 = arith.cmpf oge, %1202, %1222 : vector<8x128xf32>
    %cst_218 = arith.constant 0.000000e+00 : f32
    %1224 = vector.broadcast %cst_218 : f32 to vector<8x128xf32>
    %1225 = arith.cmpf oge, %1218, %1224 : vector<8x128xf32>
    %1226 = arith.andi %1223, %1225 : vector<8x128xi1>
    %cst_219 = arith.constant 0.000000e+00 : f32
    %1227 = vector.broadcast %cst_219 : f32 to vector<8x128xf32>
    %1228 = arith.cmpf oge, %1221, %1227 : vector<8x128xf32>
    %1229 = arith.andi %1226, %1228 : vector<8x128xi1>
    %c6_i32_220 = arith.constant 6 : i32
    %1230 = arith.addi %1186, %c6_i32_220 : i32
    %1231 = arith.index_cast %1230 : i32 to index
    %1232 = memref.load %arg2[%1231] : memref<512xf32, #tpu.memory_space<smem>>
    %1233 = vector.broadcast %1232 : f32 to vector<8x128xf32>
    %1234 = arith.mulf %1233, %18 : vector<8x128xf32>
    %c7_i32_221 = arith.constant 7 : i32
    %1235 = arith.addi %1186, %c7_i32_221 : i32
    %1236 = arith.index_cast %1235 : i32 to index
    %1237 = memref.load %arg2[%1236] : memref<512xf32, #tpu.memory_space<smem>>
    %1238 = vector.broadcast %1237 : f32 to vector<8x128xf32>
    %1239 = arith.mulf %1238, %20 : vector<8x128xf32>
    %1240 = arith.addf %1234, %1239 : vector<8x128xf32>
    %c8_i32_222 = arith.constant 8 : i32
    %1241 = arith.addi %1186, %c8_i32_222 : i32
    %1242 = arith.index_cast %1241 : i32 to index
    %1243 = memref.load %arg2[%1242] : memref<512xf32, #tpu.memory_space<smem>>
    %1244 = vector.broadcast %1243 : f32 to vector<8x128xf32>
    %1245 = arith.addf %1240, %1244 : vector<8x128xf32>
    %1246 = arith.cmpf ogt, %1245, %1082 : vector<8x128xf32>
    %1247 = arith.andi %1229, %1246 : vector<8x128xi1>
    %1248 = arith.select %1247, %1245, %1082 : vector<8x128xi1>, vector<8x128xf32>
    %c9_i32_223 = arith.constant 9 : i32
    %1249 = arith.addi %1186, %c9_i32_223 : i32
    %1250 = arith.index_cast %1249 : i32 to index
    %1251 = memref.load %arg2[%1250] : memref<512xf32, #tpu.memory_space<smem>>
    %1252 = vector.broadcast %1251 : f32 to vector<8x128xf32>
    %1253 = arith.mulf %1252, %18 : vector<8x128xf32>
    %c10_i32_224 = arith.constant 10 : i32
    %1254 = arith.addi %1186, %c10_i32_224 : i32
    %1255 = arith.index_cast %1254 : i32 to index
    %1256 = memref.load %arg2[%1255] : memref<512xf32, #tpu.memory_space<smem>>
    %1257 = vector.broadcast %1256 : f32 to vector<8x128xf32>
    %1258 = arith.mulf %1257, %20 : vector<8x128xf32>
    %1259 = arith.addf %1253, %1258 : vector<8x128xf32>
    %c11_i32_225 = arith.constant 11 : i32
    %1260 = arith.addi %1186, %c11_i32_225 : i32
    %1261 = arith.index_cast %1260 : i32 to index
    %1262 = memref.load %arg2[%1261] : memref<512xf32, #tpu.memory_space<smem>>
    %1263 = vector.broadcast %1262 : f32 to vector<8x128xf32>
    %1264 = arith.addf %1259, %1263 : vector<8x128xf32>
    %1265 = arith.select %1247, %1264, %1099 : vector<8x128xi1>, vector<8x128xf32>
    %c12_i32_226 = arith.constant 12 : i32
    %1266 = arith.addi %1186, %c12_i32_226 : i32
    %1267 = arith.index_cast %1266 : i32 to index
    %1268 = memref.load %arg2[%1267] : memref<512xf32, #tpu.memory_space<smem>>
    %1269 = vector.broadcast %1268 : f32 to vector<8x128xf32>
    %1270 = arith.mulf %1269, %18 : vector<8x128xf32>
    %c13_i32_227 = arith.constant 13 : i32
    %1271 = arith.addi %1186, %c13_i32_227 : i32
    %1272 = arith.index_cast %1271 : i32 to index
    %1273 = memref.load %arg2[%1272] : memref<512xf32, #tpu.memory_space<smem>>
    %1274 = vector.broadcast %1273 : f32 to vector<8x128xf32>
    %1275 = arith.mulf %1274, %20 : vector<8x128xf32>
    %1276 = arith.addf %1270, %1275 : vector<8x128xf32>
    %c14_i32_228 = arith.constant 14 : i32
    %1277 = arith.addi %1186, %c14_i32_228 : i32
    %1278 = arith.index_cast %1277 : i32 to index
    %1279 = memref.load %arg2[%1278] : memref<512xf32, #tpu.memory_space<smem>>
    %1280 = vector.broadcast %1279 : f32 to vector<8x128xf32>
    %1281 = arith.addf %1276, %1280 : vector<8x128xf32>
    %1282 = arith.select %1247, %1281, %1116 : vector<8x128xi1>, vector<8x128xf32>
    %c15_i32_229 = arith.constant 15 : i32
    %1283 = arith.addi %1186, %c15_i32_229 : i32
    %1284 = arith.index_cast %1283 : i32 to index
    %1285 = memref.load %arg2[%1284] : memref<512xf32, #tpu.memory_space<smem>>
    %1286 = vector.broadcast %1285 : f32 to vector<8x128xf32>
    %1287 = arith.mulf %1286, %18 : vector<8x128xf32>
    %c16_i32_230 = arith.constant 16 : i32
    %1288 = arith.addi %1186, %c16_i32_230 : i32
    %1289 = arith.index_cast %1288 : i32 to index
    %1290 = memref.load %arg2[%1289] : memref<512xf32, #tpu.memory_space<smem>>
    %1291 = vector.broadcast %1290 : f32 to vector<8x128xf32>
    %1292 = arith.mulf %1291, %20 : vector<8x128xf32>
    %1293 = arith.addf %1287, %1292 : vector<8x128xf32>
    %c17_i32_231 = arith.constant 17 : i32
    %1294 = arith.addi %1186, %c17_i32_231 : i32
    %1295 = arith.index_cast %1294 : i32 to index
    %1296 = memref.load %arg2[%1295] : memref<512xf32, #tpu.memory_space<smem>>
    %1297 = vector.broadcast %1296 : f32 to vector<8x128xf32>
    %1298 = arith.addf %1293, %1297 : vector<8x128xf32>
    %1299 = arith.select %1247, %1298, %1133 : vector<8x128xi1>, vector<8x128xf32>
    %c18_i32_232 = arith.constant 18 : i32
    %1300 = arith.addi %1186, %c18_i32_232 : i32
    %1301 = arith.index_cast %1300 : i32 to index
    %1302 = memref.load %arg2[%1301] : memref<512xf32, #tpu.memory_space<smem>>
    %1303 = vector.broadcast %1302 : f32 to vector<8x128xf32>
    %1304 = arith.mulf %1303, %18 : vector<8x128xf32>
    %c19_i32_233 = arith.constant 19 : i32
    %1305 = arith.addi %1186, %c19_i32_233 : i32
    %1306 = arith.index_cast %1305 : i32 to index
    %1307 = memref.load %arg2[%1306] : memref<512xf32, #tpu.memory_space<smem>>
    %1308 = vector.broadcast %1307 : f32 to vector<8x128xf32>
    %1309 = arith.mulf %1308, %20 : vector<8x128xf32>
    %1310 = arith.addf %1304, %1309 : vector<8x128xf32>
    %c20_i32_234 = arith.constant 20 : i32
    %1311 = arith.addi %1186, %c20_i32_234 : i32
    %1312 = arith.index_cast %1311 : i32 to index
    %1313 = memref.load %arg2[%1312] : memref<512xf32, #tpu.memory_space<smem>>
    %1314 = vector.broadcast %1313 : f32 to vector<8x128xf32>
    %1315 = arith.addf %1310, %1314 : vector<8x128xf32>
    %1316 = arith.select %1247, %1315, %1150 : vector<8x128xi1>, vector<8x128xf32>
    %c21_i32_235 = arith.constant 21 : i32
    %1317 = arith.addi %1186, %c21_i32_235 : i32
    %1318 = arith.index_cast %1317 : i32 to index
    %1319 = memref.load %arg2[%1318] : memref<512xf32, #tpu.memory_space<smem>>
    %1320 = vector.broadcast %1319 : f32 to vector<8x128xf32>
    %1321 = arith.mulf %1320, %18 : vector<8x128xf32>
    %c22_i32_236 = arith.constant 22 : i32
    %1322 = arith.addi %1186, %c22_i32_236 : i32
    %1323 = arith.index_cast %1322 : i32 to index
    %1324 = memref.load %arg2[%1323] : memref<512xf32, #tpu.memory_space<smem>>
    %1325 = vector.broadcast %1324 : f32 to vector<8x128xf32>
    %1326 = arith.mulf %1325, %20 : vector<8x128xf32>
    %1327 = arith.addf %1321, %1326 : vector<8x128xf32>
    %c23_i32_237 = arith.constant 23 : i32
    %1328 = arith.addi %1186, %c23_i32_237 : i32
    %1329 = arith.index_cast %1328 : i32 to index
    %1330 = memref.load %arg2[%1329] : memref<512xf32, #tpu.memory_space<smem>>
    %1331 = vector.broadcast %1330 : f32 to vector<8x128xf32>
    %1332 = arith.addf %1327, %1331 : vector<8x128xf32>
    %1333 = arith.select %1247, %1332, %1167 : vector<8x128xi1>, vector<8x128xf32>
    %c24_i32_238 = arith.constant 24 : i32
    %1334 = arith.addi %1186, %c24_i32_238 : i32
    %1335 = arith.index_cast %1334 : i32 to index
    %1336 = memref.load %arg2[%1335] : memref<512xf32, #tpu.memory_space<smem>>
    %1337 = vector.broadcast %1336 : f32 to vector<8x128xf32>
    %1338 = arith.mulf %1337, %18 : vector<8x128xf32>
    %c25_i32_239 = arith.constant 25 : i32
    %1339 = arith.addi %1186, %c25_i32_239 : i32
    %1340 = arith.index_cast %1339 : i32 to index
    %1341 = memref.load %arg2[%1340] : memref<512xf32, #tpu.memory_space<smem>>
    %1342 = vector.broadcast %1341 : f32 to vector<8x128xf32>
    %1343 = arith.mulf %1342, %20 : vector<8x128xf32>
    %1344 = arith.addf %1338, %1343 : vector<8x128xf32>
    %c26_i32_240 = arith.constant 26 : i32
    %1345 = arith.addi %1186, %c26_i32_240 : i32
    %1346 = arith.index_cast %1345 : i32 to index
    %1347 = memref.load %arg2[%1346] : memref<512xf32, #tpu.memory_space<smem>>
    %1348 = vector.broadcast %1347 : f32 to vector<8x128xf32>
    %1349 = arith.addf %1344, %1348 : vector<8x128xf32>
    %1350 = arith.select %1247, %1349, %1184 : vector<8x128xi1>, vector<8x128xf32>
    %c8_i32_241 = arith.constant 8 : i32
    %cst_242 = arith.constant 0.000000e+00 : f32
    %1351 = vector.broadcast %cst_242 : f32 to vector<8x128xf32>
    %1352 = arith.cmpf ogt, %1248, %1351 : vector<8x128xf32>
    %1353 = arith.mulf %1265, %1265 : vector<8x128xf32>
    %1354 = arith.mulf %1282, %1282 : vector<8x128xf32>
    %1355 = arith.addf %1353, %1354 : vector<8x128xf32>
    %1356 = arith.mulf %1299, %1299 : vector<8x128xf32>
    %1357 = arith.addf %1355, %1356 : vector<8x128xf32>
    %cst_243 = arith.constant 9.99999996E-13 : f32
    %1358 = vector.broadcast %cst_243 : f32 to vector<8x128xf32>
    %1359 = arith.addf %1357, %1358 : vector<8x128xf32>
    %1360 = math.rsqrt %1359 : vector<8x128xf32>
    %1361 = arith.mulf %1265, %1360 : vector<8x128xf32>
    %1362 = arith.mulf %1282, %1360 : vector<8x128xf32>
    %1363 = arith.mulf %1299, %1360 : vector<8x128xf32>
    %1364 = arith.mulf %1316, %1316 : vector<8x128xf32>
    %1365 = arith.mulf %1333, %1333 : vector<8x128xf32>
    %1366 = arith.addf %1364, %1365 : vector<8x128xf32>
    %1367 = arith.mulf %1350, %1350 : vector<8x128xf32>
    %1368 = arith.addf %1366, %1367 : vector<8x128xf32>
    %cst_244 = arith.constant 9.99999996E-13 : f32
    %1369 = vector.broadcast %cst_244 : f32 to vector<8x128xf32>
    %1370 = arith.addf %1368, %1369 : vector<8x128xf32>
    %1371 = math.rsqrt %1370 : vector<8x128xf32>
    %cst_245 = arith.constant 0.000000e+00 : f32
    %1372 = vector.broadcast %cst_245 : f32 to vector<8x128xf32>
    %1373 = arith.subf %1372, %1316 : vector<8x128xf32>
    %1374 = arith.mulf %1373, %1371 : vector<8x128xf32>
    %cst_246 = arith.constant 0.000000e+00 : f32
    %1375 = vector.broadcast %cst_246 : f32 to vector<8x128xf32>
    %1376 = arith.subf %1375, %1333 : vector<8x128xf32>
    %1377 = arith.mulf %1376, %1371 : vector<8x128xf32>
    %cst_247 = arith.constant 0.000000e+00 : f32
    %1378 = vector.broadcast %cst_247 : f32 to vector<8x128xf32>
    %1379 = arith.subf %1378, %1350 : vector<8x128xf32>
    %1380 = arith.mulf %1379, %1371 : vector<8x128xf32>
    %1381 = arith.mulf %1361, %1374 : vector<8x128xf32>
    %1382 = arith.mulf %1362, %1377 : vector<8x128xf32>
    %1383 = arith.addf %1381, %1382 : vector<8x128xf32>
    %1384 = arith.mulf %1363, %1380 : vector<8x128xf32>
    %1385 = arith.addf %1383, %1384 : vector<8x128xf32>
    %cst_248 = arith.constant 0.000000e+00 : f32
    %1386 = vector.broadcast %cst_248 : f32 to vector<8x128xf32>
    %1387 = arith.maximumf %1385, %1386 : vector<8x128xf32>
    %cst_249 = arith.constant 3.000000e-01 : f32
    %1388 = vector.broadcast %cst_249 : f32 to vector<8x128xf32>
    %1389 = arith.mulf %1388, %1387 : vector<8x128xf32>
    %cst_250 = arith.constant 0.000000e+00 : f32
    %1390 = vector.broadcast %cst_250 : f32 to vector<8x128xf32>
    %1391 = arith.subf %1390, %1374 : vector<8x128xf32>
    %cst_251 = arith.constant 2.000000e+00 : f32
    %1392 = vector.broadcast %cst_251 : f32 to vector<8x128xf32>
    %1393 = arith.mulf %1392, %1385 : vector<8x128xf32>
    %1394 = arith.mulf %1393, %1361 : vector<8x128xf32>
    %1395 = arith.addf %1391, %1394 : vector<8x128xf32>
    %cst_252 = arith.constant 0.000000e+00 : f32
    %1396 = vector.broadcast %cst_252 : f32 to vector<8x128xf32>
    %1397 = arith.subf %1396, %1377 : vector<8x128xf32>
    %cst_253 = arith.constant 2.000000e+00 : f32
    %1398 = vector.broadcast %cst_253 : f32 to vector<8x128xf32>
    %1399 = arith.mulf %1398, %1385 : vector<8x128xf32>
    %1400 = arith.mulf %1399, %1362 : vector<8x128xf32>
    %1401 = arith.addf %1397, %1400 : vector<8x128xf32>
    %cst_254 = arith.constant 0.000000e+00 : f32
    %1402 = vector.broadcast %cst_254 : f32 to vector<8x128xf32>
    %1403 = arith.subf %1402, %1380 : vector<8x128xf32>
    %cst_255 = arith.constant 2.000000e+00 : f32
    %1404 = vector.broadcast %cst_255 : f32 to vector<8x128xf32>
    %1405 = arith.mulf %1404, %1385 : vector<8x128xf32>
    %1406 = arith.mulf %1405, %1363 : vector<8x128xf32>
    %1407 = arith.addf %1403, %1406 : vector<8x128xf32>
    %1408 = arith.mulf %1374, %1395 : vector<8x128xf32>
    %1409 = arith.mulf %1377, %1401 : vector<8x128xf32>
    %1410 = arith.addf %1408, %1409 : vector<8x128xf32>
    %1411 = arith.mulf %1380, %1407 : vector<8x128xf32>
    %1412 = arith.addf %1410, %1411 : vector<8x128xf32>
    %cst_256 = arith.constant 0.000000e+00 : f32
    %1413 = vector.broadcast %cst_256 : f32 to vector<8x128xf32>
    %1414 = arith.maximumf %1412, %1413 : vector<8x128xf32>
    %cst_257 = arith.constant 0.000000e+00 : f32
    %1415 = vector.broadcast %cst_257 : f32 to vector<8x128xf32>
    %1416 = arith.cmpf ogt, %1385, %1415 : vector<8x128xf32>
    %1417 = arith.extui %1416 : vector<8x128xi1> to vector<8x128xi32>
    %1418 = arith.sitofp %1417 : vector<8x128xi32> to vector<8x128xf32>
    %1419 = arith.mulf %1414, %1418 : vector<8x128xf32>
    %1420 = arith.mulf %1419, %1419 : vector<8x128xf32>
    %1421 = arith.mulf %1420, %1420 : vector<8x128xf32>
    %1422 = arith.mulf %1421, %1421 : vector<8x128xf32>
    %1423 = arith.mulf %1422, %1422 : vector<8x128xf32>
    %1424 = arith.mulf %1423, %1423 : vector<8x128xf32>
    %1425 = arith.mulf %1424, %1424 : vector<8x128xf32>
    %cst_258 = arith.constant 2.000000e-01 : f32
    %1426 = vector.broadcast %cst_258 : f32 to vector<8x128xf32>
    %1427 = arith.mulf %1426, %1425 : vector<8x128xf32>
    %cst_259 = arith.constant 5.000000e-01 : f32
    %1428 = vector.broadcast %cst_259 : f32 to vector<8x128xf32>
    %1429 = arith.addf %1428, %1389 : vector<8x128xf32>
    %cst_260 = arith.constant 5.000000e-01 : f32
    %1430 = vector.broadcast %cst_260 : f32 to vector<8x128xf32>
    %1431 = arith.mulf %1429, %1430 : vector<8x128xf32>
    %1432 = arith.addf %1431, %1427 : vector<8x128xf32>
    %cst_261 = arith.constant 1.000000e+00 : f32
    %1433 = vector.broadcast %cst_261 : f32 to vector<8x128xf32>
    %1434 = arith.select %1352, %1432, %1433 : vector<8x128xi1>, vector<8x128xf32>
    %cst_262 = arith.constant 1.000000e+00 : f32
    %cst_263 = arith.constant 0.000000e+00 : f32
    %1435 = vector.broadcast %cst_262 : f32 to vector<8x128xf32>
    %1436 = vector.broadcast %cst_263 : f32 to vector<8x128xf32>
    %1437 = arith.select %1352, %1435, %1436 : vector<8x128xi1>, vector<8x128xf32>
    %c0 = arith.constant 0 : index
    %c0_264 = arith.constant 0 : index
    %c0_265 = arith.constant 0 : index
    %c0_266 = arith.constant 0 : index
    %1438 = vector.load %arg3[%c0, %c0_264, %c0_265, %c0_266] : memref<1x2x8x128xf32, #tpu.memory_space<vmem>>, vector<1x1x8x128xf32>
    %1439 = vector.shape_cast %1438 : vector<1x1x8x128xf32> to vector<8x128xf32>
    %1440 = vector.shape_cast %1434 : vector<8x128xf32> to vector<1x1x8x128xf32>
    tpu.vector_store %arg3[%c0, %c0_264, %c0_265, %c0_266], %1440 {strides = array<i32>} : memref<1x2x8x128xf32, #tpu.memory_space<vmem>>, vector<1x1x8x128xf32>,
    %c0_267 = arith.constant 0 : index
    %c1 = arith.constant 1 : index
    %c0_268 = arith.constant 0 : index
    %c0_269 = arith.constant 0 : index
    %1441 = vector.load %arg3[%c0_267, %c1, %c0_268, %c0_269] : memref<1x2x8x128xf32, #tpu.memory_space<vmem>>, vector<1x1x8x128xf32>
    %1442 = vector.shape_cast %1441 : vector<1x1x8x128xf32> to vector<8x128xf32>
    %1443 = vector.shape_cast %1437 : vector<8x128xf32> to vector<1x1x8x128xf32>
    tpu.vector_store %arg3[%c0_267, %c1, %c0_268, %c0_269], %1443 {strides = array<i32>} : memref<1x2x8x128xf32, #tpu.memory_space<vmem>>, vector<1x1x8x128xf32>,
    return
  }
  func.func @transform_0(%arg0: i32, %arg1: i32) -> i32 {
    %c0_i32 = arith.constant 0 : i32
    %c0_i32_0 = arith.constant 0 : i32
    return %c0_i32 : i32
  }
  func.func @transform_1(%arg0: i32, %arg1: i32) -> (i32, i32, i32, i32) {
    %c0_i32 = arith.constant 0 : i32
    %c0_i32_0 = arith.constant 0 : i32
    %c0_i32_1 = arith.constant 0 : i32
    return %arg0, %c0_i32, %arg1, %c0_i32_0 : i32, i32, i32, i32
  }
}

</mosaic_0001>

<llo_original>
// kernel: tpu_custom_call.1
$region0: #{tpu_custom_call.1}
  #allocation0 [shape = 'u32[]', space=smem, size = 0x4, offset = 0x4, fixed_abs, tag = 'smem constant byte address 0x4 - core index']
  #allocation1 [shape = 'u32[72,128]{1,0:T(1,128)}', space=vmem, size = 0x9000, scoped, tag = 'internal scratch']
  %s0 = inlined_call_operand.hbm [shape: f32[512], index: 0, kind: input, shape index: {}]
  %s1 = inlined_call_operand.hbm [shape: f32[2,2,8,128], index: 1, kind: output, shape index: {}]
  %s2 = sld [smem:[#allocation0]]
  $region41: #{tpu_custom_call.1} parent=0
    _
  %s4 = ssub.s32 1, %s2
  %s5 = scalar_select 0, %s4, %s2
  $region1: #{tpu_custom_call.1} parent=0
    #allocation2 [shape = 'u8[2048]{0}', space=smem, size = 0x800, scoped, tag = 'input window, operand 0, single buffered']
    #allocation3 [shape = 's32[2]{0}', space=sflag, size = 0x8, scoped, tag = 'scoped memory for tpu_custom_call.1']
    #allocation4 [shape = 's32[2]{0}', space=sflag, size = 0x8, scoped, tag = 'scoped memory for tpu_custom_call.1']
    #allocation5 [shape = 'u8[16384]{0}', space=vmem, size = 0x4000, scoped, tag = 'output window, operand 0']
    %6 = vsyncpa [#allocation4], 0
    %7 = vsyncpa [#allocation3], 0
    %s8 = scalar_lea.sflag [#allocation3], 1
    %9 = vsyncpa %s8, 0
    loop: start=0, step=1, limit=4
    $region2: #{tpu_custom_call.1} parent=1 // loop_pre_header
      _
    $region3: #{tpu_custom_call.1} parent=1 // loop_header
      %s11 = sphi 0, %s15
      %p12 = scmp.ge.s32.totalorder %s11, 4
      %s18 = sphi 0, %s30
      %s19 = sphi 0, %s26
      %s20 = sphi 0, %s18
      %s21 = sphi 0, %s19
      %s22 = sphi 0, %s20
      %s23 = sphi 0, %s21
      %s31 = sphi 0, %s31
      %s33 = sphi 0, %s31
      %s34 = sphi 0, %s33
      %s48 = sphi 0, %s34
      %s56 = sphi 0, %s58
      %s59 = sphi 0, %s56
      %s60 = sphi 0, %s59
      %s76 = sphi 0, %s60
    $region4: #{tpu_custom_call.1} parent=1 // loop_header_branch
      %14 = sbr.rel (%p12) target = $region8
    $region5: #{tpu_custom_call.1} parent=1 // loop_body
      %s16 = ssub.s32 %s11, 1
      %s17 = ssub.s32 %s11, 2
      %s24 = sadd.s32 1, %s19
      %p25 = scmp.ge.s32.totalorder %s24, 1
      %s26 = scalar_select %p25, 0, %s24
      %s27 = sadd.s32 1, %s18
      %s28 = scalar_select %p25, %s27, %s18
      %p29 = scmp.ge.s32.totalorder %s28, 2
      %s30 = scalar_select %p29, 0, %s28
      %s32 = sadd.s32 %s31, 1
      %p35 = scmp.eq.s32.totalorder %s11, 1
      %p36 = scmp.ne.s32.totalorder %s31, %s33
      %p37 = scmp.eq.s32.totalorder %s11, 0
      %p38 = por %p36, %p37
      %p39 = scmp.ne.s32.totalorder %s31, %s33
      %p40 = scmp.eq.s32.totalorder %s16, 1
      %p41 = por %p39, %p40
      %p42 = scmp.ne.s32.totalorder %s33, %s34
      %p43 = scmp.eq.s32.totalorder %s16, 0
      %p44 = por %p42, %p43
      %p45 = scmp.ne.s32.totalorder %s33, %s34
      %p46 = scmp.eq.s32.totalorder %s17, 1
      %p47 = por %p45, %p46
      %p49 = scmp.ne.s32.totalorder %s34, %s48
      %p50 = scmp.eq.s32.totalorder %s17, 0
      %p51 = por %p49, %p50
      %s52 = ssub.s32 %s18, %s30
      %s53 = ssub.s32 %s19, %s26
      %s54 = sor.u32 %s52, %s53
      %p55 = scmp.eq.s32.totalorder %s54, 0
      %s57 = sadd.s32 %s56, 1
      %s58 = scalar_select %p55, %s56, %s57
      %p61 = pneg %p55
      %p62 = scmp.eq.s32.totalorder %s11, 1
      %p63 = por %p61, %p62
      %p64 = scmp.ne.s32.totalorder %s56, %s59
      %p65 = scmp.eq.s32.totalorder %s11, 0
      %p66 = por %p64, %p65
      %p67 = scmp.ne.s32.totalorder %s56, %s59
      %p68 = scmp.eq.s32.totalorder %s16, 1
      %p69 = por %p67, %p68
      %p70 = scmp.ne.s32.totalorder %s59, %s60
      %p71 = scmp.eq.s32.totalorder %s16, 0
      %p72 = por %p70, %p71
      %p73 = scmp.ne.s32.totalorder %s59, %s60
      %p74 = scmp.eq.s32.totalorder %s17, 1
      %p75 = por %p73, %p74
      %p77 = scmp.ne.s32.totalorder %s60, %s76
      %p78 = scmp.eq.s32.totalorder %s17, 0
      %p79 = por %p77, %p78
      %p80 = scmp.le.s32.totalorder 1, %s11
      %p81 = scmp.lt.s32.totalorder %s11, 3
      %p82 = pnand %p80, %p81
      %p83 = pneg %p82
      // Predicated region
      $region9: #{tpu_custom_call.1} parent=5 // pred_check
        _
      $region10: #{tpu_custom_call.1} parent=5 // pred_check_branch
        %85 = sbr.rel (%p82) target = $region12
      $region11: #{tpu_custom_call.1} parent=5 // pred_region
        %s86 = ssub.s32 %s11, 1
        // Predicated region
        $region13: #{tpu_custom_call.1} parent=11 // pred_check
          %p87 = pneg %p44
        $region14: #{tpu_custom_call.1} parent=11 // pred_check_branch
          %89 = sbr.rel (%p87) target = $region16
        $region15: #{tpu_custom_call.1} parent=11 // pred_region
          %91 = vsyncadd [#allocation4], 0
          %s93 = sshll.u32 %s0, 4
          %s94 = int_to_ptr.hbm [resolvable:$true] %s93
          %96 = dma.hbm_to_smem %s94, 64, [#allocation2], [#allocation4]
        $region16: #{tpu_custom_call.1} parent=11 // pred_fallthru
          _
      $region12: #{tpu_custom_call.1} parent=5 // pred_fallthru
        _
      %p97 = scmp.lt.s32.totalorder %s11, 2
      // Predicated region
      $region17: #{tpu_custom_call.1} parent=5 // pred_check
        %p98 = pneg %p97
      $region18: #{tpu_custom_call.1} parent=5 // pred_check_branch
        %100 = sbr.rel (%p98) target = $region20
      $region19: #{tpu_custom_call.1} parent=5 // pred_region
        _
      $region20: #{tpu_custom_call.1} parent=5 // pred_fallthru
        _
      %p101 = scmp.le.s32.totalorder 1, %s11
      %p102 = scmp.lt.s32.totalorder %s11, 3
      %p103 = pnand %p101, %p102
      %p104 = pneg %p103
      // Predicated region
      $region21: #{tpu_custom_call.1} parent=5 // pred_check
        _
      $region22: #{tpu_custom_call.1} parent=5 // pred_check_branch
        %106 = sbr.rel (%p103) target = $region24
      $region23: #{tpu_custom_call.1} parent=5 // pred_region
        %s107 = ssub.s32 %s11, 1
        // Predicated region
        $region25: #{tpu_custom_call.1} parent=23 // pred_check
          %p108 = pneg %p44
        $region26: #{tpu_custom_call.1} parent=23 // pred_check_branch
          %110 = sbr.rel (%p108) target = $region28
        $region27: #{tpu_custom_call.1} parent=23 // pred_region
          %112 = dma.done [#allocation4], 64
        $region28: #{tpu_custom_call.1} parent=23 // pred_fallthru
          _
        %113 = sfence
        %p114 = pneg %p44
        %p115 = pneg %p41
        %p116 = pneg %p72
        %p117 = pneg %p69
        %s118 = sand.u32 %s59, 1
        %s119 = scalar_lea.sflag [#allocation3], %s118
        %s120 = sand.u32 %s59, 1
        %s121 = smul.addr %s120, 16
        %s122 = scalar_lea.vmem [#allocation5], %s121
        %v123 = vlaneseq
        %v124 = vshrl.u32 %v123, 7
        %v125 = vcvt.s32.f32 %v124
        %v126 = vlaneseq
        %v127 = vand.u32 %v126, 127
        %v128 = vcvt.s32.f32 %v127
        %s129 = smul.u32 %s21, 1024
        %s130 = scvt.s32.f32 %s129
        %v131 = vmul.f32 %v125, 128.0
        %v132 = vstv %s130
        %v133 = vadd.f32 %v132, %v131
        %v134 = vadd.f32 %v133, %v128
        %v135 = vrcp.pop 16.0
        %v136 = vmul.f32 16.0, %v135
        %v137 = vsub.f32 1.0, %v136
        %v138 = vmul.f32 %v135, %v137
        %v139 = vadd.f32 %v135, %v138
        %vm140 = vweird.f32 %v135
        %v141 = vsel %vm140, %v135, %v139
        %v142 = vmul.f32 %v134, %v141
        %v143 = vfloor.f32 %v142
        %v144 = vmul.f32 %v143, 16.0
        %v145 = vsub.f32 %v134, %v144
        %v146 = vadd.f32 %v145, 0.5
        %v147 = vadd.f32 %v143, 0.5
        %s148 = smul.u32 %s20, 256
        %s149 = sld [smem:[#allocation2 + %s148]]
        %v150 = vstv %s149
        %v151 = vmul.f32 %v150, %v146
        %s152 = sadd.s32 %s148, 1
        %s153 = sld [smem:[#allocation2 + %s152]]
        %v154 = vstv %s153
        %v155 = vmul.f32 %v154, %v147
        %v156 = vadd.f32 %v151, %v155
        %s157 = sadd.s32 %s148, 2
        %s158 = sld [smem:[#allocation2 + %s157]]
        %v159 = vstv %s158
        %v160 = vadd.f32 %v156, %v159
        %s161 = sadd.s32 %s148, 3
        %s162 = sld [smem:[#allocation2 + %s161]]
        %v163 = vstv %s162
        %v164 = vmul.f32 %v163, %v146
        %s165 = sadd.s32 %s148, 4
        %s166 = sld [smem:[#allocation2 + %s165]]
        %v167 = vstv %s166
        %v168 = vmul.f32 %v167, %v147
        %v169 = vadd.f32 %v164, %v168
        %s170 = sadd.s32 %s148, 5
        %s171 = sld [smem:[#allocation2 + %s170]]
        %v172 = vstv %s171
        %v173 = vadd.f32 %v169, %v172
        %v174 = vsub.f32 1.0, %v160
        %v175 = vsub.f32 %v174, %v173
        %vm176 = vcmp.ge.f32.partialorder %v160, 0.0
        %vm177 = vcmp.ge.f32.partialorder %v173, 0.0
        %vm178 = vmand %vm176, %vm177
        %vm179 = vcmp.ge.f32.partialorder %v175, 0.0
        %vm180 = vmand %vm178, %vm179
        %s181 = sadd.s32 %s148, 6
        %s182 = sld [smem:[#allocation2 + %s181]]
        %v183 = vstv %s182
        %v184 = vmul.f32 %v183, %v146
        %s185 = sadd.s32 %s148, 7
        %s186 = sld [smem:[#allocation2 + %s185]]
        %v187 = vstv %s186
        %v188 = vmul.f32 %v187, %v147
        %v189 = vadd.f32 %v184, %v188
        %s190 = sadd.s32 %s148, 8
        %s191 = sld [smem:[#allocation2 + %s190]]
        %v192 = vstv %s191
        %v193 = vadd.f32 %v189, %v192
        %vm194 = vcmp.gt.f32.partialorder %v193, 0.0
        %vm195 = vmand %vm180, %vm194
        %v196 = vsel %vm195, %v193, 0.0
        %s197 = sadd.s32 %s148, 9
        %s198 = sld [smem:[#allocation2 + %s197]]
        %v199 = vstv %s198
        %v200 = vmul.f32 %v199, %v146
        %s201 = sadd.s32 %s148, 10
        %s202 = sld [smem:[#allocation2 + %s201]]
        %v203 = vstv %s202
        %v204 = vmul.f32 %v203, %v147
        %v205 = vadd.f32 %v200, %v204
        %s206 = sadd.s32 %s148, 11
        %s207 = sld [smem:[#allocation2 + %s206]]
        %v208 = vstv %s207
        %v209 = vadd.f32 %v205, %v208
        %v210 = vsel %vm195, %v209, 0.0
        %s211 = sadd.s32 %s148, 12
        %s212 = sld [smem:[#allocation2 + %s211]]
        %v213 = vstv %s212
        %v214 = vmul.f32 %v213, %v146
        %s215 = sadd.s32 %s148, 13
        %s216 = sld [smem:[#allocation2 + %s215]]
        %v217 = vstv %s216
        %v218 = vmul.f32 %v217, %v147
        %v219 = vadd.f32 %v214, %v218
        %s220 = sadd.s32 %s148, 14
        %s221 = sld [smem:[#allocation2 + %s220]]
        %v222 = vstv %s221
        %v223 = vadd.f32 %v219, %v222
        %v224 = vsel %vm195, %v223, 0.0
        %s225 = sadd.s32 %s148, 15
        %s226 = sld [smem:[#allocation2 + %s225]]
        %v227 = vstv %s226
        %v228 = vmul.f32 %v227, %v146
        %s229 = sadd.s32 %s148, 16
        %s230 = sld [smem:[#allocation2 + %s229]]
        %v231 = vstv %s230
        %v232 = vmul.f32 %v231, %v147
        %v233 = vadd.f32 %v228, %v232
        %s234 = sadd.s32 %s148, 17
        %s235 = sld [smem:[#allocation2 + %s234]]
        %v236 = vstv %s235
        %v237 = vadd.f32 %v233, %v236
        %v238 = vsel %vm195, %v237, 0.0
        %s239 = sadd.s32 %s148, 18
        %s240 = sld [smem:[#allocation2 + %s239]]
        %v241 = vstv %s240
        %v242 = vmul.f32 %v241, %v146
        %s243 = sadd.s32 %s148, 19
        %s244 = sld [smem:[#allocation2 + %s243]]
        %v245 = vstv %s244
        %v246 = vmul.f32 %v245, %v147
        %v247 = vadd.f32 %v242, %v246
        %s248 = sadd.s32 %s148, 20
        %s249 = sld [smem:[#allocation2 + %s248]]
        %v250 = vstv %s249
        %v251 = vadd.f32 %v247, %v250
        %v252 = vsel %vm195, %v251, 0.0
        %s253 = sadd.s32 %s148, 21
        %s254 = sld [smem:[#allocation2 + %s253]]
        %v255 = vstv %s254
        %v256 = vmul.f32 %v255, %v146
        %s257 = sadd.s32 %s148, 22
        %s258 = sld [smem:[#allocation2 + %s257]]
        %v259 = vstv %s258
        %v260 = vmul.f32 %v259, %v147
        %v261 = vadd.f32 %v256, %v260
        %s262 = sadd.s32 %s148, 23
        %s263 = sld [smem:[#allocation2 + %s262]]
        %v264 = vstv %s263
        %v265 = vadd.f32 %v261, %v264
        %v266 = vsel %vm195, %v265, 0.0
        %s267 = sadd.s32 %s148, 24
        %s268 = sld [smem:[#allocation2 + %s267]]
        %v269 = vstv %s268
        %v270 = vmul.f32 %v269, %v146
        %s271 = sadd.s32 %s148, 25
        %s272 = sld [smem:[#allocation2 + %s271]]
        %v273 = vstv %s272
        %v274 = vmul.f32 %v273, %v147
        %v275 = vadd.f32 %v270, %v274
        %s276 = sadd.s32 %s148, 26
        %s277 = sld [smem:[#allocation2 + %s276]]
        %v278 = vstv %s277
        %v279 = vadd.f32 %v275, %v278
        %v280 = vsel %vm195, %v279, 0.0
        %s281 = sadd.s32 %s148, 32
        %s282 = sld [smem:[#allocation2 + %s281]]
        %v283 = vstv %s282
        %v284 = vmul.f32 %v283, %v146
        %s285 = sadd.s32 %s148, 33
        %s286 = sld [smem:[#allocation2 + %s285]]
        %v287 = vstv %s286
        %v288 = vmul.f32 %v287, %v147
        %v289 = vadd.f32 %v284, %v288
        %s290 = sadd.s32 %s148, 34
        %s291 = sld [smem:[#allocation2 + %s290]]
        %v292 = vstv %s291
        %v293 = vadd.f32 %v289, %v292
        %s294 = sadd.s32 %s148, 35
        %s295 = sld [smem:[#allocation2 + %s294]]
        %v296 = vstv %s295
        %v297 = vmul.f32 %v296, %v146
        %s298 = sadd.s32 %s148, 36
        %s299 = sld [smem:[#allocation2 + %s298]]
        %v300 = vstv %s299
        %v301 = vmul.f32 %v300, %v147
        %v302 = vadd.f32 %v297, %v301
        %s303 = sadd.s32 %s148, 37
        %s304 = sld [smem:[#allocation2 + %s303]]
        %v305 = vstv %s304
        %v306 = vadd.f32 %v302, %v305
        %v307 = vsub.f32 1.0, %v293
        %v308 = vsub.f32 %v307, %v306
        %vm309 = vcmp.ge.f32.partialorder %v293, 0.0
        %vm310 = vcmp.ge.f32.partialorder %v306, 0.0
        %vm311 = vmand %vm309, %vm310
        %vm312 = vcmp.ge.f32.partialorder %v308, 0.0
        %vm313 = vmand %vm311, %vm312
        %s314 = sadd.s32 %s148, 38
        %s315 = sld [smem:[#allocation2 + %s314]]
        %v316 = vstv %s315
        %v317 = vmul.f32 %v316, %v146
        %s318 = sadd.s32 %s148, 39
        %s319 = sld [smem:[#allocation2 + %s318]]
        %v320 = vstv %s319
        %v321 = vmul.f32 %v320, %v147
        %v322 = vadd.f32 %v317, %v321
        %s323 = sadd.s32 %s148, 40
        %s324 = sld [smem:[#allocation2 + %s323]]
        %v325 = vstv %s324
        %v326 = vadd.f32 %v322, %v325
        %vm327 = vcmp.gt.f32.partialorder %v326, %v196
        %vm328 = vmand %vm313, %vm327
        %v329 = vsel %vm328, %v326, %v196
        %s330 = sadd.s32 %s148, 41
        %s331 = sld [smem:[#allocation2 + %s330]]
        %v332 = vstv %s331
        %v333 = vmul.f32 %v332, %v146
        %s334 = sadd.s32 %s148, 42
        %s335 = sld [smem:[#allocation2 + %s334]]
        %v336 = vstv %s335
        %v337 = vmul.f32 %v336, %v147
        %v338 = vadd.f32 %v333, %v337
        %s339 = sadd.s32 %s148, 43
        %s340 = sld [smem:[#allocation2 + %s339]]
        %v341 = vstv %s340
        %v342 = vadd.f32 %v338, %v341
        %v343 = vsel %vm328, %v342, %v210
        %s344 = sadd.s32 %s148, 44
        %s345 = sld [smem:[#allocation2 + %s344]]
        %v346 = vstv %s345
        %v347 = vmul.f32 %v346, %v146
        %s348 = sadd.s32 %s148, 45
        %s349 = sld [smem:[#allocation2 + %s348]]
        %v350 = vstv %s349
        %v351 = vmul.f32 %v350, %v147
        %v352 = vadd.f32 %v347, %v351
        %s353 = sadd.s32 %s148, 46
        %s354 = sld [smem:[#allocation2 + %s353]]
        %v355 = vstv %s354
        %v356 = vadd.f32 %v352, %v355
        %v357 = vsel %vm328, %v356, %v224
        %s358 = sadd.s32 %s148, 47
        %s359 = sld [smem:[#allocation2 + %s358]]
        %v360 = vstv %s359
        %v361 = vmul.f32 %v360, %v146
        %s362 = sadd.s32 %s148, 48
        %s363 = sld [smem:[#allocation2 + %s362]]
        %v364 = vstv %s363
        %v365 = vmul.f32 %v364, %v147
        %v366 = vadd.f32 %v361, %v365
        %s367 = sadd.s32 %s148, 49
        %s368 = sld [smem:[#allocation2 + %s367]]
        %v369 = vstv %s368
        %v370 = vadd.f32 %v366, %v369
        %v371 = vsel %vm328, %v370, %v238
        %s372 = sadd.s32 %s148, 50
        %s373 = sld [smem:[#allocation2 + %s372]]
        %v374 = vstv %s373
        %v375 = vmul.f32 %v374, %v146
        %s376 = sadd.s32 %s148, 51
        %s377 = sld [smem:[#allocation2 + %s376]]
        %v378 = vstv %s377
        %v379 = vmul.f32 %v378, %v147
        %v380 = vadd.f32 %v375, %v379
        %s381 = sadd.s32 %s148, 52
        %s382 = sld [smem:[#allocation2 + %s381]]
        %v383 = vstv %s382
        %v384 = vadd.f32 %v380, %v383
        %v385 = vsel %vm328, %v384, %v252
        %s386 = sadd.s32 %s148, 53
        %s387 = sld [smem:[#allocation2 + %s386]]
        %v388 = vstv %s387
        %v389 = vmul.f32 %v388, %v146
        %s390 = sadd.s32 %s148, 54
        %s391 = sld [smem:[#allocation2 + %s390]]
        %v392 = vstv %s391
        %v393 = vmul.f32 %v392, %v147
        %v394 = vadd.f32 %v389, %v393
        %s395 = sadd.s32 %s148, 55
        %s396 = sld [smem:[#allocation2 + %s395]]
        %v397 = vstv %s396
        %v398 = vadd.f32 %v394, %v397
        %v399 = vsel %vm328, %v398, %v266
        %s400 = sadd.s32 %s148, 56
        %s401 = sld [smem:[#allocation2 + %s400]]
        %v402 = vstv %s401
        %v403 = vmul.f32 %v402, %v146
        %s404 = sadd.s32 %s148, 57
        %s405 = sld [smem:[#allocation2 + %s404]]
        %v406 = vstv %s405
        %v407 = vmul.f32 %v406, %v147
        %v408 = vadd.f32 %v403, %v407
        %s409 = sadd.s32 %s148, 58
        %s410 = sld [smem:[#allocation2 + %s409]]
        %v411 = vstv %s410
        %v412 = vadd.f32 %v408, %v411
        %v413 = vsel %vm328, %v412, %v280
        %s414 = sadd.s32 %s148, 64
        %s415 = sld [smem:[#allocation2 + %s414]]
        %v416 = vstv %s415
        %v417 = vmul.f32 %v416, %v146
        %s418 = sadd.s32 %s148, 65
        %s419 = sld [smem:[#allocation2 + %s418]]
        %v420 = vstv %s419
        %v421 = vmul.f32 %v420, %v147
        %v422 = vadd.f32 %v417, %v421
        %s423 = sadd.s32 %s148, 66
        %s424 = sld [smem:[#allocation2 + %s423]]
        %v425 = vstv %s424
        %v426 = vadd.f32 %v422, %v425
        %s427 = sadd.s32 %s148, 67
        %s428 = sld [smem:[#allocation2 + %s427]]
        %v429 = vstv %s428
        %v430 = vmul.f32 %v429, %v146
        %s431 = sadd.s32 %s148, 68
        %s432 = sld [smem:[#allocation2 + %s431]]
        %v433 = vstv %s432
        %v434 = vmul.f32 %v433, %v147
        %v435 = vadd.f32 %v430, %v434
        %s436 = sadd.s32 %s148, 69
        %s437 = sld [smem:[#allocation2 + %s436]]
        %v438 = vstv %s437
        %v439 = vadd.f32 %v435, %v438
        %v440 = vsub.f32 1.0, %v426
        %v441 = vsub.f32 %v440, %v439
        %vm442 = vcmp.ge.f32.partialorder %v426, 0.0
        %vm443 = vcmp.ge.f32.partialorder %v439, 0.0
        %vm444 = vmand %vm442, %vm443
        %vm445 = vcmp.ge.f32.partialorder %v441, 0.0
        %vm446 = vmand %vm444, %vm445
        %s447 = sadd.s32 %s148, 70
        %s448 = sld [smem:[#allocation2 + %s447]]
        %v449 = vstv %s448
        %v450 = vmul.f32 %v449, %v146
        %s451 = sadd.s32 %s148, 71
        %s452 = sld [smem:[#allocation2 + %s451]]
        %v453 = vstv %s452
        %v454 = vmul.f32 %v453, %v147
        %v455 = vadd.f32 %v450, %v454
        %s456 = sadd.s32 %s148, 72
        %s457 = sld [smem:[#allocation2 + %s456]]
        %v458 = vstv %s457
        %v459 = vadd.f32 %v455, %v458
        %vm460 = vcmp.gt.f32.partialorder %v459, %v329
        %vm461 = vmand %vm446, %vm460
        %v462 = vsel %vm461, %v459, %v329
        %s463 = sadd.s32 %s148, 73
        %s464 = sld [smem:[#allocation2 + %s463]]
        %v465 = vstv %s464
        %v466 = vmul.f32 %v465, %v146
        %s467 = sadd.s32 %s148, 74
        %s468 = sld [smem:[#allocation2 + %s467]]
        %v469 = vstv %s468
        %v470 = vmul.f32 %v469, %v147
        %v471 = vadd.f32 %v466, %v470
        %s472 = sadd.s32 %s148, 75
        %s473 = sld [smem:[#allocation2 + %s472]]
        %v474 = vstv %s473
        %v475 = vadd.f32 %v471, %v474
        %v476 = vsel %vm461, %v475, %v343
        %s477 = sadd.s32 %s148, 76
        %s478 = sld [smem:[#allocation2 + %s477]]
        %v479 = vstv %s478
        %v480 = vmul.f32 %v479, %v146
        %s481 = sadd.s32 %s148, 77
        %s482 = sld [smem:[#allocation2 + %s481]]
        %v483 = vstv %s482
        %v484 = vmul.f32 %v483, %v147
        %v485 = vadd.f32 %v480, %v484
        %s486 = sadd.s32 %s148, 78
        %s487 = sld [smem:[#allocation2 + %s486]]
        %v488 = vstv %s487
        %v489 = vadd.f32 %v485, %v488
        %v490 = vsel %vm461, %v489, %v357
        %s491 = sadd.s32 %s148, 79
        %s492 = sld [smem:[#allocation2 + %s491]]
        %v493 = vstv %s492
        %v494 = vmul.f32 %v493, %v146
        %s495 = sadd.s32 %s148, 80
        %s496 = sld [smem:[#allocation2 + %s495]]
        %v497 = vstv %s496
        %v498 = vmul.f32 %v497, %v147
        %v499 = vadd.f32 %v494, %v498
        %s500 = sadd.s32 %s148, 81
        %s501 = sld [smem:[#allocation2 + %s500]]
        %v502 = vstv %s501
        %v503 = vadd.f32 %v499, %v502
        %v504 = vsel %vm461, %v503, %v371
        %s505 = sadd.s32 %s148, 82
        %s506 = sld [smem:[#allocation2 + %s505]]
        %v507 = vstv %s506
        %v508 = vmul.f32 %v507, %v146
        %s509 = sadd.s32 %s148, 83
        %s510 = sld [smem:[#allocation2 + %s509]]
        %v511 = vstv %s510
        %v512 = vmul.f32 %v511, %v147
        %v513 = vadd.f32 %v508, %v512
        %s514 = sadd.s32 %s148, 84
        %s515 = sld [smem:[#allocation2 + %s514]]
        %v516 = vstv %s515
        %v517 = vadd.f32 %v513, %v516
        %v518 = vsel %vm461, %v517, %v385
        %s519 = sadd.s32 %s148, 85
        %s520 = sld [smem:[#allocation2 + %s519]]
        %v521 = vstv %s520
        %v522 = vmul.f32 %v521, %v146
        %s523 = sadd.s32 %s148, 86
        %s524 = sld [smem:[#allocation2 + %s523]]
        %v525 = vstv %s524
        %v526 = vmul.f32 %v525, %v147
        %v527 = vadd.f32 %v522, %v526
        %s528 = sadd.s32 %s148, 87
        %s529 = sld [smem:[#allocation2 + %s528]]
        %v530 = vstv %s529
        %v531 = vadd.f32 %v527, %v530
        %v532 = vsel %vm461, %v531, %v399
        %s533 = sadd.s32 %s148, 88
        %s534 = sld [smem:[#allocation2 + %s533]]
        %v535 = vstv %s534
        %v536 = vmul.f32 %v535, %v146
        %s537 = sadd.s32 %s148, 89
        %s538 = sld [smem:[#allocation2 + %s537]]
        %v539 = vstv %s538
        %v540 = vmul.f32 %v539, %v147
        %v541 = vadd.f32 %v536, %v540
        %s542 = sadd.s32 %s148, 90
        %s543 = sld [smem:[#allocation2 + %s542]]
        %v544 = vstv %s543
        %v545 = vadd.f32 %v541, %v544
        %v546 = vsel %vm461, %v545, %v413
        %s547 = sadd.s32 %s148, 96
        %s548 = sld [smem:[#allocation2 + %s547]]
        %v549 = vstv %s548
        %v550 = vmul.f32 %v549, %v146
        %s551 = sadd.s32 %s148, 97
        %s552 = sld [smem:[#allocation2 + %s551]]
        %v553 = vstv %s552
        %v554 = vmul.f32 %v553, %v147
        %v555 = vadd.f32 %v550, %v554
        %s556 = sadd.s32 %s148, 98
        %s557 = sld [smem:[#allocation2 + %s556]]
        %v558 = vstv %s557
        %v559 = vadd.f32 %v555, %v558
        %s560 = sadd.s32 %s148, 99
        %s561 = sld [smem:[#allocation2 + %s560]]
        %v562 = vstv %s561
        %v563 = vmul.f32 %v562, %v146
        %s564 = sadd.s32 %s148, 100
        %s565 = sld [smem:[#allocation2 + %s564]]
        %v566 = vstv %s565
        %v567 = vmul.f32 %v566, %v147
        %v568 = vadd.f32 %v563, %v567
        %s569 = sadd.s32 %s148, 101
        %s570 = sld [smem:[#allocation2 + %s569]]
        %v571 = vstv %s570
        %v572 = vadd.f32 %v568, %v571
        %v573 = vsub.f32 1.0, %v559
        %v574 = vsub.f32 %v573, %v572
        %vm575 = vcmp.ge.f32.partialorder %v559, 0.0
        %vm576 = vcmp.ge.f32.partialorder %v572, 0.0
        %vm577 = vmand %vm575, %vm576
        %vm578 = vcmp.ge.f32.partialorder %v574, 0.0
        %vm579 = vmand %vm577, %vm578
        %s580 = sadd.s32 %s148, 102
        %s581 = sld [smem:[#allocation2 + %s580]]
        %v582 = vstv %s581
        %v583 = vmul.f32 %v582, %v146
        %s584 = sadd.s32 %s148, 103
        %s585 = sld [smem:[#allocation2 + %s584]]
        %v586 = vstv %s585
        %v587 = vmul.f32 %v586, %v147
        %v588 = vadd.f32 %v583, %v587
        %s589 = sadd.s32 %s148, 104
        %s590 = sld [smem:[#allocation2 + %s589]]
        %v591 = vstv %s590
        %v592 = vadd.f32 %v588, %v591
        %vm593 = vcmp.gt.f32.partialorder %v592, %v462
        %vm594 = vmand %vm579, %vm593
        %v595 = vsel %vm594, %v592, %v462
        %s596 = sadd.s32 %s148, 105
        %s597 = sld [smem:[#allocation2 + %s596]]
        %v598 = vstv %s597
        %v599 = vmul.f32 %v598, %v146
        %s600 = sadd.s32 %s148, 106
        %s601 = sld [smem:[#allocation2 + %s600]]
        %v602 = vstv %s601
        %v603 = vmul.f32 %v602, %v147
        %v604 = vadd.f32 %v599, %v603
        %s605 = sadd.s32 %s148, 107
        %s606 = sld [smem:[#allocation2 + %s605]]
        %v607 = vstv %s606
        %v608 = vadd.f32 %v604, %v607
        %v609 = vsel %vm594, %v608, %v476
        %s610 = sadd.s32 %s148, 108
        %s611 = sld [smem:[#allocation2 + %s610]]
        %v612 = vstv %s611
        %v613 = vmul.f32 %v612, %v146
        %s614 = sadd.s32 %s148, 109
        %s615 = sld [smem:[#allocation2 + %s614]]
        %v616 = vstv %s615
        %v617 = vmul.f32 %v616, %v147
        %v618 = vadd.f32 %v613, %v617
        %s619 = sadd.s32 %s148, 110
        %s620 = sld [smem:[#allocation2 + %s619]]
        %v621 = vstv %s620
        %v622 = vadd.f32 %v618, %v621
        %v623 = vsel %vm594, %v622, %v490
        %s624 = sadd.s32 %s148, 111
        %s625 = sld [smem:[#allocation2 + %s624]]
        %v626 = vstv %s625
        %v627 = vmul.f32 %v626, %v146
        %s628 = sadd.s32 %s148, 112
        %s629 = sld [smem:[#allocation2 + %s628]]
        %v630 = vstv %s629
        %v631 = vmul.f32 %v630, %v147
        %v632 = vadd.f32 %v627, %v631
        %s633 = sadd.s32 %s148, 113
        %s634 = sld [smem:[#allocation2 + %s633]]
        %v635 = vstv %s634
        %v636 = vadd.f32 %v632, %v635
        %v637 = vsel %vm594, %v636, %v504
        %s638 = sadd.s32 %s148, 114
        %s639 = sld [smem:[#allocation2 + %s638]]
        %v640 = vstv %s639
        %v641 = vmul.f32 %v640, %v146
        %s642 = sadd.s32 %s148, 115
        %s643 = sld [smem:[#allocation2 + %s642]]
        %v644 = vstv %s643
        %v645 = vmul.f32 %v644, %v147
        %v646 = vadd.f32 %v641, %v645
        %s647 = sadd.s32 %s148, 116
        %s648 = sld [smem:[#allocation2 + %s647]]
        %v649 = vstv %s648
        %v650 = vadd.f32 %v646, %v649
        %v651 = vsel %vm594, %v650, %v518
        %s652 = sadd.s32 %s148, 117
        %s653 = sld [smem:[#allocation2 + %s652]]
        %v654 = vstv %s653
        %v655 = vmul.f32 %v654, %v146
        %s656 = sadd.s32 %s148, 118
        %s657 = sld [smem:[#allocation2 + %s656]]
        %v658 = vstv %s657
        %v659 = vmul.f32 %v658, %v147
        %v660 = vadd.f32 %v655, %v659
        %s661 = sadd.s32 %s148, 119
        %s662 = sld [smem:[#allocation2 + %s661]]
        %v663 = vstv %s662
        %v664 = vadd.f32 %v660, %v663
        %v665 = vsel %vm594, %v664, %v532
        %s666 = sadd.s32 %s148, 120
        %s667 = sld [smem:[#allocation2 + %s666]]
        %v668 = vstv %s667
        %v669 = vmul.f32 %v668, %v146
        %s670 = sadd.s32 %s148, 121
        %s671 = sld [smem:[#allocation2 + %s670]]
        %v672 = vstv %s671
        %v673 = vmul.f32 %v672, %v147
        %v674 = vadd.f32 %v669, %v673
        %s675 = sadd.s32 %s148, 122
        %s676 = sld [smem:[#allocation2 + %s675]]
        %v677 = vstv %s676
        %v678 = vadd.f32 %v674, %v677
        %v679 = vsel %vm594, %v678, %v546
        %s680 = sadd.s32 %s148, 128
        %s681 = sld [smem:[#allocation2 + %s680]]
        %v682 = vstv %s681
        %v683 = vmul.f32 %v682, %v146
        %s684 = sadd.s32 %s148, 129
        %s685 = sld [smem:[#allocation2 + %s684]]
        %v686 = vstv %s685
        %v687 = vmul.f32 %v686, %v147
        %v688 = vadd.f32 %v683, %v687
        %s689 = sadd.s32 %s148, 130
        %s690 = sld [smem:[#allocation2 + %s689]]
        %v691 = vstv %s690
        %v692 = vadd.f32 %v688, %v691
        %s693 = sadd.s32 %s148, 131
        %s694 = sld [smem:[#allocation2 + %s693]]
        %v695 = vstv %s694
        %v696 = vmul.f32 %v695, %v146
        %s697 = sadd.s32 %s148, 132
        %s698 = sld [smem:[#allocation2 + %s697]]
        %v699 = vstv %s698
        %v700 = vmul.f32 %v699, %v147
        %v701 = vadd.f32 %v696, %v700
        %s702 = sadd.s32 %s148, 133
        %s703 = sld [smem:[#allocation2 + %s702]]
        %v704 = vstv %s703
        %v705 = vadd.f32 %v701, %v704
        %v706 = vsub.f32 1.0, %v692
        %v707 = vsub.f32 %v706, %v705
        %vm708 = vcmp.ge.f32.partialorder %v692, 0.0
        %vm709 = vcmp.ge.f32.partialorder %v705, 0.0
        %vm710 = vmand %vm708, %vm709
        %vm711 = vcmp.ge.f32.partialorder %v707, 0.0
        %vm712 = vmand %vm710, %vm711
        %s713 = sadd.s32 %s148, 134
        %s714 = sld [smem:[#allocation2 + %s713]]
        %v715 = vstv %s714
        %v716 = vmul.f32 %v715, %v146
        %s717 = sadd.s32 %s148, 135
        %s718 = sld [smem:[#allocation2 + %s717]]
        %v719 = vstv %s718
        %v720 = vmul.f32 %v719, %v147
        %v721 = vadd.f32 %v716, %v720
        %s722 = sadd.s32 %s148, 136
        %s723 = sld [smem:[#allocation2 + %s722]]
        %v724 = vstv %s723
        %v725 = vadd.f32 %v721, %v724
        %vm726 = vcmp.gt.f32.partialorder %v725, %v595
        %vm727 = vmand %vm712, %vm726
        %v728 = vsel %vm727, %v725, %v595
        %s729 = sadd.s32 %s148, 137
        %s730 = sld [smem:[#allocation2 + %s729]]
        %v731 = vstv %s730
        %v732 = vmul.f32 %v731, %v146
        %s733 = sadd.s32 %s148, 138
        %s734 = sld [smem:[#allocation2 + %s733]]
        %v735 = vstv %s734
        %v736 = vmul.f32 %v735, %v147
        %v737 = vadd.f32 %v732, %v736
        %s738 = sadd.s32 %s148, 139
        %s739 = sld [smem:[#allocation2 + %s738]]
        %v740 = vstv %s739
        %v741 = vadd.f32 %v737, %v740
        %v742 = vsel %vm727, %v741, %v609
        %s743 = sadd.s32 %s148, 140
        %s744 = sld [smem:[#allocation2 + %s743]]
        %v745 = vstv %s744
        %v746 = vmul.f32 %v745, %v146
        %s747 = sadd.s32 %s148, 141
        %s748 = sld [smem:[#allocation2 + %s747]]
        %v749 = vstv %s748
        %v750 = vmul.f32 %v749, %v147
        %v751 = vadd.f32 %v746, %v750
        %s752 = sadd.s32 %s148, 142
        %s753 = sld [smem:[#allocation2 + %s752]]
        %v754 = vstv %s753
        %v755 = vadd.f32 %v751, %v754
        %v756 = vsel %vm727, %v755, %v623
        %s757 = sadd.s32 %s148, 143
        %s758 = sld [smem:[#allocation2 + %s757]]
        %v759 = vstv %s758
        %v760 = vmul.f32 %v759, %v146
        %s761 = sadd.s32 %s148, 144
        %s762 = sld [smem:[#allocation2 + %s761]]
        %v763 = vstv %s762
        %v764 = vmul.f32 %v763, %v147
        %v765 = vadd.f32 %v760, %v764
        %s766 = sadd.s32 %s148, 145
        %s767 = sld [smem:[#allocation2 + %s766]]
        %v768 = vstv %s767
        %v769 = vadd.f32 %v765, %v768
        %v770 = vsel %vm727, %v769, %v637
        %s771 = sadd.s32 %s148, 146
        %s772 = sld [smem:[#allocation2 + %s771]]
        %v773 = vstv %s772
        %v774 = vmul.f32 %v773, %v146
        %s775 = sadd.s32 %s148, 147
        %s776 = sld [smem:[#allocation2 + %s775]]
        %v777 = vstv %s776
        %v778 = vmul.f32 %v777, %v147
        %v779 = vadd.f32 %v774, %v778
        %s780 = sadd.s32 %s148, 148
        %s781 = sld [smem:[#allocation2 + %s780]]
        %v782 = vstv %s781
        %v783 = vadd.f32 %v779, %v782
        %v784 = vsel %vm727, %v783, %v651
        %s785 = sadd.s32 %s148, 149
        %s786 = sld [smem:[#allocation2 + %s785]]
        %v787 = vstv %s786
        %v788 = vmul.f32 %v787, %v146
        %s789 = sadd.s32 %s148, 150
        %s790 = sld [smem:[#allocation2 + %s789]]
        %v791 = vstv %s790
        %v792 = vmul.f32 %v791, %v147
        %v793 = vadd.f32 %v788, %v792
        %s794 = sadd.s32 %s148, 151
        %s795 = sld [smem:[#allocation2 + %s794]]
        %v796 = vstv %s795
        %v797 = vadd.f32 %v793, %v796
        %v798 = vsel %vm727, %v797, %v665
        %s799 = sadd.s32 %s148, 152
        %s800 = sld [smem:[#allocation2 + %s799]]
        %v801 = vstv %s800
        %v802 = vmul.f32 %v801, %v146
        %s803 = sadd.s32 %s148, 153
        %s804 = sld [smem:[#allocation2 + %s803]]
        %v805 = vstv %s804
        %v806 = vmul.f32 %v805, %v147
        %v807 = vadd.f32 %v802, %v806
        %s808 = sadd.s32 %s148, 154
        %s809 = sld [smem:[#allocation2 + %s808]]
        %v810 = vstv %s809
        %v811 = vadd.f32 %v807, %v810
        %v812 = vsel %vm727, %v811, %v679
        %s813 = sadd.s32 %s148, 160
        %s814 = sld [smem:[#allocation2 + %s813]]
        %v815 = vstv %s814
        %v816 = vmul.f32 %v815, %v146
        %s817 = sadd.s32 %s148, 161
        %s818 = sld [smem:[#allocation2 + %s817]]
        %v819 = vstv %s818
        %v820 = vmul.f32 %v819, %v147
        %v821 = vadd.f32 %v816, %v820
        %s822 = sadd.s32 %s148, 162
        %s823 = sld [smem:[#allocation2 + %s822]]
        %v824 = vstv %s823
        %v825 = vadd.f32 %v821, %v824
        %s826 = sadd.s32 %s148, 163
        %s827 = sld [smem:[#allocation2 + %s826]]
        %v828 = vstv %s827
        %v829 = vmul.f32 %v828, %v146
        %s830 = sadd.s32 %s148, 164
        %s831 = sld [smem:[#allocation2 + %s830]]
        %v832 = vstv %s831
        %v833 = vmul.f32 %v832, %v147
        %v834 = vadd.f32 %v829, %v833
        %s835 = sadd.s32 %s148, 165
        %s836 = sld [smem:[#allocation2 + %s835]]
        %v837 = vstv %s836
        %v838 = vadd.f32 %v834, %v837
        %v839 = vsub.f32 1.0, %v825
        %v840 = vsub.f32 %v839, %v838
        %vm841 = vcmp.ge.f32.partialorder %v825, 0.0
        %vm842 = vcmp.ge.f32.partialorder %v838, 0.0
        %vm843 = vmand %vm841, %vm842
        %vm844 = vcmp.ge.f32.partialorder %v840, 0.0
        %vm845 = vmand %vm843, %vm844
        %s846 = sadd.s32 %s148, 166
        %s847 = sld [smem:[#allocation2 + %s846]]
        %v848 = vstv %s847
        %v849 = vmul.f32 %v848, %v146
        %s850 = sadd.s32 %s148, 167
        %s851 = sld [smem:[#allocation2 + %s850]]
        %v852 = vstv %s851
        %v853 = vmul.f32 %v852, %v147
        %v854 = vadd.f32 %v849, %v853
        %s855 = sadd.s32 %s148, 168
        %s856 = sld [smem:[#allocation2 + %s855]]
        %v857 = vstv %s856
        %v858 = vadd.f32 %v854, %v857
        %vm859 = vcmp.gt.f32.partialorder %v858, %v728
        %vm860 = vmand %vm845, %vm859
        %v861 = vsel %vm860, %v858, %v728
        %s862 = sadd.s32 %s148, 169
        %s863 = sld [smem:[#allocation2 + %s862]]
        %v864 = vstv %s863
        %v865 = vmul.f32 %v864, %v146
        %s866 = sadd.s32 %s148, 170
        %s867 = sld [smem:[#allocation2 + %s866]]
        %v868 = vstv %s867
        %v869 = vmul.f32 %v868, %v147
        %v870 = vadd.f32 %v865, %v869
        %s871 = sadd.s32 %s148, 171
        %s872 = sld [smem:[#allocation2 + %s871]]
        %v873 = vstv %s872
        %v874 = vadd.f32 %v870, %v873
        %v875 = vsel %vm860, %v874, %v742
        %s876 = sadd.s32 %s148, 172
        %s877 = sld [smem:[#allocation2 + %s876]]
        %v878 = vstv %s877
        %v879 = vmul.f32 %v878, %v146
        %s880 = sadd.s32 %s148, 173
        %s881 = sld [smem:[#allocation2 + %s880]]
        %v882 = vstv %s881
        %v883 = vmul.f32 %v882, %v147
        %v884 = vadd.f32 %v879, %v883
        %s885 = sadd.s32 %s148, 174
        %s886 = sld [smem:[#allocation2 + %s885]]
        %v887 = vstv %s886
        %v888 = vadd.f32 %v884, %v887
        %v889 = vsel %vm860, %v888, %v756
        %s890 = sadd.s32 %s148, 175
        %s891 = sld [smem:[#allocation2 + %s890]]
        %v892 = vstv %s891
        %v893 = vmul.f32 %v892, %v146
        %s894 = sadd.s32 %s148, 176
        %s895 = sld [smem:[#allocation2 + %s894]]
        %v896 = vstv %s895
        %v897 = vmul.f32 %v896, %v147
        %v898 = vadd.f32 %v893, %v897
        %s899 = sadd.s32 %s148, 177
        %s900 = sld [smem:[#allocation2 + %s899]]
        %v901 = vstv %s900
        %v902 = vadd.f32 %v898, %v901
        %v903 = vsel %vm860, %v902, %v770
        %s904 = sadd.s32 %s148, 178
        %s905 = sld [smem:[#allocation2 + %s904]]
        %v906 = vstv %s905
        %v907 = vmul.f32 %v906, %v146
        %s908 = sadd.s32 %s148, 179
        %s909 = sld [smem:[#allocation2 + %s908]]
        %v910 = vstv %s909
        %v911 = vmul.f32 %v910, %v147
        %v912 = vadd.f32 %v907, %v911
        %s913 = sadd.s32 %s148, 180
        %s914 = sld [smem:[#allocation2 + %s913]]
        %v915 = vstv %s914
        %v916 = vadd.f32 %v912, %v915
        %v917 = vsel %vm860, %v916, %v784
        %s918 = sadd.s32 %s148, 181
        %s919 = sld [smem:[#allocation2 + %s918]]
        %v920 = vstv %s919
        %v921 = vmul.f32 %v920, %v146
        %s922 = sadd.s32 %s148, 182
        %s923 = sld [smem:[#allocation2 + %s922]]
        %v924 = vstv %s923
        %v925 = vmul.f32 %v924, %v147
        %v926 = vadd.f32 %v921, %v925
        %s927 = sadd.s32 %s148, 183
        %s928 = sld [smem:[#allocation2 + %s927]]
        %v929 = vstv %s928
        %v930 = vadd.f32 %v926, %v929
        %v931 = vsel %vm860, %v930, %v798
        %s932 = sadd.s32 %s148, 184
        %s933 = sld [smem:[#allocation2 + %s932]]
        %v934 = vstv %s933
        %v935 = vmul.f32 %v934, %v146
        %s936 = sadd.s32 %s148, 185
        %s937 = sld [smem:[#allocation2 + %s936]]
        %v938 = vstv %s937
        %v939 = vmul.f32 %v938, %v147
        %v940 = vadd.f32 %v935, %v939
        %s941 = sadd.s32 %s148, 186
        %s942 = sld [smem:[#allocation2 + %s941]]
        %v943 = vstv %s942
        %v944 = vadd.f32 %v940, %v943
        %v945 = vsel %vm860, %v944, %v812
        %s946 = sadd.s32 %s148, 192
        %s947 = sld [smem:[#allocation2 + %s946]]
        %v948 = vstv %s947
        %v949 = vmul.f32 %v948, %v146
        %s950 = sadd.s32 %s148, 193
        %s951 = sld [smem:[#allocation2 + %s950]]
        %v952 = vstv %s951
        %v953 = vmul.f32 %v952, %v147
        %v954 = vadd.f32 %v949, %v953
        %s955 = sadd.s32 %s148, 194
        %s956 = sld [smem:[#allocation2 + %s955]]
        %v957 = vstv %s956
        %v958 = vadd.f32 %v954, %v957
        %s959 = sadd.s32 %s148, 195
        %s960 = sld [smem:[#allocation2 + %s959]]
        %v961 = vstv %s960
        %v962 = vmul.f32 %v961, %v146
        %s963 = sadd.s32 %s148, 196
        %s964 = sld [smem:[#allocation2 + %s963]]
        %v965 = vstv %s964
        %v966 = vmul.f32 %v965, %v147
        %v967 = vadd.f32 %v962, %v966
        %s968 = sadd.s32 %s148, 197
        %s969 = sld [smem:[#allocation2 + %s968]]
        %v970 = vstv %s969
        %v971 = vadd.f32 %v967, %v970
        %v972 = vsub.f32 1.0, %v958
        %v973 = vsub.f32 %v972, %v971
        %vm974 = vcmp.ge.f32.partialorder %v958, 0.0
        %vm975 = vcmp.ge.f32.partialorder %v971, 0.0
        %vm976 = vmand %vm974, %vm975
        %vm977 = vcmp.ge.f32.partialorder %v973, 0.0
        %vm978 = vmand %vm976, %vm977
        %s979 = sadd.s32 %s148, 198
        %s980 = sld [smem:[#allocation2 + %s979]]
        %v981 = vstv %s980
        %v982 = vmul.f32 %v981, %v146
        %s983 = sadd.s32 %s148, 199
        %s984 = sld [smem:[#allocation2 + %s983]]
        %v985 = vstv %s984
        %v986 = vmul.f32 %v985, %v147
        %v987 = vadd.f32 %v982, %v986
        %s988 = sadd.s32 %s148, 200
        %s989 = sld [smem:[#allocation2 + %s988]]
        %v990 = vstv %s989
        %v991 = vadd.f32 %v987, %v990
        %vm992 = vcmp.gt.f32.partialorder %v991, %v861
        %vm993 = vmand %vm978, %vm992
        %v994 = vsel %vm993, %v991, %v861
        %s995 = sadd.s32 %s148, 201
        %s996 = sld [smem:[#allocation2 + %s995]]
        %v997 = vstv %s996
        %v998 = vmul.f32 %v997, %v146
        %s999 = sadd.s32 %s148, 202
        %s1000 = sld [smem:[#allocation2 + %s999]]
        %v1001 = vstv %s1000
        %v1002 = vmul.f32 %v1001, %v147
        %v1003 = vadd.f32 %v998, %v1002
        %s1004 = sadd.s32 %s148, 203
        %s1005 = sld [smem:[#allocation2 + %s1004]]
        %v1006 = vstv %s1005
        %v1007 = vadd.f32 %v1003, %v1006
        %v1008 = vsel %vm993, %v1007, %v875
        %s1009 = sadd.s32 %s148, 204
        %s1010 = sld [smem:[#allocation2 + %s1009]]
        %v1011 = vstv %s1010
        %v1012 = vmul.f32 %v1011, %v146
        %s1013 = sadd.s32 %s148, 205
        %s1014 = sld [smem:[#allocation2 + %s1013]]
        %v1015 = vstv %s1014
        %v1016 = vmul.f32 %v1015, %v147
        %v1017 = vadd.f32 %v1012, %v1016
        %s1018 = sadd.s32 %s148, 206
        %s1019 = sld [smem:[#allocation2 + %s1018]]
        %v1020 = vstv %s1019
        %v1021 = vadd.f32 %v1017, %v1020
        %v1022 = vsel %vm993, %v1021, %v889
        %s1023 = sadd.s32 %s148, 207
        %s1024 = sld [smem:[#allocation2 + %s1023]]
        %v1025 = vstv %s1024
        %v1026 = vmul.f32 %v1025, %v146
        %s1027 = sadd.s32 %s148, 208
        %s1028 = sld [smem:[#allocation2 + %s1027]]
        %v1029 = vstv %s1028
        %v1030 = vmul.f32 %v1029, %v147
        %v1031 = vadd.f32 %v1026, %v1030
        %s1032 = sadd.s32 %s148, 209
        %s1033 = sld [smem:[#allocation2 + %s1032]]
        %v1034 = vstv %s1033
        %v1035 = vadd.f32 %v1031, %v1034
        %v1036 = vsel %vm993, %v1035, %v903
        %s1037 = sadd.s32 %s148, 210
        %s1038 = sld [smem:[#allocation2 + %s1037]]
        %v1039 = vstv %s1038
        %v1040 = vmul.f32 %v1039, %v146
        %s1041 = sadd.s32 %s148, 211
        %s1042 = sld [smem:[#allocation2 + %s1041]]
        %v1043 = vstv %s1042
        %v1044 = vmul.f32 %v1043, %v147
        %v1045 = vadd.f32 %v1040, %v1044
        %s1046 = sadd.s32 %s148, 212
        %s1047 = sld [smem:[#allocation2 + %s1046]]
        %v1048 = vstv %s1047
        %v1049 = vadd.f32 %v1045, %v1048
        %v1050 = vsel %vm993, %v1049, %v917
        %s1051 = sadd.s32 %s148, 213
        %s1052 = sld [smem:[#allocation2 + %s1051]]
        %v1053 = vstv %s1052
        %v1054 = vmul.f32 %v1053, %v146
        %s1055 = sadd.s32 %s148, 214
        %s1056 = sld [smem:[#allocation2 + %s1055]]
        %v1057 = vstv %s1056
        %v1058 = vmul.f32 %v1057, %v147
        %v1059 = vadd.f32 %v1054, %v1058
        %s1060 = sadd.s32 %s148, 215
        %s1061 = sld [smem:[#allocation2 + %s1060]]
        %v1062 = vstv %s1061
        %v1063 = vadd.f32 %v1059, %v1062
        %v1064 = vsel %vm993, %v1063, %v931
        %s1065 = sadd.s32 %s148, 216
        %s1066 = sld [smem:[#allocation2 + %s1065]]
        %v1067 = vstv %s1066
        %v1068 = vmul.f32 %v1067, %v146
        %s1069 = sadd.s32 %s148, 217
        %s1070 = sld [smem:[#allocation2 + %s1069]]
        %v1071 = vstv %s1070
        %v1072 = vmul.f32 %v1071, %v147
        %v1073 = vadd.f32 %v1068, %v1072
        %s1074 = sadd.s32 %s148, 218
        %s1075 = sld [smem:[#allocation2 + %s1074]]
        %v1076 = vstv %s1075
        %v1077 = vadd.f32 %v1073, %v1076
        %v1078 = vsel %vm993, %v1077, %v945
        %s1079 = sadd.s32 %s148, 224
        %s1080 = sld [smem:[#allocation2 + %s1079]]
        %v1081 = vstv %s1080
        %v1082 = vmul.f32 %v1081, %v146
        %s1083 = sadd.s32 %s148, 225
        %s1084 = sld [smem:[#allocation2 + %s1083]]
        %v1085 = vstv %s1084
        %v1086 = vmul.f32 %v1085, %v147
        %v1087 = vadd.f32 %v1082, %v1086
        %s1088 = sadd.s32 %s148, 226
        %s1089 = sld [smem:[#allocation2 + %s1088]]
        %v1090 = vstv %s1089
        %v1091 = vadd.f32 %v1087, %v1090
        %s1092 = sadd.s32 %s148, 227
        %s1093 = sld [smem:[#allocation2 + %s1092]]
        %v1094 = vstv %s1093
        %v1095 = vmul.f32 %v1094, %v146
        %s1096 = sadd.s32 %s148, 228
        %s1097 = sld [smem:[#allocation2 + %s1096]]
        %v1098 = vstv %s1097
        %v1099 = vmul.f32 %v1098, %v147
        %v1100 = vadd.f32 %v1095, %v1099
        %s1101 = sadd.s32 %s148, 229
        %s1102 = sld [smem:[#allocation2 + %s1101]]
        %v1103 = vstv %s1102
        %v1104 = vadd.f32 %v1100, %v1103
        %v1105 = vsub.f32 1.0, %v1091
        %v1106 = vsub.f32 %v1105, %v1104
        %vm1107 = vcmp.ge.f32.partialorder %v1091, 0.0
        %vm1108 = vcmp.ge.f32.partialorder %v1104, 0.0
        %vm1109 = vmand %vm1107, %vm1108
        %vm1110 = vcmp.ge.f32.partialorder %v1106, 0.0
        %vm1111 = vmand %vm1109, %vm1110
        %s1112 = sadd.s32 %s148, 230
        %s1113 = sld [smem:[#allocation2 + %s1112]]
        %v1114 = vstv %s1113
        %v1115 = vmul.f32 %v1114, %v146
        %s1116 = sadd.s32 %s148, 231
        %s1117 = sld [smem:[#allocation2 + %s1116]]
        %v1118 = vstv %s1117
        %v1119 = vmul.f32 %v1118, %v147
        %v1120 = vadd.f32 %v1115, %v1119
        %s1121 = sadd.s32 %s148, 232
        %s1122 = sld [smem:[#allocation2 + %s1121]]
        %v1123 = vstv %s1122
        %v1124 = vadd.f32 %v1120, %v1123
        %vm1125 = vcmp.gt.f32.partialorder %v1124, %v994
        %vm1126 = vmand %vm1111, %vm1125
        %v1127 = vsel %vm1126, %v1124, %v994
        %s1128 = sadd.s32 %s148, 233
        %s1129 = sld [smem:[#allocation2 + %s1128]]
        %v1130 = vstv %s1129
        %v1131 = vmul.f32 %v1130, %v146
        %s1132 = sadd.s32 %s148, 234
        %s1133 = sld [smem:[#allocation2 + %s1132]]
        %v1134 = vstv %s1133
        %v1135 = vmul.f32 %v1134, %v147
        %v1136 = vadd.f32 %v1131, %v1135
        %s1137 = sadd.s32 %s148, 235
        %s1138 = sld [smem:[#allocation2 + %s1137]]
        %v1139 = vstv %s1138
        %v1140 = vadd.f32 %v1136, %v1139
        %v1141 = vsel %vm1126, %v1140, %v1008
        %s1142 = sadd.s32 %s148, 236
        %s1143 = sld [smem:[#allocation2 + %s1142]]
        %v1144 = vstv %s1143
        %v1145 = vmul.f32 %v1144, %v146
        %s1146 = sadd.s32 %s148, 237
        %s1147 = sld [smem:[#allocation2 + %s1146]]
        %v1148 = vstv %s1147
        %v1149 = vmul.f32 %v1148, %v147
        %v1150 = vadd.f32 %v1145, %v1149
        %s1151 = sadd.s32 %s148, 238
        %s1152 = sld [smem:[#allocation2 + %s1151]]
        %v1153 = vstv %s1152
        %v1154 = vadd.f32 %v1150, %v1153
        %v1155 = vsel %vm1126, %v1154, %v1022
        %s1156 = sadd.s32 %s148, 239
        %s1157 = sld [smem:[#allocation2 + %s1156]]
        %v1158 = vstv %s1157
        %v1159 = vmul.f32 %v1158, %v146
        %s1160 = sadd.s32 %s148, 240
        %s1161 = sld [smem:[#allocation2 + %s1160]]
        %v1162 = vstv %s1161
        %v1163 = vmul.f32 %v1162, %v147
        %v1164 = vadd.f32 %v1159, %v1163
        %s1165 = sadd.s32 %s148, 241
        %s1166 = sld [smem:[#allocation2 + %s1165]]
        %v1167 = vstv %s1166
        %v1168 = vadd.f32 %v1164, %v1167
        %v1169 = vsel %vm1126, %v1168, %v1036
        %s1170 = sadd.s32 %s148, 242
        %s1171 = sld [smem:[#allocation2 + %s1170]]
        %v1172 = vstv %s1171
        %v1173 = vmul.f32 %v1172, %v146
        %s1174 = sadd.s32 %s148, 243
        %s1175 = sld [smem:[#allocation2 + %s1174]]
        %v1176 = vstv %s1175
        %v1177 = vmul.f32 %v1176, %v147
        %v1178 = vadd.f32 %v1173, %v1177
        %s1179 = sadd.s32 %s148, 244
        %s1180 = sld [smem:[#allocation2 + %s1179]]
        %v1181 = vstv %s1180
        %v1182 = vadd.f32 %v1178, %v1181
        %v1183 = vsel %vm1126, %v1182, %v1050
        %s1184 = sadd.s32 %s148, 245
        %s1185 = sld [smem:[#allocation2 + %s1184]]
        %v1186 = vstv %s1185
        %v1187 = vmul.f32 %v1186, %v146
        %s1188 = sadd.s32 %s148, 246
        %s1189 = sld [smem:[#allocation2 + %s1188]]
        %v1190 = vstv %s1189
        %v1191 = vmul.f32 %v1190, %v147
        %v1192 = vadd.f32 %v1187, %v1191
        %s1193 = sadd.s32 %s148, 247
        %s1194 = sld [smem:[#allocation2 + %s1193]]
        %v1195 = vstv %s1194
        %v1196 = vadd.f32 %v1192, %v1195
        %v1197 = vsel %vm1126, %v1196, %v1064
        %s1198 = sadd.s32 %s148, 248
        %s1199 = sld [smem:[#allocation2 + %s1198]]
        %v1200 = vstv %s1199
        %v1201 = vmul.f32 %v1200, %v146
        %s1202 = sadd.s32 %s148, 249
        %s1203 = sld [smem:[#allocation2 + %s1202]]
        %v1204 = vstv %s1203
        %v1205 = vmul.f32 %v1204, %v147
        %v1206 = vadd.f32 %v1201, %v1205
        %s1207 = sadd.s32 %s148, 250
        %s1208 = sld [smem:[#allocation2 + %s1207]]
        %v1209 = vstv %s1208
        %v1210 = vadd.f32 %v1206, %v1209
        %v1211 = vsel %vm1126, %v1210, %v1078
        %vm1212 = vcmp.gt.f32.partialorder %v1127, 0.0
        %v1213 = vmul.f32 %v1141, %v1141
        %v1214 = vmul.f32 %v1155, %v1155
        %v1215 = vadd.f32 %v1213, %v1214
        %v1216 = vmul.f32 %v1169, %v1169
        %v1217 = vadd.f32 %v1215, %v1216
        %v1218 = vadd.f32 %v1217, 1e-12
        %v1219 = vrsqrt.pop %v1218
        %v1220 = vmul.f32 %v1219, %v1218
        %v1221 = vmul.f32 %v1220, %v1219
        %v1222 = vmul.f32 0.5, %v1221
        %v1223 = vsub.f32 1.5, %v1222
        %v1224 = vmul.f32 %v1219, %v1223
        %vm1225 = vweird.f32 %v1218
        %vm1226 = vweird.f32 %v1219
        %vm1227 = vmor %vm1225, %vm1226
        %v1228 = vsel %vm1227, %v1219, %v1224
        %v1229 = vmul.f32 %v1141, %v1228
        %v1230 = vmul.f32 %v1155, %v1228
        %v1231 = vmul.f32 %v1169, %v1228
        %v1232 = vmul.f32 %v1183, %v1183
        %v1233 = vmul.f32 %v1197, %v1197
        %v1234 = vadd.f32 %v1232, %v1233
        %v1235 = vmul.f32 %v1211, %v1211
        %v1236 = vadd.f32 %v1234, %v1235
        %v1237 = vadd.f32 %v1236, 1e-12
        %v1238 = vrsqrt.pop %v1237
        %v1239 = vmul.f32 %v1238, %v1237
        %v1240 = vmul.f32 %v1239, %v1238
        %v1241 = vmul.f32 0.5, %v1240
        %v1242 = vsub.f32 1.5, %v1241
        %v1243 = vmul.f32 %v1238, %v1242
        %vm1244 = vweird.f32 %v1237
        %vm1245 = vweird.f32 %v1238
        %vm1246 = vmor %vm1244, %vm1245
        %v1247 = vsel %vm1246, %v1238, %v1243
        %v1248 = vsub.f32 0.0, %v1183
        %v1249 = vmul.f32 %v1248, %v1247
        %v1250 = vsub.f32 0.0, %v1197
        %v1251 = vmul.f32 %v1250, %v1247
        %v1252 = vsub.f32 0.0, %v1211
        %v1253 = vmul.f32 %v1252, %v1247
        %v1254 = vmul.f32 %v1229, %v1249
        %v1255 = vmul.f32 %v1230, %v1251
        %v1256 = vadd.f32 %v1254, %v1255
        %v1257 = vmul.f32 %v1231, %v1253
        %v1258 = vadd.f32 %v1256, %v1257
        %v1259 = vmax.f32 %v1258, 0.0
        %v1260 = vmul.f32 %v1259, 0.3
        %v1261 = vsub.f32 0.0, %v1249
        %v1262 = vmul.f32 %v1258, 2.0
        %v1263 = vmul.f32 %v1262, %v1229
        %v1264 = vadd.f32 %v1261, %v1263
        %v1265 = vsub.f32 0.0, %v1251
        %v1266 = vmul.f32 %v1262, %v1230
        %v1267 = vadd.f32 %v1265, %v1266
        %v1268 = vsub.f32 0.0, %v1253
        %v1269 = vmul.f32 %v1262, %v1231
        %v1270 = vadd.f32 %v1268, %v1269
        %v1271 = vmul.f32 %v1249, %v1264
        %v1272 = vmul.f32 %v1251, %v1267
        %v1273 = vadd.f32 %v1271, %v1272
        %v1274 = vmul.f32 %v1253, %v1270
        %v1275 = vadd.f32 %v1273, %v1274
        %v1276 = vmax.f32 %v1275, 0.0
        %vm1277 = vcmp.gt.f32.partialorder %v1258, 0.0
        %v1278 = vsel %vm1277, 1, 0
        %v1279 = vcvt.s32.f32 %v1278
        %v1280 = vmul.f32 %v1276, %v1279
        %v1281 = vmul.f32 %v1280, %v1280
        %v1282 = vmul.f32 %v1281, %v1281
        %v1283 = vmul.f32 %v1282, %v1282
        %v1284 = vmul.f32 %v1283, %v1283
        %v1285 = vmul.f32 %v1284, %v1284
        %v1286 = vmul.f32 %v1285, %v1285
        %v1287 = vmul.f32 %v1286, 0.2
        %v1288 = vadd.f32 %v1260, 0.5
        %v1289 = vmul.f32 %v1288, 0.5
        %v1290 = vadd.f32 %v1289, %v1287
        %v1291 = vsel %vm1212, %v1290, 1.0
        %v1292 = vsel %vm1212, 1.0, 0.0
        %1293 = vst [vmem:[%s122] sm:$0xff] %v1291
        %s1294 = scalar_lea.vmem %s122, 8 [#allocation5]
        %1295 = vst [vmem:[%s1294] sm:$0xff] %v1292
        %s1296 = sand.u32 %s59, 1
        %s1297 = scalar_lea.sflag [#allocation3], %s1296
        %s1298 = sand.u32 %s59, 1
        %s1299 = smul.addr %s1298, 16
        %s1300 = scalar_lea.vmem [#allocation5], %s1299
        // Predicated region
        $region29: #{tpu_custom_call.1} parent=23 // pred_check
          %p1301 = pneg %p69
        $region30: #{tpu_custom_call.1} parent=23 // pred_check_branch
          %1303 = sbr.rel (%p1301) target = $region32
        $region31: #{tpu_custom_call.1} parent=23 // pred_region
          %1305 = vsyncadd %s1297, 0
          %s1306 = smul.addr %s20, 2
          %s1307 = sadd.s32 %s21, %s1306
          %s1308 = smul.addr %s1307, 8
          %s1309 = scalar_lea.hbm %s1, %s1308
          %s1310 = sshll.u32 %s1300, 4
          %s1311 = int_to_ptr.vmem [resolvable:$true] %s1310
          %s1312 = sshll.u32 %s1309, 4
          %s1313 = int_to_ptr.hbm [resolvable:$true] %s1312
          %1318 = dma.vmem_to_hbm [thread:$0]  %s1311, 256, %s1313, %s1297, 128, 128, 8
        $region32: #{tpu_custom_call.1} parent=23 // pred_fallthru
          _
      $region24: #{tpu_custom_call.1} parent=5 // pred_fallthru
        _
      %p1319 = scmp.le.s32.totalorder 2, %s11
      // Predicated region
      $region33: #{tpu_custom_call.1} parent=5 // pred_check
        %p1320 = pneg %p1319
      $region34: #{tpu_custom_call.1} parent=5 // pred_check_branch
        %1322 = sbr.rel (%p1320) target = $region36
      $region35: #{tpu_custom_call.1} parent=5 // pred_region
        %s1323 = ssub.s32 %s11, 2
        // Predicated region
        $region37: #{tpu_custom_call.1} parent=35 // pred_check
          %p1324 = pneg %p75
        $region38: #{tpu_custom_call.1} parent=35 // pred_check_branch
          %1326 = sbr.rel (%p1324) target = $region40
        $region39: #{tpu_custom_call.1} parent=35 // pred_region
          %s1327 = sand.u32 %s60, 1
          %s1328 = scalar_lea.sflag [#allocation3], %s1327
          %s1329 = sand.u32 %s60, 1
          %s1330 = smul.addr %s1329, 16
          %s1331 = scalar_lea.vmem [#allocation5], %s1330
          %1333 = dma.done %s1328, 256
        $region40: #{tpu_custom_call.1} parent=35 // pred_fallthru
          _
      $region36: #{tpu_custom_call.1} parent=5 // pred_fallthru
        _
    $region6: #{tpu_custom_call.1} parent=1 // loop_footer
      %s15 = sadd.s32 1, %s11
    $region7: #{tpu_custom_call.1} parent=1 // loop_footer_branch
      %10 = sbr.rel target = $region3
    $region8: #{tpu_custom_call.1} parent=1 // loop_exit
      _
    %1334 = vsyncpa [#allocation3], 1
    %s1335 = scalar_lea.sflag [#allocation3], 1
    %1336 = vsyncpa %s1335, 1
    %1337 = vsyncpa [#allocation4], 1
    %s1338 = scalar_lea.sflag [#allocation4], 1
    %1339 = vsyncpa %s1338, 1

</llo_original>
